<compile_context>
chip_gen: v7x
topology: tpu7x:2x2x1
jax: 0.10.0
libtpu: 0.0.40
codegen_flags: <defaults>
</compile_context>

<pallas_src>
import jax
import jax.numpy as jnp
import numpy as np
from jax.experimental import pallas as pl
from jax.experimental.pallas import tpu as pltpu

LN_EPS = 1e-5  # PyTorch nn.LayerNorm default


# ---------------------------------------------------------------------------
# Per-chip tiling configuration
# ---------------------------------------------------------------------------
def _round_up(x, m):
    return ((x + m - 1) // m) * m


def _chip_config():
    """Tiling budget per TPU generation.

    v7x-class: 64 MiB VMEM per TensorCore, 2 TCs -> smaller M tiles, tighter
    vmem limit, and make sure the parallel M axis has >= 2 iterations.
    v5e/v6e: 128 MiB physical VMEM -> raise the scoped limit to 64 MiB and use
    larger M tiles so W1 (streamed once per M tile) is replayed fewer times.
    """
    vmem = 128 * 1024 * 1024
    try:
        vmem = int(pltpu.get_tpu_info().vmem_capacity_bytes)
    except Exception:
        pass
    if vmem <= 64 * 1024 * 1024:  # v7x-class part
        return dict(tm_target=256, tk_target=2048,
                    vmem_limit=48 * 1024 * 1024, split_for_two_cores=True)
    return dict(tm_target=512, tk_target=2048,
                vmem_limit=64 * 1024 * 1024, split_for_two_cores=False)


def _choose_tm(B, tm_target, split_for_two_cores):
    """M tile: 16-aligned (bf16 sublane packing), capped by padded B."""
    b16 = _round_up(B, 16)
    tm = min(tm_target, b16)
    # v7x: guarantee >= 2 grid steps on the parallel axis so both TCs work.
    if split_for_two_cores and b16 // tm < 2 and b16 >= 32:
        tm = max(16, (b16 // 32) * 16)
    return tm


def _choose_tk(k_pad, tk_target):
    """K tile: 256-aligned divisor of (already 256-padded) K."""
    tk = min(tk_target, k_pad)
    tk = max(256, (tk // 256) * 256)
    while k_pad % tk != 0:
        tk -= 256
    return tk


# ---------------------------------------------------------------------------
# Kernel 1: fused  (x @ W1 + b1) -> LayerNorm -> ReLU, bf16 output.
# grid = (M tiles ["parallel"], K tiles ["arbitrary"]).
# f32 accumulation in a VMEM scratch; bf16 cast only in the last-K epilogue.
# ---------------------------------------------------------------------------
def _linear_ln_relu_kernel(x_ref, w_ref, b_ref, g_ref, beta_ref, o_ref, acc_ref):
    k = pl.program_id(1)

    @pl.when(k == 0)
    def _():
        acc_ref[...] = jnp.zeros_like(acc_ref)

    acc_ref[...] += jnp.dot(
        x_ref[...].astype(jnp.bfloat16),  # bf16 operands, f32 accumulation
        w_ref[...],
        preferred_element_type=jnp.float32,
    )

    @pl.when(k == pl.num_programs(1) - 1)
    def _():
        y = acc_ref[...] + b_ref[...]                       # (tm, H), f32
        # One-pass LayerNorm statistics: var = E[y^2] - mean^2.
        mean = jnp.mean(y, axis=-1, keepdims=True)
        var = jnp.mean(y * y, axis=-1, keepdims=True) - mean * mean
        yn = (y - mean) * jax.lax.rsqrt(var + LN_EPS)
        yn = yn * g_ref[...] + beta_ref[...]
        o_ref[...] = jnp.maximum(yn, 0.0).astype(o_ref.dtype)   # bf16 out


def linear_ln_relu(x, w, b, gamma, beta, *, tm, tk, vmem_limit):
    B, K = x.shape
    Kw, H = w.shape
    assert Kw == K and B % tm == 0 and K % tk == 0
    b2 = b.reshape(1, H).astype(jnp.float32)
    g2 = gamma.reshape(1, H).astype(jnp.float32)
    beta2 = beta.reshape(1, H).astype(jnp.float32)
    return pl.pallas_call(
        _linear_ln_relu_kernel,
        out_shape=jax.ShapeDtypeStruct((B, H), jnp.bfloat16),
        grid_spec=pltpu.PrefetchScalarGridSpec(
            num_scalar_prefetch=0,
            grid=(B // tm, K // tk),
            in_specs=[
                pl.BlockSpec((tm, tk), lambda i, k: (i, k)),   # activations (f32)
                pl.BlockSpec((tk, H), lambda i, k: (k, 0)),    # bf16 weight stream
                pl.BlockSpec((1, H), lambda i, k: (0, 0)),     # bias
                pl.BlockSpec((1, H), lambda i, k: (0, 0)),     # LN gamma
                pl.BlockSpec((1, H), lambda i, k: (0, 0)),     # LN beta
            ],
            out_specs=pl.BlockSpec((tm, H), lambda i, k: (i, 0)),
            scratch_shapes=[pltpu.VMEM((tm, H), jnp.float32)],
        ),
        compiler_params=pltpu.CompilerParams(
            dimension_semantics=("parallel", "arbitrary"),
            vmem_limit_bytes=vmem_limit,
        ),
    )(x, w, b2, g2, beta2)


# ---------------------------------------------------------------------------
# Kernel 2: fused  (h @ W2 + b2) -> LayerNorm -> ReLU -> (· @ w3 + b3)
# Whole K (=2048) resident -> single-axis grid over M, no accumulator scratch.
# The 512->1 projection is a broadcast-mul + lane reduce in the epilogue.
# ---------------------------------------------------------------------------
def _linear_ln_relu_proj_kernel(x_ref, w_ref, b_ref, g_ref, beta_ref,
                                w3_ref, b3_ref, o_ref):
    y = jnp.dot(x_ref[...], w_ref[...], preferred_element_type=jnp.float32)
    y = y + b_ref[...]                                       # (tm, H2), f32
    mean = jnp.mean(y, axis=-1, keepdims=True)
    var = jnp.mean(y * y, axis=-1, keepdims=True) - mean * mean
    yn = (y - mean) * jax.lax.rsqrt(var + LN_EPS)
    h = jnp.maximum(yn * g_ref[...] + beta_ref[...], 0.0)
    out = jnp.sum(h * w3_ref[...], axis=-1, keepdims=True) + b3_ref[...]
    o_ref[...] = out.astype(o_ref.dtype)


def linear_ln_relu_proj(x, w2, b2, g2, beta2, w3_row, b3, *, tm, vmem_limit):
    B, K = x.shape
    Kw, H = w2.shape
    assert Kw == K and B % tm == 0
    b2r = b2.reshape(1, H).astype(jnp.float32)
    g2r = g2.reshape(1, H).astype(jnp.float32)
    beta2r = beta2.reshape(1, H).astype(jnp.float32)
    w3r = w3_row.reshape(1, H).astype(jnp.float32)
    b3r = b3.reshape(1, 1).astype(jnp.float32)
    return pl.pallas_call(
        _linear_ln_relu_proj_kernel,
        out_shape=jax.ShapeDtypeStruct((B, 1), jnp.float32),
        grid_spec=pltpu.PrefetchScalarGridSpec(
            num_scalar_prefetch=0,
            grid=(B // tm,),
            in_specs=[
                pl.BlockSpec((tm, K), lambda i: (i, 0)),   # bf16 activations
                pl.BlockSpec((K, H), lambda i: (0, 0)),    # bf16 W2 (whole, resident)
                pl.BlockSpec((1, H), lambda i: (0, 0)),    # bias2
                pl.BlockSpec((1, H), lambda i: (0, 0)),    # LN gamma
                pl.BlockSpec((1, H), lambda i: (0, 0)),    # LN beta
                pl.BlockSpec((1, H), lambda i: (0, 0)),    # w3 row (f32, VPU)
                pl.BlockSpec((1, 1), lambda i: (0, 0)),    # b3
            ],
            out_specs=pl.BlockSpec((tm, 1), lambda i: (i, 0)),
        ),
        compiler_params=pltpu.CompilerParams(
            dimension_semantics=("parallel",),
            vmem_limit_bytes=vmem_limit,
        ),
    )(x, w2, b2r, g2r, beta2r, w3r, b3r)


# ---------------------------------------------------------------------------
# MLP forward (Pallas) + parameter construction + pure-JAX reference
# ---------------------------------------------------------------------------
def init_params(key, input_dim, h1=2048, h2=512):
    k1, k2, k3, k4, k5, k6 = jax.random.split(key, 6)
    return {
        # matmul weights stored (in, out) in bf16 (streamed MXU operands)
        "w1": (jax.random.normal(k1, (input_dim, h1), jnp.float32)
               / np.sqrt(input_dim)).astype(jnp.bfloat16),
        "b1": jax.random.normal(k2, (h1,), jnp.float32) * 0.01,
        "w2": (jax.random.normal(k3, (h1, h2), jnp.float32)
               / np.sqrt(h1)).astype(jnp.bfloat16),
        "b2": jax.random.normal(k4, (h2,), jnp.float32) * 0.01,
        # final projection kept f32 (used as a VPU row, not an MXU operand)
        "w3": jax.random.normal(k5, (h2,), jnp.float32) / np.sqrt(h2),
        "b3": jax.random.normal(k6, (1,), jnp.float32) * 0.01,
        # nn.LayerNorm default init: weight = 1, bias = 0
        "g1": jnp.ones((h1,), jnp.float32),
        "beta1": jnp.zeros((h1,), jnp.float32),
        "g2": jnp.ones((h2,), jnp.float32),
        "beta2": jnp.zeros((h2,), jnp.float32),
    }


def mlp_forward_pallas(params, x):
    # Flatten if ndim > 2 (matches x.view(x.size(0), -1))
    if x.ndim > 2:
        x = x.reshape(x.shape[0], -1)
    x = x.astype(jnp.float32)
    B, K = x.shape

    cfg = _chip_config()
    tm = _choose_tm(B, cfg["tm_target"], cfg["split_for_two_cores"])
    b_pad = _round_up(B, tm)
    k_pad = _round_up(K, 256)
    tk1 = _choose_tk(k_pad, cfg["tk_target"])

    # Zero-pad batch and reduction dims (zeros contribute nothing to the matmul;
    # padded rows are sliced off the final output).
    x_p = jnp.pad(x, ((0, b_pad - B), (0, k_pad - K)))
    w1_p = jnp.pad(params["w1"], ((0, k_pad - K), (0, 0)))

    h = linear_ln_relu(x_p, w1_p, params["b1"], params["g1"], params["beta1"],
                       tm=tm, tk=tk1, vmem_limit=cfg["vmem_limit"])
    # dropout(0.2): identity (eval mode)
    out = linear_ln_relu_proj(h, params["w2"], params["b2"], params["g2"],
                              params["beta2"], params["w3"], params["b3"],
                              tm=tm, vmem_limit=cfg["vmem_limit"])
    # dropout(0.2) before layer3 is also identity in eval mode (fused kernel).
    return out[:B]


def mlp_forward_ref(params, x):
    if x.ndim > 2:
        x = x.reshape(x.shape[0], -1)

    def ln(y, g, b):
        m = jnp.mean(y, axis=-1, keepdims=True)
        v = jnp.mean((y - m) ** 2, axis=-1, keepdims=True)
        return (y - m) * jax.lax.rsqrt(v + LN_EPS) * g + b

    def mm(a, w):
        return jnp.dot(a.astype(jnp.bfloat16), w, preferred_element_type=jnp.float32)

    h = jnp.maximum(ln(mm(x, params["w1"]) + params["b1"],
                       params["g1"], params["beta1"]), 0.0)
    h = h.astype(jnp.bfloat16).astype(jnp.float32)   # matches bf16 h storage
    h = jnp.maximum(ln(mm(h, params["w2"]) + params["b2"],
                       params["g2"], params["beta2"]), 0.0)
    return jnp.sum(h * params["w3"][None, :], axis=-1, keepdims=True) + params["b3"][None, :]


if __name__ == "__main__":
    key = jax.random.PRNGKey(0)
    kx, kp = jax.random.split(key)

    B, S, D = 2, 6, 128          # x is (2, 6, 128) -> flattened to (2, 768)
    input_dim = S * D            # small stand-in for the module's 768*144 default
    x = jax.random.normal(kx, (B, S, D), jnp.float32)
    params = init_params(kp, input_dim)

    out = mlp_forward_pallas(params, x)
    out = jax.block_until_ready(out)

    ref = mlp_forward_ref(params, x)
    assert out.shape == (B, 1), out.shape
    np.testing.assert_allclose(np.asarray(out), np.asarray(ref), rtol=1e-2, atol=1e-2)

    print("KERNEL_OK")
</pallas_src>

<mosaic_0001>
module attributes {stable_mosaic.version = 11 : i64} {
  func.func @_linear_ln_relu_kernel(%arg0: i32, %arg1: i32, %arg2: memref<16x768xf32, #tpu.memory_space<vmem>>, %arg3: memref<768x2048xbf16, #tpu.memory_space<vmem>>, %arg4: memref<1x2048xf32, #tpu.memory_space<vmem>>, %arg5: memref<1x2048xf32, #tpu.memory_space<vmem>>, %arg6: memref<1x2048xf32, #tpu.memory_space<vmem>>, %arg7: memref<16x2048xbf16, #tpu.memory_space<vmem>>, %arg8: memref<16x2048xf32, #tpu.memory_space<vmem>>) attributes {dimension_semantics = [#tpu.dimension_semantics<parallel>, #tpu.dimension_semantics<arbitrary>], iteration_bounds = array<i64: 1, 1>, scalar_prefetch = 0 : i64, scratch_operands = 1 : i64, tpu.core_type = #tpu.core_type<tc>, window_params = [{transform_indices = @transform_0, window_bounds = array<i64: 16, 768>}, {transform_indices = @transform_1, window_bounds = array<i64: 768, 2048>}, {pipeline_mode = #tpu.pipeline_mode<synchronous>, transform_indices = @transform_2, window_bounds = array<i64: 1, 2048>}, {pipeline_mode = #tpu.pipeline_mode<synchronous>, transform_indices = @transform_3, window_bounds = array<i64: 1, 2048>}, {pipeline_mode = #tpu.pipeline_mode<synchronous>, transform_indices = @transform_4, window_bounds = array<i64: 1, 2048>}, {transform_indices = @transform_5, window_bounds = array<i64: 16, 2048>}]} {
    %c0_i32 = arith.constant 0 : i32
    %0 = arith.cmpi eq, %arg1, %c0_i32 : i32
    %1 = arith.extui %0 : i1 to i32
    %c0_i32_0 = arith.constant 0 : i32
    %2 = arith.cmpi ne, %1, %c0_i32_0 : i32
    scf.if %2 {
      %cst_10 = arith.constant 0.000000e+00 : f32
      %13 = vector.broadcast %cst_10 : f32 to vector<16x2048xf32>
      %c0_11 = arith.constant 0 : index
      %c0_12 = arith.constant 0 : index
      %14 = vector.load %arg8[%c0_11, %c0_12] : memref<16x2048xf32, #tpu.memory_space<vmem>>, vector<16x2048xf32>
      tpu.vector_store %arg8[%c0_11, %c0_12], %13 {strides = array<i32>} : memref<16x2048xf32, #tpu.memory_space<vmem>>, vector<16x2048xf32>,
    } else {
    }
    %c0 = arith.constant 0 : index
    %c0_1 = arith.constant 0 : index
    %3 = vector.load %arg8[%c0, %c0_1] : memref<16x2048xf32, #tpu.memory_space<vmem>>, vector<16x2048xf32>
    %c0_2 = arith.constant 0 : index
    %c0_3 = arith.constant 0 : index
    %4 = vector.load %arg2[%c0_2, %c0_3] : memref<16x768xf32, #tpu.memory_space<vmem>>, vector<16x768xf32>
    %5 = arith.truncf %4 : vector<16x768xf32> to vector<16x768xbf16>
    %c0_4 = arith.constant 0 : index
    %c0_5 = arith.constant 0 : index
    %6 = vector.load %arg3[%c0_4, %c0_5] : memref<768x2048xbf16, #tpu.memory_space<vmem>>, vector<768x2048xbf16>
    %cst = arith.constant dense<0.000000e+00> : vector<16x2048xf32>
    %7 = tpu.matmul %5, %6, %cst {dimension_numbers = #tpu.dot_dimension_numbers<[1], [0], [0], [1], [0, 0, 1, 1], [], []>} : vector<16x768xbf16>, vector<768x2048xbf16>, vector<16x2048xf32> -> vector<16x2048xf32>
    %8 = arith.addf %3, %7 : vector<16x2048xf32>
    %c0_6 = arith.constant 0 : index
    %c0_7 = arith.constant 0 : index
    %9 = vector.load %arg8[%c0_6, %c0_7] : memref<16x2048xf32, #tpu.memory_space<vmem>>, vector<16x2048xf32>
    tpu.vector_store %arg8[%c0_6, %c0_7], %8 {strides = array<i32>} : memref<16x2048xf32, #tpu.memory_space<vmem>>, vector<16x2048xf32>,
    %c0_i32_8 = arith.constant 0 : i32
    %10 = arith.cmpi eq, %arg1, %c0_i32_8 : i32
    %11 = arith.extui %10 : i1 to i32
    %c0_i32_9 = arith.constant 0 : i32
    %12 = arith.cmpi ne, %11, %c0_i32_9 : i32
    scf.if %12 {
      %c0_10 = arith.constant 0 : index
      %c0_11 = arith.constant 0 : index
      %13 = vector.load %arg8[%c0_10, %c0_11] : memref<16x2048xf32, #tpu.memory_space<vmem>>, vector<16x2048xf32>
      %c0_12 = arith.constant 0 : index
      %c0_13 = arith.constant 0 : index
      %14 = vector.load %arg4[%c0_12, %c0_13] : memref<1x2048xf32, #tpu.memory_space<vmem>>, vector<1x2048xf32>
      %15 = vector.broadcast %14 : vector<1x2048xf32> to vector<16x2048xf32>
      %16 = arith.addf %13, %15 : vector<16x2048xf32>
      %cst_14 = arith.constant dense<0.000000e+00> : vector<16xf32>
      %17 = vector.multi_reduction <add>, %16, %cst_14 [1] : vector<16x2048xf32> to vector<16xf32>
      %18 = vector.shape_cast %17 : vector<16xf32> to vector<16x1xf32>
      %cst_15 = arith.constant 2.048000e+03 : f32
      %19 = vector.broadcast %cst_15 : f32 to vector<16x1xf32>
      %20 = arith.divf %18, %19 : vector<16x1xf32>
      %21 = arith.mulf %16, %16 : vector<16x2048xf32>
      %cst_16 = arith.constant dense<0.000000e+00> : vector<16xf32>
      %22 = vector.multi_reduction <add>, %21, %cst_16 [1] : vector<16x2048xf32> to vector<16xf32>
      %23 = vector.shape_cast %22 : vector<16xf32> to vector<16x1xf32>
      %cst_17 = arith.constant 2.048000e+03 : f32
      %24 = vector.broadcast %cst_17 : f32 to vector<16x1xf32>
      %25 = arith.divf %23, %24 : vector<16x1xf32>
      %26 = arith.mulf %20, %20 : vector<16x1xf32>
      %27 = arith.subf %25, %26 : vector<16x1xf32>
      %28 = vector.broadcast %20 : vector<16x1xf32> to vector<16x2048xf32>
      %29 = arith.subf %16, %28 : vector<16x2048xf32>
      %cst_18 = arith.constant 9.99999974E-6 : f32
      %30 = vector.broadcast %cst_18 : f32 to vector<16x1xf32>
      %31 = arith.addf %27, %30 : vector<16x1xf32>
      %32 = math.rsqrt %31 : vector<16x1xf32>
      %33 = vector.broadcast %32 : vector<16x1xf32> to vector<16x2048xf32>
      %34 = arith.mulf %29, %33 : vector<16x2048xf32>
      %c0_19 = arith.constant 0 : index
      %c0_20 = arith.constant 0 : index
      %35 = vector.load %arg5[%c0_19, %c0_20] : memref<1x2048xf32, #tpu.memory_space<vmem>>, vector<1x2048xf32>
      %36 = vector.broadcast %35 : vector<1x2048xf32> to vector<16x2048xf32>
      %37 = arith.mulf %34, %36 : vector<16x2048xf32>
      %c0_21 = arith.constant 0 : index
      %c0_22 = arith.constant 0 : index
      %38 = vector.load %arg6[%c0_21, %c0_22] : memref<1x2048xf32, #tpu.memory_space<vmem>>, vector<1x2048xf32>
      %39 = vector.broadcast %38 : vector<1x2048xf32> to vector<16x2048xf32>
      %40 = arith.addf %37, %39 : vector<16x2048xf32>
      %cst_23 = arith.constant 0.000000e+00 : f32
      %41 = vector.broadcast %cst_23 : f32 to vector<16x2048xf32>
      %42 = arith.maximumf %40, %41 : vector<16x2048xf32>
      %43 = arith.truncf %42 : vector<16x2048xf32> to vector<16x2048xbf16>
      %c0_24 = arith.constant 0 : index
      %c0_25 = arith.constant 0 : index
      %44 = vector.load %arg7[%c0_24, %c0_25] : memref<16x2048xbf16, #tpu.memory_space<vmem>>, vector<16x2048xbf16>
      tpu.vector_store %arg7[%c0_24, %c0_25], %43 {strides = array<i32>} : memref<16x2048xbf16, #tpu.memory_space<vmem>>, vector<16x2048xbf16>,
    } else {
    }
    return
  }
  func.func @transform_0(%arg0: i32, %arg1: i32) -> (i32, i32) {
    %c0_i32 = arith.constant 0 : i32
    return %arg0, %arg1 : i32, i32
  }
  func.func @transform_1(%arg0: i32, %arg1: i32) -> (i32, i32) {
    %c0_i32 = arith.constant 0 : i32
    %c0_i32_0 = arith.constant 0 : i32
    return %arg1, %c0_i32 : i32, i32
  }
  func.func @transform_2(%arg0: i32, %arg1: i32) -> (i32, i32) {
    %c0_i32 = arith.constant 0 : i32
    %c0_i32_0 = arith.constant 0 : i32
    %c0_i32_1 = arith.constant 0 : i32
    return %c0_i32, %c0_i32_0 : i32, i32
  }
  func.func @transform_3(%arg0: i32, %arg1: i32) -> (i32, i32) {
    %c0_i32 = arith.constant 0 : i32
    %c0_i32_0 = arith.constant 0 : i32
    %c0_i32_1 = arith.constant 0 : i32
    return %c0_i32, %c0_i32_0 : i32, i32
  }
  func.func @transform_4(%arg0: i32, %arg1: i32) -> (i32, i32) {
    %c0_i32 = arith.constant 0 : i32
    %c0_i32_0 = arith.constant 0 : i32
    %c0_i32_1 = arith.constant 0 : i32
    return %c0_i32, %c0_i32_0 : i32, i32
  }
  func.func @transform_5(%arg0: i32, %arg1: i32) -> (i32, i32) {
    %c0_i32 = arith.constant 0 : i32
    %c0_i32_0 = arith.constant 0 : i32
    return %arg0, %c0_i32 : i32, i32
  }
}

</mosaic_0001>

<llo_original>
// kernel: tpu_custom_call.1
$region0: #{tpu_custom_call.1}
  #allocation0 [shape = 'u32[]', space=smem, size = 0x4, offset = 0x4, fixed_abs, tag = 'smem constant byte address 0x4 - core index']
  #allocation1 [shape = 'u32[144,128]{1,0:T(1,128)}', space=vmem, size = 0x12000, scoped, tag = 'internal scratch']
  #allocation2 [shape = 'f32[16,2048]{1,0:T(8,128)}', space=vmem, size = 0x20000, scoped, tag = 'scratch operand']
  %s0 = inlined_call_operand.hbm [shape: f32[16,768], index: 0, kind: input, shape index: {}]
  %s1 = inlined_call_operand.hbm [shape: bf16[768,2048], index: 1, kind: input, shape index: {}]
  %s2 = inlined_call_operand.hbm [shape: f32[1,2048], index: 2, kind: input, shape index: {}]
  %s3 = inlined_call_operand.hbm [shape: f32[1,2048], index: 3, kind: input, shape index: {}]
  %s4 = inlined_call_operand.hbm [shape: f32[1,2048], index: 4, kind: input, shape index: {}]
  %s5 = inlined_call_operand.hbm [shape: bf16[16,2048], index: 5, kind: output, shape index: {}]
  %s6 = sld [smem:[#allocation0]]
  $region58: #{tpu_custom_call.1} parent=0
    _
  %s8 = ssub.s32 1, %s6
  %s9 = scalar_select 0, %s8, %s6
  $region1: #{tpu_custom_call.1} parent=0
    #allocation3 [shape = 'u8[49152]{0}', space=vmem, size = 0xc000, scoped, tag = 'input window, operand 0, single buffered']
    #allocation4 [shape = 's32[1]{0}', space=sflag, size = 0x4, scoped, tag = 'scoped memory for tpu_custom_call.1']
    #allocation5 [shape = 's32[1]{0}', space=sflag, size = 0x4, scoped, tag = 'scoped memory for tpu_custom_call.1']
    #allocation6 [shape = 'u8[3145728]{0}', space=vmem, size = 0x300000, scoped, tag = 'input window, operand 1, single buffered']
    #allocation7 [shape = 's32[1]{0}', space=sflag, size = 0x4, scoped, tag = 'scoped memory for tpu_custom_call.1']
    #allocation8 [shape = 'u8[8192]{0}', space=vmem, size = 0x2000, scoped, tag = 'input window, operand 2, single buffered']
    #allocation9 [shape = 'u8[8192]{0}', space=vmem, size = 0x2000, scoped, tag = 'input window, operand 3, single buffered']
    #allocation10 [shape = 's32[1]{0}', space=sflag, size = 0x4, scoped, tag = 'scoped memory for tpu_custom_call.1']
    #allocation11 [shape = 'u8[8192]{0}', space=vmem, size = 0x2000, scoped, tag = 'input window, operand 4, single buffered']
    #allocation12 [shape = 'u8[65536]{0}', space=vmem, size = 0x10000, scoped, tag = 'output window, operand 0, single buffered']
    %10 = vsyncpa [#allocation4], 0
    %11 = vsyncpa [#allocation7], 0
    %12 = vsyncpa [#allocation10], 0
    %13 = vsyncpa [#allocation5], 0
    // Predicated region
    $region2: #{tpu_custom_call.1} parent=1 // pred_check
      _
    $region3: #{tpu_custom_call.1} parent=1 // pred_check_branch
      %15 = sbr.rel (0) target = $region5
    $region4: #{tpu_custom_call.1} parent=1 // pred_region
      %s17 = ssub.s32 1536, 1536
      %18 = vsyncadd [#allocation4], %s17
      %s19 = sshll.u32 [#allocation3], 4
      %s20 = int_to_ptr.vmem [resolvable:$true] %s19
      %25 = dma.hbm_to_vmem [thread:$0]  %s0, 1536, %s20, [#allocation4], 768, 768, 48
    $region5: #{tpu_custom_call.1} parent=1 // pred_fallthru
      _
    // Predicated region
    $region6: #{tpu_custom_call.1} parent=1 // pred_check
      _
    $region7: #{tpu_custom_call.1} parent=1 // pred_check_branch
      %27 = sbr.rel (0) target = $region9
    $region8: #{tpu_custom_call.1} parent=1 // pred_region
      %s29 = ssub.s32 98304, 98304
      %30 = vsyncadd [#allocation7], %s29
      %s31 = sshll.u32 [#allocation6], 4
      %s32 = int_to_ptr.vmem [resolvable:$true] %s31
      %37 = dma.hbm_to_vmem [thread:$0]  %s1, 98304, %s32, [#allocation7], 1024, 1024, 64
    $region9: #{tpu_custom_call.1} parent=1 // pred_fallthru
      _
    // Predicated region
    $region10: #{tpu_custom_call.1} parent=1 // pred_check
      _
    $region11: #{tpu_custom_call.1} parent=1 // pred_check_branch
      %39 = sbr.rel (0) target = $region13
    $region12: #{tpu_custom_call.1} parent=1 // pred_region
      %s41 = ssub.s32 256, 256
      %42 = vsyncadd [#allocation7], %s41
      %s44 = sshll.u32 [#allocation8], 4
      %s45 = int_to_ptr.vmem [resolvable:$true] %s44
      %47 = dma.hbm_to_vmem [thread:$0]  %s2, 256, %s45, [#allocation7]
    $region13: #{tpu_custom_call.1} parent=1 // pred_fallthru
      _
    // Predicated region
    $region14: #{tpu_custom_call.1} parent=1 // pred_check
      _
    $region15: #{tpu_custom_call.1} parent=1 // pred_check_branch
      %49 = sbr.rel (0) target = $region17
    $region16: #{tpu_custom_call.1} parent=1 // pred_region
      %s51 = ssub.s32 256, 256
      %52 = vsyncadd [#allocation10], %s51
      %s54 = sshll.u32 [#allocation9], 4
      %s55 = int_to_ptr.vmem [resolvable:$true] %s54
      %57 = dma.hbm_to_vmem [thread:$0]  %s3, 256, %s55, [#allocation10]
    $region17: #{tpu_custom_call.1} parent=1 // pred_fallthru
      _
    // Predicated region
    $region18: #{tpu_custom_call.1} parent=1 // pred_check
      _
    $region19: #{tpu_custom_call.1} parent=1 // pred_check_branch
      %59 = sbr.rel (0) target = $region21
    $region20: #{tpu_custom_call.1} parent=1 // pred_region
      %s61 = ssub.s32 256, 256
      %62 = vsyncadd [#allocation10], %s61
      %s64 = sshll.u32 [#allocation11], 4
      %s65 = int_to_ptr.vmem [resolvable:$true] %s64
      %67 = dma.hbm_to_vmem [thread:$0]  %s4, 256, %s65, [#allocation10]
    $region21: #{tpu_custom_call.1} parent=1 // pred_fallthru
      _
    // Predicated region
    $region22: #{tpu_custom_call.1} parent=1 // pred_check
      _
    $region23: #{tpu_custom_call.1} parent=1 // pred_check_branch
      %69 = sbr.rel (0) target = $region25
    $region24: #{tpu_custom_call.1} parent=1 // pred_region
      %70 = dma.done [#allocation4], 1536
    $region25: #{tpu_custom_call.1} parent=1 // pred_fallthru
      _
    // Predicated region
    $region26: #{tpu_custom_call.1} parent=1 // pred_check
      _
    $region27: #{tpu_custom_call.1} parent=1 // pred_check_branch
      %72 = sbr.rel (0) target = $region29
    $region28: #{tpu_custom_call.1} parent=1 // pred_region
      %73 = dma.done [#allocation7], 98304
    $region29: #{tpu_custom_call.1} parent=1 // pred_fallthru
      _
    // Predicated region
    $region30: #{tpu_custom_call.1} parent=1 // pred_check
      _
    $region31: #{tpu_custom_call.1} parent=1 // pred_check_branch
      %75 = sbr.rel (0) target = $region33
    $region32: #{tpu_custom_call.1} parent=1 // pred_region
      %76 = dma.done [#allocation7], 256
    $region33: #{tpu_custom_call.1} parent=1 // pred_fallthru
      _
    // Predicated region
    $region34: #{tpu_custom_call.1} parent=1 // pred_check
      _
    $region35: #{tpu_custom_call.1} parent=1 // pred_check_branch
      %78 = sbr.rel (0) target = $region37
    $region36: #{tpu_custom_call.1} parent=1 // pred_region
      %79 = dma.done [#allocation10], 256
    $region37: #{tpu_custom_call.1} parent=1 // pred_fallthru
      _
    // Predicated region
    $region38: #{tpu_custom_call.1} parent=1 // pred_check
      _
    $region39: #{tpu_custom_call.1} parent=1 // pred_check_branch
      %81 = sbr.rel (0) target = $region41
    $region40: #{tpu_custom_call.1} parent=1 // pred_region
      %82 = dma.done [#allocation10], 256
    $region41: #{tpu_custom_call.1} parent=1 // pred_fallthru
      _
    %p83 = scmp.eq.s32.totalorder 0, 0
    // Predicated region
    $region42: #{tpu_custom_call.1} parent=1 // pred_check
      %p84 = pneg %p83
    $region43: #{tpu_custom_call.1} parent=1 // pred_check_branch
      %86 = sbr.rel (%p84) target = $region45
    $region44: #{tpu_custom_call.1} parent=1 // pred_region
      %87 = vst [vmem:[#allocation2] sm:$0xff] 0.0
      %88 = vst [vmem:[#allocation2 + $0x8] sm:$0xff] 0.0
      %89 = vst [vmem:[#allocation2 + $0x10] sm:$0xff] 0.0
      %90 = vst [vmem:[#allocation2 + $0x18] sm:$0xff] 0.0
      %91 = vst [vmem:[#allocation2 + $0x20] sm:$0xff] 0.0
      %92 = vst [vmem:[#allocation2 + $0x28] sm:$0xff] 0.0
      %93 = vst [vmem:[#allocation2 + $0x30] sm:$0xff] 0.0
      %94 = vst [vmem:[#allocation2 + $0x38] sm:$0xff] 0.0
      %95 = vst [vmem:[#allocation2 + $0x40] sm:$0xff] 0.0
      %96 = vst [vmem:[#allocation2 + $0x48] sm:$0xff] 0.0
      %97 = vst [vmem:[#allocation2 + $0x50] sm:$0xff] 0.0
      %98 = vst [vmem:[#allocation2 + $0x58] sm:$0xff] 0.0
      %99 = vst [vmem:[#allocation2 + $0x60] sm:$0xff] 0.0
      %100 = vst [vmem:[#allocation2 + $0x68] sm:$0xff] 0.0
      %101 = vst [vmem:[#allocation2 + $0x70] sm:$0xff] 0.0
      %102 = vst [vmem:[#allocation2 + $0x78] sm:$0xff] 0.0
      %103 = vst [vmem:[#allocation2 + $0x80] sm:$0xff] 0.0
      %104 = vst [vmem:[#allocation2 + $0x88] sm:$0xff] 0.0
      %105 = vst [vmem:[#allocation2 + $0x90] sm:$0xff] 0.0
      %106 = vst [vmem:[#allocation2 + $0x98] sm:$0xff] 0.0
      %107 = vst [vmem:[#allocation2 + $0xa0] sm:$0xff] 0.0
      %108 = vst [vmem:[#allocation2 + $0xa8] sm:$0xff] 0.0
      %109 = vst [vmem:[#allocation2 + $0xb0] sm:$0xff] 0.0
      %110 = vst [vmem:[#allocation2 + $0xb8] sm:$0xff] 0.0
      %111 = vst [vmem:[#allocation2 + $0xc0] sm:$0xff] 0.0
      %112 = vst [vmem:[#allocation2 + $0xc8] sm:$0xff] 0.0
      %113 = vst [vmem:[#allocation2 + $0xd0] sm:$0xff] 0.0
      %114 = vst [vmem:[#allocation2 + $0xd8] sm:$0xff] 0.0
      %115 = vst [vmem:[#allocation2 + $0xe0] sm:$0xff] 0.0
      %116 = vst [vmem:[#allocation2 + $0xe8] sm:$0xff] 0.0
      %117 = vst [vmem:[#allocation2 + $0xf0] sm:$0xff] 0.0
      %118 = vst [vmem:[#allocation2 + $0xf8] sm:$0xff] 0.0
    $region45: #{tpu_custom_call.1} parent=1 // pred_fallthru
      _
    %v119 = vld [vmem:[#allocation2] sm:$0xff]
    %v120 = vld [vmem:[#allocation2 + $0x8] sm:$0xff]
    %v121 = vld [vmem:[#allocation2 + $0x10] sm:$0xff]
    %v122 = vld [vmem:[#allocation2 + $0x18] sm:$0xff]
    %v123 = vld [vmem:[#allocation2 + $0x20] sm:$0xff]
    %v124 = vld [vmem:[#allocation2 + $0x28] sm:$0xff]
    %v125 = vld [vmem:[#allocation2 + $0x30] sm:$0xff]
    %v126 = vld [vmem:[#allocation2 + $0x38] sm:$0xff]
    %v127 = vld [vmem:[#allocation2 + $0x40] sm:$0xff]
    %v128 = vld [vmem:[#allocation2 + $0x48] sm:$0xff]
    %v129 = vld [vmem:[#allocation2 + $0x50] sm:$0xff]
    %v130 = vld [vmem:[#allocation2 + $0x58] sm:$0xff]
    %v131 = vld [vmem:[#allocation2 + $0x60] sm:$0xff]
    %v132 = vld [vmem:[#allocation2 + $0x68] sm:$0xff]
    %v133 = vld [vmem:[#allocation2 + $0x70] sm:$0xff]
    %v134 = vld [vmem:[#allocation2 + $0x78] sm:$0xff]
    %v135 = vld [vmem:[#allocation2 + $0x80] sm:$0xff]
    %v136 = vld [vmem:[#allocation2 + $0x88] sm:$0xff]
    %v137 = vld [vmem:[#allocation2 + $0x90] sm:$0xff]
    %v138 = vld [vmem:[#allocation2 + $0x98] sm:$0xff]
    %v139 = vld [vmem:[#allocation2 + $0xa0] sm:$0xff]
    %v140 = vld [vmem:[#allocation2 + $0xa8] sm:$0xff]
    %v141 = vld [vmem:[#allocation2 + $0xb0] sm:$0xff]
    %v142 = vld [vmem:[#allocation2 + $0xb8] sm:$0xff]
    %v143 = vld [vmem:[#allocation2 + $0xc0] sm:$0xff]
    %v144 = vld [vmem:[#allocation2 + $0xc8] sm:$0xff]
    %v145 = vld [vmem:[#allocation2 + $0xd0] sm:$0xff]
    %v146 = vld [vmem:[#allocation2 + $0xd8] sm:$0xff]
    %v147 = vld [vmem:[#allocation2 + $0xe0] sm:$0xff]
    %v148 = vld [vmem:[#allocation2 + $0xe8] sm:$0xff]
    %v149 = vld [vmem:[#allocation2 + $0xf0] sm:$0xff]
    %v150 = vld [vmem:[#allocation2 + $0xf8] sm:$0xff]
    %v151 = vld [vmem:[#allocation3] sm:$0xff]
    %v152 = vld [vmem:[#allocation3 + $0x8] sm:$0xff]
    %v153 = vld [vmem:[#allocation3 + $0x10] sm:$0xff]
    %v154 = vld [vmem:[#allocation3 + $0x18] sm:$0xff]
    %v155 = vld [vmem:[#allocation3 + $0x20] sm:$0xff]
    %v156 = vld [vmem:[#allocation3 + $0x28] sm:$0xff]
    %v157 = vld [vmem:[#allocation3 + $0x30] sm:$0xff]
    %v158 = vld [vmem:[#allocation3 + $0x38] sm:$0xff]
    %v159 = vld [vmem:[#allocation3 + $0x40] sm:$0xff]
    %v160 = vld [vmem:[#allocation3 + $0x48] sm:$0xff]
    %v161 = vld [vmem:[#allocation3 + $0x50] sm:$0xff]
    %v162 = vld [vmem:[#allocation3 + $0x58] sm:$0xff]
    %v163 = vpack.c.bf16 %v157, %v151
    %v164 = vpack.c.bf16 %v158, %v152
    %v165 = vpack.c.bf16 %v159, %v153
    %v166 = vpack.c.bf16 %v160, %v154
    %v167 = vpack.c.bf16 %v161, %v155
    %v168 = vpack.c.bf16 %v162, %v156
    %v169 = vld [vmem:[#allocation6] sm:$0xff]
    %v170 = vld [vmem:[#allocation6 + $0x8] sm:$0xff]
    %v171 = vld [vmem:[#allocation6 + $0x10] sm:$0xff]
    %v172 = vld [vmem:[#allocation6 + $0x18] sm:$0xff]
    %v173 = vld [vmem:[#allocation6 + $0x20] sm:$0xff]
    %v174 = vld [vmem:[#allocation6 + $0x28] sm:$0xff]
    %v175 = vld [vmem:[#allocation6 + $0x30] sm:$0xff]
    %v176 = vld [vmem:[#allocation6 + $0x38] sm:$0xff]
    %v177 = vld [vmem:[#allocation6 + $0x40] sm:$0xff]
    %v178 = vld [vmem:[#allocation6 + $0x48] sm:$0xff]
    %v179 = vld [vmem:[#allocation6 + $0x50] sm:$0xff]
    %v180 = vld [vmem:[#allocation6 + $0x58] sm:$0xff]
    %v181 = vld [vmem:[#allocation6 + $0x60] sm:$0xff]
    %v182 = vld [vmem:[#allocation6 + $0x68] sm:$0xff]
    %v183 = vld [vmem:[#allocation6 + $0x70] sm:$0xff]
    %v184 = vld [vmem:[#allocation6 + $0x78] sm:$0xff]
    %v185 = vld [vmem:[#allocation6 + $0x80] sm:$0xff]
    %v186 = vld [vmem:[#allocation6 + $0x88] sm:$0xff]
    %v187 = vld [vmem:[#allocation6 + $0x90] sm:$0xff]
    %v188 = vld [vmem:[#allocation6 + $0x98] sm:$0xff]
    %v189 = vld [vmem:[#allocation6 + $0xa0] sm:$0xff]
    %v190 = vld [vmem:[#allocation6 + $0xa8] sm:$0xff]
    %v191 = vld [vmem:[#allocation6 + $0xb0] sm:$0xff]
    %v192 = vld [vmem:[#allocation6 + $0xb8] sm:$0xff]
    %v193 = vld [vmem:[#allocation6 + $0xc0] sm:$0xff]
    %v194 = vld [vmem:[#allocation6 + $0xc8] sm:$0xff]
    %v195 = vld [vmem:[#allocation6 + $0xd0] sm:$0xff]
    %v196 = vld [vmem:[#allocation6 + $0xd8] sm:$0xff]
    %v197 = vld [vmem:[#allocation6 + $0xe0] sm:$0xff]
    %v198 = vld [vmem:[#allocation6 + $0xe8] sm:$0xff]
    %v199 = vld [vmem:[#allocation6 + $0xf0] sm:$0xff]
    %v200 = vld [vmem:[#allocation6 + $0xf8] sm:$0xff]
    %v201 = vld [vmem:[#allocation6 + $0x100] sm:$0xff]
    %v202 = vld [vmem:[#allocation6 + $0x108] sm:$0xff]
    %v203 = vld [vmem:[#allocation6 + $0x110] sm:$0xff]
    %v204 = vld [vmem:[#allocation6 + $0x118] sm:$0xff]
    %v205 = vld [vmem:[#allocation6 + $0x120] sm:$0xff]
    %v206 = vld [vmem:[#allocation6 + $0x128] sm:$0xff]
    %v207 = vld [vmem:[#allocation6 + $0x130] sm:$0xff]
    %v208 = vld [vmem:[#allocation6 + $0x138] sm:$0xff]
    %v209 = vld [vmem:[#allocation6 + $0x140] sm:$0xff]
    %v210 = vld [vmem:[#allocation6 + $0x148] sm:$0xff]
    %v211 = vld [vmem:[#allocation6 + $0x150] sm:$0xff]
    %v212 = vld [vmem:[#allocation6 + $0x158] sm:$0xff]
    %v213 = vld [vmem:[#allocation6 + $0x160] sm:$0xff]
    %v214 = vld [vmem:[#allocation6 + $0x168] sm:$0xff]
    %v215 = vld [vmem:[#allocation6 + $0x170] sm:$0xff]
    %v216 = vld [vmem:[#allocation6 + $0x178] sm:$0xff]
    %v217 = vld [vmem:[#allocation6 + $0x180] sm:$0xff]
    %v218 = vld [vmem:[#allocation6 + $0x188] sm:$0xff]
    %v219 = vld [vmem:[#allocation6 + $0x190] sm:$0xff]
    %v220 = vld [vmem:[#allocation6 + $0x198] sm:$0xff]
    %v221 = vld [vmem:[#allocation6 + $0x1a0] sm:$0xff]
    %v222 = vld [vmem:[#allocation6 + $0x1a8] sm:$0xff]
    %v223 = vld [vmem:[#allocation6 + $0x1b0] sm:$0xff]
    %v224 = vld [vmem:[#allocation6 + $0x1b8] sm:$0xff]
    %v225 = vld [vmem:[#allocation6 + $0x1c0] sm:$0xff]
    %v226 = vld [vmem:[#allocation6 + $0x1c8] sm:$0xff]
    %v227 = vld [vmem:[#allocation6 + $0x1d0] sm:$0xff]
    %v228 = vld [vmem:[#allocation6 + $0x1d8] sm:$0xff]
    %v229 = vld [vmem:[#allocation6 + $0x1e0] sm:$0xff]
    %v230 = vld [vmem:[#allocation6 + $0x1e8] sm:$0xff]
    %v231 = vld [vmem:[#allocation6 + $0x1f0] sm:$0xff]
    %v232 = vld [vmem:[#allocation6 + $0x1f8] sm:$0xff]
    %v233 = vld [vmem:[#allocation6 + $0x200] sm:$0xff]
    %v234 = vld [vmem:[#allocation6 + $0x208] sm:$0xff]
    %v235 = vld [vmem:[#allocation6 + $0x210] sm:$0xff]
    %v236 = vld [vmem:[#allocation6 + $0x218] sm:$0xff]
    %v237 = vld [vmem:[#allocation6 + $0x220] sm:$0xff]
    %v238 = vld [vmem:[#allocation6 + $0x228] sm:$0xff]
    %v239 = vld [vmem:[#allocation6 + $0x230] sm:$0xff]
    %v240 = vld [vmem:[#allocation6 + $0x238] sm:$0xff]
    %v241 = vld [vmem:[#allocation6 + $0x240] sm:$0xff]
    %v242 = vld [vmem:[#allocation6 + $0x248] sm:$0xff]
    %v243 = vld [vmem:[#allocation6 + $0x250] sm:$0xff]
    %v244 = vld [vmem:[#allocation6 + $0x258] sm:$0xff]
    %v245 = vld [vmem:[#allocation6 + $0x260] sm:$0xff]
    %v246 = vld [vmem:[#allocation6 + $0x268] sm:$0xff]
    %v247 = vld [vmem:[#allocation6 + $0x270] sm:$0xff]
    %v248 = vld [vmem:[#allocation6 + $0x278] sm:$0xff]
    %v249 = vld [vmem:[#allocation6 + $0x280] sm:$0xff]
    %v250 = vld [vmem:[#allocation6 + $0x288] sm:$0xff]
    %v251 = vld [vmem:[#allocation6 + $0x290] sm:$0xff]
    %v252 = vld [vmem:[#allocation6 + $0x298] sm:$0xff]
    %v253 = vld [vmem:[#allocation6 + $0x2a0] sm:$0xff]
    %v254 = vld [vmem:[#allocation6 + $0x2a8] sm:$0xff]
    %v255 = vld [vmem:[#allocation6 + $0x2b0] sm:$0xff]
    %v256 = vld [vmem:[#allocation6 + $0x2b8] sm:$0xff]
    %v257 = vld [vmem:[#allocation6 + $0x2c0] sm:$0xff]
    %v258 = vld [vmem:[#allocation6 + $0x2c8] sm:$0xff]
    %v259 = vld [vmem:[#allocation6 + $0x2d0] sm:$0xff]
    %v260 = vld [vmem:[#allocation6 + $0x2d8] sm:$0xff]
    %v261 = vld [vmem:[#allocation6 + $0x2e0] sm:$0xff]
    %v262 = vld [vmem:[#allocation6 + $0x2e8] sm:$0xff]
    %v263 = vld [vmem:[#allocation6 + $0x2f0] sm:$0xff]
    %v264 = vld [vmem:[#allocation6 + $0x2f8] sm:$0xff]
    %v265 = vld [vmem:[#allocation6 + $0x300] sm:$0xff]
    %v266 = vld [vmem:[#allocation6 + $0x308] sm:$0xff]
    %v267 = vld [vmem:[#allocation6 + $0x310] sm:$0xff]
    %v268 = vld [vmem:[#allocation6 + $0x318] sm:$0xff]
    %v269 = vld [vmem:[#allocation6 + $0x320] sm:$0xff]
    %v270 = vld [vmem:[#allocation6 + $0x328] sm:$0xff]
    %v271 = vld [vmem:[#allocation6 + $0x330] sm:$0xff]
    %v272 = vld [vmem:[#allocation6 + $0x338] sm:$0xff]
    %v273 = vld [vmem:[#allocation6 + $0x340] sm:$0xff]
    %v274 = vld [vmem:[#allocation6 + $0x348] sm:$0xff]
    %v275 = vld [vmem:[#allocation6 + $0x350] sm:$0xff]
    %v276 = vld [vmem:[#allocation6 + $0x358] sm:$0xff]
    %v277 = vld [vmem:[#allocation6 + $0x360] sm:$0xff]
    %v278 = vld [vmem:[#allocation6 + $0x368] sm:$0xff]
    %v279 = vld [vmem:[#allocation6 + $0x370] sm:$0xff]
    %v280 = vld [vmem:[#allocation6 + $0x378] sm:$0xff]
    %v281 = vld [vmem:[#allocation6 + $0x380] sm:$0xff]
    %v282 = vld [vmem:[#allocation6 + $0x388] sm:$0xff]
    %v283 = vld [vmem:[#allocation6 + $0x390] sm:$0xff]
    %v284 = vld [vmem:[#allocation6 + $0x398] sm:$0xff]
    %v285 = vld [vmem:[#allocation6 + $0x3a0] sm:$0xff]
    %v286 = vld [vmem:[#allocation6 + $0x3a8] sm:$0xff]
    %v287 = vld [vmem:[#allocation6 + $0x3b0] sm:$0xff]
    %v288 = vld [vmem:[#allocation6 + $0x3b8] sm:$0xff]
    %v289 = vld [vmem:[#allocation6 + $0x3c0] sm:$0xff]
    %v290 = vld [vmem:[#allocation6 + $0x3c8] sm:$0xff]
    %v291 = vld [vmem:[#allocation6 + $0x3d0] sm:$0xff]
    %v292 = vld [vmem:[#allocation6 + $0x3d8] sm:$0xff]
    %v293 = vld [vmem:[#allocation6 + $0x3e0] sm:$0xff]
    %v294 = vld [vmem:[#allocation6 + $0x3e8] sm:$0xff]
    %v295 = vld [vmem:[#allocation6 + $0x3f0] sm:$0xff]
    %v296 = vld [vmem:[#allocation6 + $0x3f8] sm:$0xff]
    %v297 = vld [vmem:[#allocation6 + $0x400] sm:$0xff]
    %v298 = vld [vmem:[#allocation6 + $0x408] sm:$0xff]
    %v299 = vld [vmem:[#allocation6 + $0x410] sm:$0xff]
    %v300 = vld [vmem:[#allocation6 + $0x418] sm:$0xff]
    %v301 = vld [vmem:[#allocation6 + $0x420] sm:$0xff]
    %v302 = vld [vmem:[#allocation6 + $0x428] sm:$0xff]
    %v303 = vld [vmem:[#allocation6 + $0x430] sm:$0xff]
    %v304 = vld [vmem:[#allocation6 + $0x438] sm:$0xff]
    %v305 = vld [vmem:[#allocation6 + $0x440] sm:$0xff]
    %v306 = vld [vmem:[#allocation6 + $0x448] sm:$0xff]
    %v307 = vld [vmem:[#allocation6 + $0x450] sm:$0xff]
    %v308 = vld [vmem:[#allocation6 + $0x458] sm:$0xff]
    %v309 = vld [vmem:[#allocation6 + $0x460] sm:$0xff]
    %v310 = vld [vmem:[#allocation6 + $0x468] sm:$0xff]
    %v311 = vld [vmem:[#allocation6 + $0x470] sm:$0xff]
    %v312 = vld [vmem:[#allocation6 + $0x478] sm:$0xff]
    %v313 = vld [vmem:[#allocation6 + $0x480] sm:$0xff]
    %v314 = vld [vmem:[#allocation6 + $0x488] sm:$0xff]
    %v315 = vld [vmem:[#allocation6 + $0x490] sm:$0xff]
    %v316 = vld [vmem:[#allocation6 + $0x498] sm:$0xff]
    %v317 = vld [vmem:[#allocation6 + $0x4a0] sm:$0xff]
    %v318 = vld [vmem:[#allocation6 + $0x4a8] sm:$0xff]
    %v319 = vld [vmem:[#allocation6 + $0x4b0] sm:$0xff]
    %v320 = vld [vmem:[#allocation6 + $0x4b8] sm:$0xff]
    %v321 = vld [vmem:[#allocation6 + $0x4c0] sm:$0xff]
    %v322 = vld [vmem:[#allocation6 + $0x4c8] sm:$0xff]
    %v323 = vld [vmem:[#allocation6 + $0x4d0] sm:$0xff]
    %v324 = vld [vmem:[#allocation6 + $0x4d8] sm:$0xff]
    %v325 = vld [vmem:[#allocation6 + $0x4e0] sm:$0xff]
    %v326 = vld [vmem:[#allocation6 + $0x4e8] sm:$0xff]
    %v327 = vld [vmem:[#allocation6 + $0x4f0] sm:$0xff]
    %v328 = vld [vmem:[#allocation6 + $0x4f8] sm:$0xff]
    %v329 = vld [vmem:[#allocation6 + $0x500] sm:$0xff]
    %v330 = vld [vmem:[#allocation6 + $0x508] sm:$0xff]
    %v331 = vld [vmem:[#allocation6 + $0x510] sm:$0xff]
    %v332 = vld [vmem:[#allocation6 + $0x518] sm:$0xff]
    %v333 = vld [vmem:[#allocation6 + $0x520] sm:$0xff]
    %v334 = vld [vmem:[#allocation6 + $0x528] sm:$0xff]
    %v335 = vld [vmem:[#allocation6 + $0x530] sm:$0xff]
    %v336 = vld [vmem:[#allocation6 + $0x538] sm:$0xff]
    %v337 = vld [vmem:[#allocation6 + $0x540] sm:$0xff]
    %v338 = vld [vmem:[#allocation6 + $0x548] sm:$0xff]
    %v339 = vld [vmem:[#allocation6 + $0x550] sm:$0xff]
    %v340 = vld [vmem:[#allocation6 + $0x558] sm:$0xff]
    %v341 = vld [vmem:[#allocation6 + $0x560] sm:$0xff]
    %v342 = vld [vmem:[#allocation6 + $0x568] sm:$0xff]
    %v343 = vld [vmem:[#allocation6 + $0x570] sm:$0xff]
    %v344 = vld [vmem:[#allocation6 + $0x578] sm:$0xff]
    %v345 = vld [vmem:[#allocation6 + $0x580] sm:$0xff]
    %v346 = vld [vmem:[#allocation6 + $0x588] sm:$0xff]
    %v347 = vld [vmem:[#allocation6 + $0x590] sm:$0xff]
    %v348 = vld [vmem:[#allocation6 + $0x598] sm:$0xff]
    %v349 = vld [vmem:[#allocation6 + $0x5a0] sm:$0xff]
    %v350 = vld [vmem:[#allocation6 + $0x5a8] sm:$0xff]
    %v351 = vld [vmem:[#allocation6 + $0x5b0] sm:$0xff]
    %v352 = vld [vmem:[#allocation6 + $0x5b8] sm:$0xff]
    %v353 = vld [vmem:[#allocation6 + $0x5c0] sm:$0xff]
    %v354 = vld [vmem:[#allocation6 + $0x5c8] sm:$0xff]
    %v355 = vld [vmem:[#allocation6 + $0x5d0] sm:$0xff]
    %v356 = vld [vmem:[#allocation6 + $0x5d8] sm:$0xff]
    %v357 = vld [vmem:[#allocation6 + $0x5e0] sm:$0xff]
    %v358 = vld [vmem:[#allocation6 + $0x5e8] sm:$0xff]
    %v359 = vld [vmem:[#allocation6 + $0x5f0] sm:$0xff]
    %v360 = vld [vmem:[#allocation6 + $0x5f8] sm:$0xff]
    %v361 = vld [vmem:[#allocation6 + $0x600] sm:$0xff]
    %v362 = vld [vmem:[#allocation6 + $0x608] sm:$0xff]
    %v363 = vld [vmem:[#allocation6 + $0x610] sm:$0xff]
    %v364 = vld [vmem:[#allocation6 + $0x618] sm:$0xff]
    %v365 = vld [vmem:[#allocation6 + $0x620] sm:$0xff]
    %v366 = vld [vmem:[#allocation6 + $0x628] sm:$0xff]
    %v367 = vld [vmem:[#allocation6 + $0x630] sm:$0xff]
    %v368 = vld [vmem:[#allocation6 + $0x638] sm:$0xff]
    %v369 = vld [vmem:[#allocation6 + $0x640] sm:$0xff]
    %v370 = vld [vmem:[#allocation6 + $0x648] sm:$0xff]
    %v371 = vld [vmem:[#allocation6 + $0x650] sm:$0xff]
    %v372 = vld [vmem:[#allocation6 + $0x658] sm:$0xff]
    %v373 = vld [vmem:[#allocation6 + $0x660] sm:$0xff]
    %v374 = vld [vmem:[#allocation6 + $0x668] sm:$0xff]
    %v375 = vld [vmem:[#allocation6 + $0x670] sm:$0xff]
    %v376 = vld [vmem:[#allocation6 + $0x678] sm:$0xff]
    %v377 = vld [vmem:[#allocation6 + $0x680] sm:$0xff]
    %v378 = vld [vmem:[#allocation6 + $0x688] sm:$0xff]
    %v379 = vld [vmem:[#allocation6 + $0x690] sm:$0xff]
    %v380 = vld [vmem:[#allocation6 + $0x698] sm:$0xff]
    %v381 = vld [vmem:[#allocation6 + $0x6a0] sm:$0xff]
    %v382 = vld [vmem:[#allocation6 + $0x6a8] sm:$0xff]
    %v383 = vld [vmem:[#allocation6 + $0x6b0] sm:$0xff]
    %v384 = vld [vmem:[#allocation6 + $0x6b8] sm:$0xff]
    %v385 = vld [vmem:[#allocation6 + $0x6c0] sm:$0xff]
    %v386 = vld [vmem:[#allocation6 + $0x6c8] sm:$0xff]
    %v387 = vld [vmem:[#allocation6 + $0x6d0] sm:$0xff]
    %v388 = vld [vmem:[#allocation6 + $0x6d8] sm:$0xff]
    %v389 = vld [vmem:[#allocation6 + $0x6e0] sm:$0xff]
    %v390 = vld [vmem:[#allocation6 + $0x6e8] sm:$0xff]
    %v391 = vld [vmem:[#allocation6 + $0x6f0] sm:$0xff]
    %v392 = vld [vmem:[#allocation6 + $0x6f8] sm:$0xff]
    %v393 = vld [vmem:[#allocation6 + $0x700] sm:$0xff]
    %v394 = vld [vmem:[#allocation6 + $0x708] sm:$0xff]
    %v395 = vld [vmem:[#allocation6 + $0x710] sm:$0xff]
    %v396 = vld [vmem:[#allocation6 + $0x718] sm:$0xff]
    %v397 = vld [vmem:[#allocation6 + $0x720] sm:$0xff]
    %v398 = vld [vmem:[#allocation6 + $0x728] sm:$0xff]
    %v399 = vld [vmem:[#allocation6 + $0x730] sm:$0xff]
    %v400 = vld [vmem:[#allocation6 + $0x738] sm:$0xff]
    %v401 = vld [vmem:[#allocation6 + $0x740] sm:$0xff]
    %v402 = vld [vmem:[#allocation6 + $0x748] sm:$0xff]
    %v403 = vld [vmem:[#allocation6 + $0x750] sm:$0xff]
    %v404 = vld [vmem:[#allocation6 + $0x758] sm:$0xff]
    %v405 = vld [vmem:[#allocation6 + $0x760] sm:$0xff]
    %v406 = vld [vmem:[#allocation6 + $0x768] sm:$0xff]
    %v407 = vld [vmem:[#allocation6 + $0x770] sm:$0xff]
    %v408 = vld [vmem:[#allocation6 + $0x778] sm:$0xff]
    %v409 = vld [vmem:[#allocation6 + $0x780] sm:$0xff]
    %v410 = vld [vmem:[#allocation6 + $0x788] sm:$0xff]
    %v411 = vld [vmem:[#allocation6 + $0x790] sm:$0xff]
    %v412 = vld [vmem:[#allocation6 + $0x798] sm:$0xff]
    %v413 = vld [vmem:[#allocation6 + $0x7a0] sm:$0xff]
    %v414 = vld [vmem:[#allocation6 + $0x7a8] sm:$0xff]
    %v415 = vld [vmem:[#allocation6 + $0x7b0] sm:$0xff]
    %v416 = vld [vmem:[#allocation6 + $0x7b8] sm:$0xff]
    %v417 = vld [vmem:[#allocation6 + $0x7c0] sm:$0xff]
    %v418 = vld [vmem:[#allocation6 + $0x7c8] sm:$0xff]
    %v419 = vld [vmem:[#allocation6 + $0x7d0] sm:$0xff]
    %v420 = vld [vmem:[#allocation6 + $0x7d8] sm:$0xff]
    %v421 = vld [vmem:[#allocation6 + $0x7e0] sm:$0xff]
    %v422 = vld [vmem:[#allocation6 + $0x7e8] sm:$0xff]
    %v423 = vld [vmem:[#allocation6 + $0x7f0] sm:$0xff]
    %v424 = vld [vmem:[#allocation6 + $0x7f8] sm:$0xff]
    %v425 = vld [vmem:[#allocation6 + $0x800] sm:$0xff]
    %v426 = vld [vmem:[#allocation6 + $0x808] sm:$0xff]
    %v427 = vld [vmem:[#allocation6 + $0x810] sm:$0xff]
    %v428 = vld [vmem:[#allocation6 + $0x818] sm:$0xff]
    %v429 = vld [vmem:[#allocation6 + $0x820] sm:$0xff]
    %v430 = vld [vmem:[#allocation6 + $0x828] sm:$0xff]
    %v431 = vld [vmem:[#allocation6 + $0x830] sm:$0xff]
    %v432 = vld [vmem:[#allocation6 + $0x838] sm:$0xff]
    %v433 = vld [vmem:[#allocation6 + $0x840] sm:$0xff]
    %v434 = vld [vmem:[#allocation6 + $0x848] sm:$0xff]
    %v435 = vld [vmem:[#allocation6 + $0x850] sm:$0xff]
    %v436 = vld [vmem:[#allocation6 + $0x858] sm:$0xff]
    %v437 = vld [vmem:[#allocation6 + $0x860] sm:$0xff]
    %v438 = vld [vmem:[#allocation6 + $0x868] sm:$0xff]
    %v439 = vld [vmem:[#allocation6 + $0x870] sm:$0xff]
    %v440 = vld [vmem:[#allocation6 + $0x878] sm:$0xff]
    %v441 = vld [vmem:[#allocation6 + $0x880] sm:$0xff]
    %v442 = vld [vmem:[#allocation6 + $0x888] sm:$0xff]
    %v443 = vld [vmem:[#allocation6 + $0x890] sm:$0xff]
    %v444 = vld [vmem:[#allocation6 + $0x898] sm:$0xff]
    %v445 = vld [vmem:[#allocation6 + $0x8a0] sm:$0xff]
    %v446 = vld [vmem:[#allocation6 + $0x8a8] sm:$0xff]
    %v447 = vld [vmem:[#allocation6 + $0x8b0] sm:$0xff]
    %v448 = vld [vmem:[#allocation6 + $0x8b8] sm:$0xff]
    %v449 = vld [vmem:[#allocation6 + $0x8c0] sm:$0xff]
    %v450 = vld [vmem:[#allocation6 + $0x8c8] sm:$0xff]
    %v451 = vld [vmem:[#allocation6 + $0x8d0] sm:$0xff]
    %v452 = vld [vmem:[#allocation6 + $0x8d8] sm:$0xff]
    %v453 = vld [vmem:[#allocation6 + $0x8e0] sm:$0xff]
    %v454 = vld [vmem:[#allocation6 + $0x8e8] sm:$0xff]
    %v455 = vld [vmem:[#allocation6 + $0x8f0] sm:$0xff]
    %v456 = vld [vmem:[#allocation6 + $0x8f8] sm:$0xff]
    %v457 = vld [vmem:[#allocation6 + $0x900] sm:$0xff]
    %v458 = vld [vmem:[#allocation6 + $0x908] sm:$0xff]
    %v459 = vld [vmem:[#allocation6 + $0x910] sm:$0xff]
    %v460 = vld [vmem:[#allocation6 + $0x918] sm:$0xff]
    %v461 = vld [vmem:[#allocation6 + $0x920] sm:$0xff]
    %v462 = vld [vmem:[#allocation6 + $0x928] sm:$0xff]
    %v463 = vld [vmem:[#allocation6 + $0x930] sm:$0xff]
    %v464 = vld [vmem:[#allocation6 + $0x938] sm:$0xff]
    %v465 = vld [vmem:[#allocation6 + $0x940] sm:$0xff]
    %v466 = vld [vmem:[#allocation6 + $0x948] sm:$0xff]
    %v467 = vld [vmem:[#allocation6 + $0x950] sm:$0xff]
    %v468 = vld [vmem:[#allocation6 + $0x958] sm:$0xff]
    %v469 = vld [vmem:[#allocation6 + $0x960] sm:$0xff]
    %v470 = vld [vmem:[#allocation6 + $0x968] sm:$0xff]
    %v471 = vld [vmem:[#allocation6 + $0x970] sm:$0xff]
    %v472 = vld [vmem:[#allocation6 + $0x978] sm:$0xff]
    %v473 = vld [vmem:[#allocation6 + $0x980] sm:$0xff]
    %v474 = vld [vmem:[#allocation6 + $0x988] sm:$0xff]
    %v475 = vld [vmem:[#allocation6 + $0x990] sm:$0xff]
    %v476 = vld [vmem:[#allocation6 + $0x998] sm:$0xff]
    %v477 = vld [vmem:[#allocation6 + $0x9a0] sm:$0xff]
    %v478 = vld [vmem:[#allocation6 + $0x9a8] sm:$0xff]
    %v479 = vld [vmem:[#allocation6 + $0x9b0] sm:$0xff]
    %v480 = vld [vmem:[#allocation6 + $0x9b8] sm:$0xff]
    %v481 = vld [vmem:[#allocation6 + $0x9c0] sm:$0xff]
    %v482 = vld [vmem:[#allocation6 + $0x9c8] sm:$0xff]
    %v483 = vld [vmem:[#allocation6 + $0x9d0] sm:$0xff]
    %v484 = vld [vmem:[#allocation6 + $0x9d8] sm:$0xff]
    %v485 = vld [vmem:[#allocation6 + $0x9e0] sm:$0xff]
    %v486 = vld [vmem:[#allocation6 + $0x9e8] sm:$0xff]
    %v487 = vld [vmem:[#allocation6 + $0x9f0] sm:$0xff]
    %v488 = vld [vmem:[#allocation6 + $0x9f8] sm:$0xff]
    %v489 = vld [vmem:[#allocation6 + $0xa00] sm:$0xff]
    %v490 = vld [vmem:[#allocation6 + $0xa08] sm:$0xff]
    %v491 = vld [vmem:[#allocation6 + $0xa10] sm:$0xff]
    %v492 = vld [vmem:[#allocation6 + $0xa18] sm:$0xff]
    %v493 = vld [vmem:[#allocation6 + $0xa20] sm:$0xff]
    %v494 = vld [vmem:[#allocation6 + $0xa28] sm:$0xff]
    %v495 = vld [vmem:[#allocation6 + $0xa30] sm:$0xff]
    %v496 = vld [vmem:[#allocation6 + $0xa38] sm:$0xff]
    %v497 = vld [vmem:[#allocation6 + $0xa40] sm:$0xff]
    %v498 = vld [vmem:[#allocation6 + $0xa48] sm:$0xff]
    %v499 = vld [vmem:[#allocation6 + $0xa50] sm:$0xff]
    %v500 = vld [vmem:[#allocation6 + $0xa58] sm:$0xff]
    %v501 = vld [vmem:[#allocation6 + $0xa60] sm:$0xff]
    %v502 = vld [vmem:[#allocation6 + $0xa68] sm:$0xff]
    %v503 = vld [vmem:[#allocation6 + $0xa70] sm:$0xff]
    %v504 = vld [vmem:[#allocation6 + $0xa78] sm:$0xff]
    %v505 = vld [vmem:[#allocation6 + $0xa80] sm:$0xff]
    %v506 = vld [vmem:[#allocation6 + $0xa88] sm:$0xff]
    %v507 = vld [vmem:[#allocation6 + $0xa90] sm:$0xff]
    %v508 = vld [vmem:[#allocation6 + $0xa98] sm:$0xff]
    %v509 = vld [vmem:[#allocation6 + $0xaa0] sm:$0xff]
    %v510 = vld [vmem:[#allocation6 + $0xaa8] sm:$0xff]
    %v511 = vld [vmem:[#allocation6 + $0xab0] sm:$0xff]
    %v512 = vld [vmem:[#allocation6 + $0xab8] sm:$0xff]
    %v513 = vld [vmem:[#allocation6 + $0xac0] sm:$0xff]
    %v514 = vld [vmem:[#allocation6 + $0xac8] sm:$0xff]
    %v515 = vld [vmem:[#allocation6 + $0xad0] sm:$0xff]
    %v516 = vld [vmem:[#allocation6 + $0xad8] sm:$0xff]
    %v517 = vld [vmem:[#allocation6 + $0xae0] sm:$0xff]
    %v518 = vld [vmem:[#allocation6 + $0xae8] sm:$0xff]
    %v519 = vld [vmem:[#allocation6 + $0xaf0] sm:$0xff]
    %v520 = vld [vmem:[#allocation6 + $0xaf8] sm:$0xff]
    %v521 = vld [vmem:[#allocation6 + $0xb00] sm:$0xff]
    %v522 = vld [vmem:[#allocation6 + $0xb08] sm:$0xff]
    %v523 = vld [vmem:[#allocation6 + $0xb10] sm:$0xff]
    %v524 = vld [vmem:[#allocation6 + $0xb18] sm:$0xff]
    %v525 = vld [vmem:[#allocation6 + $0xb20] sm:$0xff]
    %v526 = vld [vmem:[#allocation6 + $0xb28] sm:$0xff]
    %v527 = vld [vmem:[#allocation6 + $0xb30] sm:$0xff]
    %v528 = vld [vmem:[#allocation6 + $0xb38] sm:$0xff]
    %v529 = vld [vmem:[#allocation6 + $0xb40] sm:$0xff]
    %v530 = vld [vmem:[#allocation6 + $0xb48] sm:$0xff]
    %v531 = vld [vmem:[#allocation6 + $0xb50] sm:$0xff]
    %v532 = vld [vmem:[#allocation6 + $0xb58] sm:$0xff]
    %v533 = vld [vmem:[#allocation6 + $0xb60] sm:$0xff]
    %v534 = vld [vmem:[#allocation6 + $0xb68] sm:$0xff]
    %v535 = vld [vmem:[#allocation6 + $0xb70] sm:$0xff]
    %v536 = vld [vmem:[#allocation6 + $0xb78] sm:$0xff]
    %v537 = vld [vmem:[#allocation6 + $0xb80] sm:$0xff]
    %v538 = vld [vmem:[#allocation6 + $0xb88] sm:$0xff]
    %v539 = vld [vmem:[#allocation6 + $0xb90] sm:$0xff]
    %v540 = vld [vmem:[#allocation6 + $0xb98] sm:$0xff]
    %v541 = vld [vmem:[#allocation6 + $0xba0] sm:$0xff]
    %v542 = vld [vmem:[#allocation6 + $0xba8] sm:$0xff]
    %v543 = vld [vmem:[#allocation6 + $0xbb0] sm:$0xff]
    %v544 = vld [vmem:[#allocation6 + $0xbb8] sm:$0xff]
    %v545 = vld [vmem:[#allocation6 + $0xbc0] sm:$0xff]
    %v546 = vld [vmem:[#allocation6 + $0xbc8] sm:$0xff]
    %v547 = vld [vmem:[#allocation6 + $0xbd0] sm:$0xff]
    %v548 = vld [vmem:[#allocation6 + $0xbd8] sm:$0xff]
    %v549 = vld [vmem:[#allocation6 + $0xbe0] sm:$0xff]
    %v550 = vld [vmem:[#allocation6 + $0xbe8] sm:$0xff]
    %v551 = vld [vmem:[#allocation6 + $0xbf0] sm:$0xff]
    %v552 = vld [vmem:[#allocation6 + $0xbf8] sm:$0xff]
    %v553 = vld [vmem:[#allocation6 + $0xc00] sm:$0xff]
    %v554 = vld [vmem:[#allocation6 + $0xc08] sm:$0xff]
    %v555 = vld [vmem:[#allocation6 + $0xc10] sm:$0xff]
    %v556 = vld [vmem:[#allocation6 + $0xc18] sm:$0xff]
    %v557 = vld [vmem:[#allocation6 + $0xc20] sm:$0xff]
    %v558 = vld [vmem:[#allocation6 + $0xc28] sm:$0xff]
    %v559 = vld [vmem:[#allocation6 + $0xc30] sm:$0xff]
    %v560 = vld [vmem:[#allocation6 + $0xc38] sm:$0xff]
    %v561 = vld [vmem:[#allocation6 + $0xc40] sm:$0xff]
    %v562 = vld [vmem:[#allocation6 + $0xc48] sm:$0xff]
    %v563 = vld [vmem:[#allocation6 + $0xc50] sm:$0xff]
    %v564 = vld [vmem:[#allocation6 + $0xc58] sm:$0xff]
    %v565 = vld [vmem:[#allocation6 + $0xc60] sm:$0xff]
    %v566 = vld [vmem:[#allocation6 + $0xc68] sm:$0xff]
    %v567 = vld [vmem:[#allocation6 + $0xc70] sm:$0xff]
    %v568 = vld [vmem:[#allocation6 + $0xc78] sm:$0xff]
    %v569 = vld [vmem:[#allocation6 + $0xc80] sm:$0xff]
    %v570 = vld [vmem:[#allocation6 + $0xc88] sm:$0xff]
    %v571 = vld [vmem:[#allocation6 + $0xc90] sm:$0xff]
    %v572 = vld [vmem:[#allocation6 + $0xc98] sm:$0xff]
    %v573 = vld [vmem:[#allocation6 + $0xca0] sm:$0xff]
    %v574 = vld [vmem:[#allocation6 + $0xca8] sm:$0xff]
    %v575 = vld [vmem:[#allocation6 + $0xcb0] sm:$0xff]
    %v576 = vld [vmem:[#allocation6 + $0xcb8] sm:$0xff]
    %v577 = vld [vmem:[#allocation6 + $0xcc0] sm:$0xff]
    %v578 = vld [vmem:[#allocation6 + $0xcc8] sm:$0xff]
    %v579 = vld [vmem:[#allocation6 + $0xcd0] sm:$0xff]
    %v580 = vld [vmem:[#allocation6 + $0xcd8] sm:$0xff]
    %v581 = vld [vmem:[#allocation6 + $0xce0] sm:$0xff]
    %v582 = vld [vmem:[#allocation6 + $0xce8] sm:$0xff]
    %v583 = vld [vmem:[#allocation6 + $0xcf0] sm:$0xff]
    %v584 = vld [vmem:[#allocation6 + $0xcf8] sm:$0xff]
    %v585 = vld [vmem:[#allocation6 + $0xd00] sm:$0xff]
    %v586 = vld [vmem:[#allocation6 + $0xd08] sm:$0xff]
    %v587 = vld [vmem:[#allocation6 + $0xd10] sm:$0xff]
    %v588 = vld [vmem:[#allocation6 + $0xd18] sm:$0xff]
    %v589 = vld [vmem:[#allocation6 + $0xd20] sm:$0xff]
    %v590 = vld [vmem:[#allocation6 + $0xd28] sm:$0xff]
    %v591 = vld [vmem:[#allocation6 + $0xd30] sm:$0xff]
    %v592 = vld [vmem:[#allocation6 + $0xd38] sm:$0xff]
    %v593 = vld [vmem:[#allocation6 + $0xd40] sm:$0xff]
    %v594 = vld [vmem:[#allocation6 + $0xd48] sm:$0xff]
    %v595 = vld [vmem:[#allocation6 + $0xd50] sm:$0xff]
    %v596 = vld [vmem:[#allocation6 + $0xd58] sm:$0xff]
    %v597 = vld [vmem:[#allocation6 + $0xd60] sm:$0xff]
    %v598 = vld [vmem:[#allocation6 + $0xd68] sm:$0xff]
    %v599 = vld [vmem:[#allocation6 + $0xd70] sm:$0xff]
    %v600 = vld [vmem:[#allocation6 + $0xd78] sm:$0xff]
    %v601 = vld [vmem:[#allocation6 + $0xd80] sm:$0xff]
    %v602 = vld [vmem:[#allocation6 + $0xd88] sm:$0xff]
    %v603 = vld [vmem:[#allocation6 + $0xd90] sm:$0xff]
    %v604 = vld [vmem:[#allocation6 + $0xd98] sm:$0xff]
    %v605 = vld [vmem:[#allocation6 + $0xda0] sm:$0xff]
    %v606 = vld [vmem:[#allocation6 + $0xda8] sm:$0xff]
    %v607 = vld [vmem:[#allocation6 + $0xdb0] sm:$0xff]
    %v608 = vld [vmem:[#allocation6 + $0xdb8] sm:$0xff]
    %v609 = vld [vmem:[#allocation6 + $0xdc0] sm:$0xff]
    %v610 = vld [vmem:[#allocation6 + $0xdc8] sm:$0xff]
    %v611 = vld [vmem:[#allocation6 + $0xdd0] sm:$0xff]
    %v612 = vld [vmem:[#allocation6 + $0xdd8] sm:$0xff]
    %v613 = vld [vmem:[#allocation6 + $0xde0] sm:$0xff]
    %v614 = vld [vmem:[#allocation6 + $0xde8] sm:$0xff]
    %v615 = vld [vmem:[#allocation6 + $0xdf0] sm:$0xff]
    %v616 = vld [vmem:[#allocation6 + $0xdf8] sm:$0xff]
    %v617 = vld [vmem:[#allocation6 + $0xe00] sm:$0xff]
    %v618 = vld [vmem:[#allocation6 + $0xe08] sm:$0xff]
    %v619 = vld [vmem:[#allocation6 + $0xe10] sm:$0xff]
    %v620 = vld [vmem:[#allocation6 + $0xe18] sm:$0xff]
    %v621 = vld [vmem:[#allocation6 + $0xe20] sm:$0xff]
    %v622 = vld [vmem:[#allocation6 + $0xe28] sm:$0xff]
    %v623 = vld [vmem:[#allocation6 + $0xe30] sm:$0xff]
    %v624 = vld [vmem:[#allocation6 + $0xe38] sm:$0xff]
    %v625 = vld [vmem:[#allocation6 + $0xe40] sm:$0xff]
    %v626 = vld [vmem:[#allocation6 + $0xe48] sm:$0xff]
    %v627 = vld [vmem:[#allocation6 + $0xe50] sm:$0xff]
    %v628 = vld [vmem:[#allocation6 + $0xe58] sm:$0xff]
    %v629 = vld [vmem:[#allocation6 + $0xe60] sm:$0xff]
    %v630 = vld [vmem:[#allocation6 + $0xe68] sm:$0xff]
    %v631 = vld [vmem:[#allocation6 + $0xe70] sm:$0xff]
    %v632 = vld [vmem:[#allocation6 + $0xe78] sm:$0xff]
    %v633 = vld [vmem:[#allocation6 + $0xe80] sm:$0xff]
    %v634 = vld [vmem:[#allocation6 + $0xe88] sm:$0xff]
    %v635 = vld [vmem:[#allocation6 + $0xe90] sm:$0xff]
    %v636 = vld [vmem:[#allocation6 + $0xe98] sm:$0xff]
    %v637 = vld [vmem:[#allocation6 + $0xea0] sm:$0xff]
    %v638 = vld [vmem:[#allocation6 + $0xea8] sm:$0xff]
    %v639 = vld [vmem:[#allocation6 + $0xeb0] sm:$0xff]
    %v640 = vld [vmem:[#allocation6 + $0xeb8] sm:$0xff]
    %v641 = vld [vmem:[#allocation6 + $0xec0] sm:$0xff]
    %v642 = vld [vmem:[#allocation6 + $0xec8] sm:$0xff]
    %v643 = vld [vmem:[#allocation6 + $0xed0] sm:$0xff]
    %v644 = vld [vmem:[#allocation6 + $0xed8] sm:$0xff]
    %v645 = vld [vmem:[#allocation6 + $0xee0] sm:$0xff]
    %v646 = vld [vmem:[#allocation6 + $0xee8] sm:$0xff]
    %v647 = vld [vmem:[#allocation6 + $0xef0] sm:$0xff]
    %v648 = vld [vmem:[#allocation6 + $0xef8] sm:$0xff]
    %v649 = vld [vmem:[#allocation6 + $0xf00] sm:$0xff]
    %v650 = vld [vmem:[#allocation6 + $0xf08] sm:$0xff]
    %v651 = vld [vmem:[#allocation6 + $0xf10] sm:$0xff]
    %v652 = vld [vmem:[#allocation6 + $0xf18] sm:$0xff]
    %v653 = vld [vmem:[#allocation6 + $0xf20] sm:$0xff]
    %v654 = vld [vmem:[#allocation6 + $0xf28] sm:$0xff]
    %v655 = vld [vmem:[#allocation6 + $0xf30] sm:$0xff]
    %v656 = vld [vmem:[#allocation6 + $0xf38] sm:$0xff]
    %v657 = vld [vmem:[#allocation6 + $0xf40] sm:$0xff]
    %v658 = vld [vmem:[#allocation6 + $0xf48] sm:$0xff]
    %v659 = vld [vmem:[#allocation6 + $0xf50] sm:$0xff]
    %v660 = vld [vmem:[#allocation6 + $0xf58] sm:$0xff]
    %v661 = vld [vmem:[#allocation6 + $0xf60] sm:$0xff]
    %v662 = vld [vmem:[#allocation6 + $0xf68] sm:$0xff]
    %v663 = vld [vmem:[#allocation6 + $0xf70] sm:$0xff]
    %v664 = vld [vmem:[#allocation6 + $0xf78] sm:$0xff]
    %v665 = vld [vmem:[#allocation6 + $0xf80] sm:$0xff]
    %v666 = vld [vmem:[#allocation6 + $0xf88] sm:$0xff]
    %v667 = vld [vmem:[#allocation6 + $0xf90] sm:$0xff]
    %v668 = vld [vmem:[#allocation6 + $0xf98] sm:$0xff]
    %v669 = vld [vmem:[#allocation6 + $0xfa0] sm:$0xff]
    %v670 = vld [vmem:[#allocation6 + $0xfa8] sm:$0xff]
    %v671 = vld [vmem:[#allocation6 + $0xfb0] sm:$0xff]
    %v672 = vld [vmem:[#allocation6 + $0xfb8] sm:$0xff]
    %v673 = vld [vmem:[#allocation6 + $0xfc0] sm:$0xff]
    %v674 = vld [vmem:[#allocation6 + $0xfc8] sm:$0xff]
    %v675 = vld [vmem:[#allocation6 + $0xfd0] sm:$0xff]
    %v676 = vld [vmem:[#allocation6 + $0xfd8] sm:$0xff]
    %v677 = vld [vmem:[#allocation6 + $0xfe0] sm:$0xff]
    %v678 = vld [vmem:[#allocation6 + $0xfe8] sm:$0xff]
    %v679 = vld [vmem:[#allocation6 + $0xff0] sm:$0xff]
    %v680 = vld [vmem:[#allocation6 + $0xff8] sm:$0xff]
    %v681 = vld [vmem:[#allocation6 + $0x1000] sm:$0xff]
    %v682 = vld [vmem:[#allocation6 + $0x1008] sm:$0xff]
    %v683 = vld [vmem:[#allocation6 + $0x1010] sm:$0xff]
    %v684 = vld [vmem:[#allocation6 + $0x1018] sm:$0xff]
    %v685 = vld [vmem:[#allocation6 + $0x1020] sm:$0xff]
    %v686 = vld [vmem:[#allocation6 + $0x1028] sm:$0xff]
    %v687 = vld [vmem:[#allocation6 + $0x1030] sm:$0xff]
    %v688 = vld [vmem:[#allocation6 + $0x1038] sm:$0xff]
    %v689 = vld [vmem:[#allocation6 + $0x1040] sm:$0xff]
    %v690 = vld [vmem:[#allocation6 + $0x1048] sm:$0xff]
    %v691 = vld [vmem:[#allocation6 + $0x1050] sm:$0xff]
    %v692 = vld [vmem:[#allocation6 + $0x1058] sm:$0xff]
    %v693 = vld [vmem:[#allocation6 + $0x1060] sm:$0xff]
    %v694 = vld [vmem:[#allocation6 + $0x1068] sm:$0xff]
    %v695 = vld [vmem:[#allocation6 + $0x1070] sm:$0xff]
    %v696 = vld [vmem:[#allocation6 + $0x1078] sm:$0xff]
    %v697 = vld [vmem:[#allocation6 + $0x1080] sm:$0xff]
    %v698 = vld [vmem:[#allocation6 + $0x1088] sm:$0xff]
    %v699 = vld [vmem:[#allocation6 + $0x1090] sm:$0xff]
    %v700 = vld [vmem:[#allocation6 + $0x1098] sm:$0xff]
    %v701 = vld [vmem:[#allocation6 + $0x10a0] sm:$0xff]
    %v702 = vld [vmem:[#allocation6 + $0x10a8] sm:$0xff]
    %v703 = vld [vmem:[#allocation6 + $0x10b0] sm:$0xff]
    %v704 = vld [vmem:[#allocation6 + $0x10b8] sm:$0xff]
    %v705 = vld [vmem:[#allocation6 + $0x10c0] sm:$0xff]
    %v706 = vld [vmem:[#allocation6 + $0x10c8] sm:$0xff]
    %v707 = vld [vmem:[#allocation6 + $0x10d0] sm:$0xff]
    %v708 = vld [vmem:[#allocation6 + $0x10d8] sm:$0xff]
    %v709 = vld [vmem:[#allocation6 + $0x10e0] sm:$0xff]
    %v710 = vld [vmem:[#allocation6 + $0x10e8] sm:$0xff]
    %v711 = vld [vmem:[#allocation6 + $0x10f0] sm:$0xff]
    %v712 = vld [vmem:[#allocation6 + $0x10f8] sm:$0xff]
    %v713 = vld [vmem:[#allocation6 + $0x1100] sm:$0xff]
    %v714 = vld [vmem:[#allocation6 + $0x1108] sm:$0xff]
    %v715 = vld [vmem:[#allocation6 + $0x1110] sm:$0xff]
    %v716 = vld [vmem:[#allocation6 + $0x1118] sm:$0xff]
    %v717 = vld [vmem:[#allocation6 + $0x1120] sm:$0xff]
    %v718 = vld [vmem:[#allocation6 + $0x1128] sm:$0xff]
    %v719 = vld [vmem:[#allocation6 + $0x1130] sm:$0xff]
    %v720 = vld [vmem:[#allocation6 + $0x1138] sm:$0xff]
    %v721 = vld [vmem:[#allocation6 + $0x1140] sm:$0xff]
    %v722 = vld [vmem:[#allocation6 + $0x1148] sm:$0xff]
    %v723 = vld [vmem:[#allocation6 + $0x1150] sm:$0xff]
    %v724 = vld [vmem:[#allocation6 + $0x1158] sm:$0xff]
    %v725 = vld [vmem:[#allocation6 + $0x1160] sm:$0xff]
    %v726 = vld [vmem:[#allocation6 + $0x1168] sm:$0xff]
    %v727 = vld [vmem:[#allocation6 + $0x1170] sm:$0xff]
    %v728 = vld [vmem:[#allocation6 + $0x1178] sm:$0xff]
    %v729 = vld [vmem:[#allocation6 + $0x1180] sm:$0xff]
    %v730 = vld [vmem:[#allocation6 + $0x1188] sm:$0xff]
    %v731 = vld [vmem:[#allocation6 + $0x1190] sm:$0xff]
    %v732 = vld [vmem:[#allocation6 + $0x1198] sm:$0xff]
    %v733 = vld [vmem:[#allocation6 + $0x11a0] sm:$0xff]
    %v734 = vld [vmem:[#allocation6 + $0x11a8] sm:$0xff]
    %v735 = vld [vmem:[#allocation6 + $0x11b0] sm:$0xff]
    %v736 = vld [vmem:[#allocation6 + $0x11b8] sm:$0xff]
    %v737 = vld [vmem:[#allocation6 + $0x11c0] sm:$0xff]
    %v738 = vld [vmem:[#allocation6 + $0x11c8] sm:$0xff]
    %v739 = vld [vmem:[#allocation6 + $0x11d0] sm:$0xff]
    %v740 = vld [vmem:[#allocation6 + $0x11d8] sm:$0xff]
    %v741 = vld [vmem:[#allocation6 + $0x11e0] sm:$0xff]
    %v742 = vld [vmem:[#allocation6 + $0x11e8] sm:$0xff]
    %v743 = vld [vmem:[#allocation6 + $0x11f0] sm:$0xff]
    %v744 = vld [vmem:[#allocation6 + $0x11f8] sm:$0xff]
    %v745 = vld [vmem:[#allocation6 + $0x1200] sm:$0xff]
    %v746 = vld [vmem:[#allocation6 + $0x1208] sm:$0xff]
    %v747 = vld [vmem:[#allocation6 + $0x1210] sm:$0xff]
    %v748 = vld [vmem:[#allocation6 + $0x1218] sm:$0xff]
    %v749 = vld [vmem:[#allocation6 + $0x1220] sm:$0xff]
    %v750 = vld [vmem:[#allocation6 + $0x1228] sm:$0xff]
    %v751 = vld [vmem:[#allocation6 + $0x1230] sm:$0xff]
    %v752 = vld [vmem:[#allocation6 + $0x1238] sm:$0xff]
    %v753 = vld [vmem:[#allocation6 + $0x1240] sm:$0xff]
    %v754 = vld [vmem:[#allocation6 + $0x1248] sm:$0xff]
    %v755 = vld [vmem:[#allocation6 + $0x1250] sm:$0xff]
    %v756 = vld [vmem:[#allocation6 + $0x1258] sm:$0xff]
    %v757 = vld [vmem:[#allocation6 + $0x1260] sm:$0xff]
    %v758 = vld [vmem:[#allocation6 + $0x1268] sm:$0xff]
    %v759 = vld [vmem:[#allocation6 + $0x1270] sm:$0xff]
    %v760 = vld [vmem:[#allocation6 + $0x1278] sm:$0xff]
    %v761 = vld [vmem:[#allocation6 + $0x1280] sm:$0xff]
    %v762 = vld [vmem:[#allocation6 + $0x1288] sm:$0xff]
    %v763 = vld [vmem:[#allocation6 + $0x1290] sm:$0xff]
    %v764 = vld [vmem:[#allocation6 + $0x1298] sm:$0xff]
    %v765 = vld [vmem:[#allocation6 + $0x12a0] sm:$0xff]
    %v766 = vld [vmem:[#allocation6 + $0x12a8] sm:$0xff]
    %v767 = vld [vmem:[#allocation6 + $0x12b0] sm:$0xff]
    %v768 = vld [vmem:[#allocation6 + $0x12b8] sm:$0xff]
    %v769 = vld [vmem:[#allocation6 + $0x12c0] sm:$0xff]
    %v770 = vld [vmem:[#allocation6 + $0x12c8] sm:$0xff]
    %v771 = vld [vmem:[#allocation6 + $0x12d0] sm:$0xff]
    %v772 = vld [vmem:[#allocation6 + $0x12d8] sm:$0xff]
    %v773 = vld [vmem:[#allocation6 + $0x12e0] sm:$0xff]
    %v774 = vld [vmem:[#allocation6 + $0x12e8] sm:$0xff]
    %v775 = vld [vmem:[#allocation6 + $0x12f0] sm:$0xff]
    %v776 = vld [vmem:[#allocation6 + $0x12f8] sm:$0xff]
    %v777 = vld [vmem:[#allocation6 + $0x1300] sm:$0xff]
    %v778 = vld [vmem:[#allocation6 + $0x1308] sm:$0xff]
    %v779 = vld [vmem:[#allocation6 + $0x1310] sm:$0xff]
    %v780 = vld [vmem:[#allocation6 + $0x1318] sm:$0xff]
    %v781 = vld [vmem:[#allocation6 + $0x1320] sm:$0xff]
    %v782 = vld [vmem:[#allocation6 + $0x1328] sm:$0xff]
    %v783 = vld [vmem:[#allocation6 + $0x1330] sm:$0xff]
    %v784 = vld [vmem:[#allocation6 + $0x1338] sm:$0xff]
    %v785 = vld [vmem:[#allocation6 + $0x1340] sm:$0xff]
    %v786 = vld [vmem:[#allocation6 + $0x1348] sm:$0xff]
    %v787 = vld [vmem:[#allocation6 + $0x1350] sm:$0xff]
    %v788 = vld [vmem:[#allocation6 + $0x1358] sm:$0xff]
    %v789 = vld [vmem:[#allocation6 + $0x1360] sm:$0xff]
    %v790 = vld [vmem:[#allocation6 + $0x1368] sm:$0xff]
    %v791 = vld [vmem:[#allocation6 + $0x1370] sm:$0xff]
    %v792 = vld [vmem:[#allocation6 + $0x1378] sm:$0xff]
    %v793 = vld [vmem:[#allocation6 + $0x1380] sm:$0xff]
    %v794 = vld [vmem:[#allocation6 + $0x1388] sm:$0xff]
    %v795 = vld [vmem:[#allocation6 + $0x1390] sm:$0xff]
    %v796 = vld [vmem:[#allocation6 + $0x1398] sm:$0xff]
    %v797 = vld [vmem:[#allocation6 + $0x13a0] sm:$0xff]
    %v798 = vld [vmem:[#allocation6 + $0x13a8] sm:$0xff]
    %v799 = vld [vmem:[#allocation6 + $0x13b0] sm:$0xff]
    %v800 = vld [vmem:[#allocation6 + $0x13b8] sm:$0xff]
    %v801 = vld [vmem:[#allocation6 + $0x13c0] sm:$0xff]
    %v802 = vld [vmem:[#allocation6 + $0x13c8] sm:$0xff]
    %v803 = vld [vmem:[#allocation6 + $0x13d0] sm:$0xff]
    %v804 = vld [vmem:[#allocation6 + $0x13d8] sm:$0xff]
    %v805 = vld [vmem:[#allocation6 + $0x13e0] sm:$0xff]
    %v806 = vld [vmem:[#allocation6 + $0x13e8] sm:$0xff]
    %v807 = vld [vmem:[#allocation6 + $0x13f0] sm:$0xff]
    %v808 = vld [vmem:[#allocation6 + $0x13f8] sm:$0xff]
    %v809 = vld [vmem:[#allocation6 + $0x1400] sm:$0xff]
    %v810 = vld [vmem:[#allocation6 + $0x1408] sm:$0xff]
    %v811 = vld [vmem:[#allocation6 + $0x1410] sm:$0xff]
    %v812 = vld [vmem:[#allocation6 + $0x1418] sm:$0xff]
    %v813 = vld [vmem:[#allocation6 + $0x1420] sm:$0xff]
    %v814 = vld [vmem:[#allocation6 + $0x1428] sm:$0xff]
    %v815 = vld [vmem:[#allocation6 + $0x1430] sm:$0xff]
    %v816 = vld [vmem:[#allocation6 + $0x1438] sm:$0xff]
    %v817 = vld [vmem:[#allocation6 + $0x1440] sm:$0xff]
    %v818 = vld [vmem:[#allocation6 + $0x1448] sm:$0xff]
    %v819 = vld [vmem:[#allocation6 + $0x1450] sm:$0xff]
    %v820 = vld [vmem:[#allocation6 + $0x1458] sm:$0xff]
    %v821 = vld [vmem:[#allocation6 + $0x1460] sm:$0xff]
    %v822 = vld [vmem:[#allocation6 + $0x1468] sm:$0xff]
    %v823 = vld [vmem:[#allocation6 + $0x1470] sm:$0xff]
    %v824 = vld [vmem:[#allocation6 + $0x1478] sm:$0xff]
    %v825 = vld [vmem:[#allocation6 + $0x1480] sm:$0xff]
    %v826 = vld [vmem:[#allocation6 + $0x1488] sm:$0xff]
    %v827 = vld [vmem:[#allocation6 + $0x1490] sm:$0xff]
    %v828 = vld [vmem:[#allocation6 + $0x1498] sm:$0xff]
    %v829 = vld [vmem:[#allocation6 + $0x14a0] sm:$0xff]
    %v830 = vld [vmem:[#allocation6 + $0x14a8] sm:$0xff]
    %v831 = vld [vmem:[#allocation6 + $0x14b0] sm:$0xff]
    %v832 = vld [vmem:[#allocation6 + $0x14b8] sm:$0xff]
    %v833 = vld [vmem:[#allocation6 + $0x14c0] sm:$0xff]
    %v834 = vld [vmem:[#allocation6 + $0x14c8] sm:$0xff]
    %v835 = vld [vmem:[#allocation6 + $0x14d0] sm:$0xff]
    %v836 = vld [vmem:[#allocation6 + $0x14d8] sm:$0xff]
    %v837 = vld [vmem:[#allocation6 + $0x14e0] sm:$0xff]
    %v838 = vld [vmem:[#allocation6 + $0x14e8] sm:$0xff]
    %v839 = vld [vmem:[#allocation6 + $0x14f0] sm:$0xff]
    %v840 = vld [vmem:[#allocation6 + $0x14f8] sm:$0xff]
    %v841 = vld [vmem:[#allocation6 + $0x1500] sm:$0xff]
    %v842 = vld [vmem:[#allocation6 + $0x1508] sm:$0xff]
    %v843 = vld [vmem:[#allocation6 + $0x1510] sm:$0xff]
    %v844 = vld [vmem:[#allocation6 + $0x1518] sm:$0xff]
    %v845 = vld [vmem:[#allocation6 + $0x1520] sm:$0xff]
    %v846 = vld [vmem:[#allocation6 + $0x1528] sm:$0xff]
    %v847 = vld [vmem:[#allocation6 + $0x1530] sm:$0xff]
    %v848 = vld [vmem:[#allocation6 + $0x1538] sm:$0xff]
    %v849 = vld [vmem:[#allocation6 + $0x1540] sm:$0xff]
    %v850 = vld [vmem:[#allocation6 + $0x1548] sm:$0xff]
    %v851 = vld [vmem:[#allocation6 + $0x1550] sm:$0xff]
    %v852 = vld [vmem:[#allocation6 + $0x1558] sm:$0xff]
    %v853 = vld [vmem:[#allocation6 + $0x1560] sm:$0xff]
    %v854 = vld [vmem:[#allocation6 + $0x1568] sm:$0xff]
    %v855 = vld [vmem:[#allocation6 + $0x1570] sm:$0xff]
    %v856 = vld [vmem:[#allocation6 + $0x1578] sm:$0xff]
    %v857 = vld [vmem:[#allocation6 + $0x1580] sm:$0xff]
    %v858 = vld [vmem:[#allocation6 + $0x1588] sm:$0xff]
    %v859 = vld [vmem:[#allocation6 + $0x1590] sm:$0xff]
    %v860 = vld [vmem:[#allocation6 + $0x1598] sm:$0xff]
    %v861 = vld [vmem:[#allocation6 + $0x15a0] sm:$0xff]
    %v862 = vld [vmem:[#allocation6 + $0x15a8] sm:$0xff]
    %v863 = vld [vmem:[#allocation6 + $0x15b0] sm:$0xff]
    %v864 = vld [vmem:[#allocation6 + $0x15b8] sm:$0xff]
    %v865 = vld [vmem:[#allocation6 + $0x15c0] sm:$0xff]
    %v866 = vld [vmem:[#allocation6 + $0x15c8] sm:$0xff]
    %v867 = vld [vmem:[#allocation6 + $0x15d0] sm:$0xff]
    %v868 = vld [vmem:[#allocation6 + $0x15d8] sm:$0xff]
    %v869 = vld [vmem:[#allocation6 + $0x15e0] sm:$0xff]
    %v870 = vld [vmem:[#allocation6 + $0x15e8] sm:$0xff]
    %v871 = vld [vmem:[#allocation6 + $0x15f0] sm:$0xff]
    %v872 = vld [vmem:[#allocation6 + $0x15f8] sm:$0xff]
    %v873 = vld [vmem:[#allocation6 + $0x1600] sm:$0xff]
    %v874 = vld [vmem:[#allocation6 + $0x1608] sm:$0xff]
    %v875 = vld [vmem:[#allocation6 + $0x1610] sm:$0xff]
    %v876 = vld [vmem:[#allocation6 + $0x1618] sm:$0xff]
    %v877 = vld [vmem:[#allocation6 + $0x1620] sm:$0xff]
    %v878 = vld [vmem:[#allocation6 + $0x1628] sm:$0xff]
    %v879 = vld [vmem:[#allocation6 + $0x1630] sm:$0xff]
    %v880 = vld [vmem:[#allocation6 + $0x1638] sm:$0xff]
    %v881 = vld [vmem:[#allocation6 + $0x1640] sm:$0xff]
    %v882 = vld [vmem:[#allocation6 + $0x1648] sm:$0xff]
    %v883 = vld [vmem:[#allocation6 + $0x1650] sm:$0xff]
    %v884 = vld [vmem:[#allocation6 + $0x1658] sm:$0xff]
    %v885 = vld [vmem:[#allocation6 + $0x1660] sm:$0xff]
    %v886 = vld [vmem:[#allocation6 + $0x1668] sm:$0xff]
    %v887 = vld [vmem:[#allocation6 + $0x1670] sm:$0xff]
    %v888 = vld [vmem:[#allocation6 + $0x1678] sm:$0xff]
    %v889 = vld [vmem:[#allocation6 + $0x1680] sm:$0xff]
    %v890 = vld [vmem:[#allocation6 + $0x1688] sm:$0xff]
    %v891 = vld [vmem:[#allocation6 + $0x1690] sm:$0xff]
    %v892 = vld [vmem:[#allocation6 + $0x1698] sm:$0xff]
    %v893 = vld [vmem:[#allocation6 + $0x16a0] sm:$0xff]
    %v894 = vld [vmem:[#allocation6 + $0x16a8] sm:$0xff]
    %v895 = vld [vmem:[#allocation6 + $0x16b0] sm:$0xff]
    %v896 = vld [vmem:[#allocation6 + $0x16b8] sm:$0xff]
    %v897 = vld [vmem:[#allocation6 + $0x16c0] sm:$0xff]
    %v898 = vld [vmem:[#allocation6 + $0x16c8] sm:$0xff]
    %v899 = vld [vmem:[#allocation6 + $0x16d0] sm:$0xff]
    %v900 = vld [vmem:[#allocation6 + $0x16d8] sm:$0xff]
    %v901 = vld [vmem:[#allocation6 + $0x16e0] sm:$0xff]
    %v902 = vld [vmem:[#allocation6 + $0x16e8] sm:$0xff]
    %v903 = vld [vmem:[#allocation6 + $0x16f0] sm:$0xff]
    %v904 = vld [vmem:[#allocation6 + $0x16f8] sm:$0xff]
    %v905 = vld [vmem:[#allocation6 + $0x1700] sm:$0xff]
    %v906 = vld [vmem:[#allocation6 + $0x1708] sm:$0xff]
    %v907 = vld [vmem:[#allocation6 + $0x1710] sm:$0xff]
    %v908 = vld [vmem:[#allocation6 + $0x1718] sm:$0xff]
    %v909 = vld [vmem:[#allocation6 + $0x1720] sm:$0xff]
    %v910 = vld [vmem:[#allocation6 + $0x1728] sm:$0xff]
    %v911 = vld [vmem:[#allocation6 + $0x1730] sm:$0xff]
    %v912 = vld [vmem:[#allocation6 + $0x1738] sm:$0xff]
    %v913 = vld [vmem:[#allocation6 + $0x1740] sm:$0xff]
    %v914 = vld [vmem:[#allocation6 + $0x1748] sm:$0xff]
    %v915 = vld [vmem:[#allocation6 + $0x1750] sm:$0xff]
    %v916 = vld [vmem:[#allocation6 + $0x1758] sm:$0xff]
    %v917 = vld [vmem:[#allocation6 + $0x1760] sm:$0xff]
    %v918 = vld [vmem:[#allocation6 + $0x1768] sm:$0xff]
    %v919 = vld [vmem:[#allocation6 + $0x1770] sm:$0xff]
    %v920 = vld [vmem:[#allocation6 + $0x1778] sm:$0xff]
    %v921 = vld [vmem:[#allocation6 + $0x1780] sm:$0xff]
    %v922 = vld [vmem:[#allocation6 + $0x1788] sm:$0xff]
    %v923 = vld [vmem:[#allocation6 + $0x1790] sm:$0xff]
    %v924 = vld [vmem:[#allocation6 + $0x1798] sm:$0xff]
    %v925 = vld [vmem:[#allocation6 + $0x17a0] sm:$0xff]
    %v926 = vld [vmem:[#allocation6 + $0x17a8] sm:$0xff]
    %v927 = vld [vmem:[#allocation6 + $0x17b0] sm:$0xff]
    %v928 = vld [vmem:[#allocation6 + $0x17b8] sm:$0xff]
    %v929 = vld [vmem:[#allocation6 + $0x17c0] sm:$0xff]
    %v930 = vld [vmem:[#allocation6 + $0x17c8] sm:$0xff]
    %v931 = vld [vmem:[#allocation6 + $0x17d0] sm:$0xff]
    %v932 = vld [vmem:[#allocation6 + $0x17d8] sm:$0xff]
    %v933 = vld [vmem:[#allocation6 + $0x17e0] sm:$0xff]
    %v934 = vld [vmem:[#allocation6 + $0x17e8] sm:$0xff]
    %v935 = vld [vmem:[#allocation6 + $0x17f0] sm:$0xff]
    %v936 = vld [vmem:[#allocation6 + $0x17f8] sm:$0xff]
    %v1705 = vunpack.c.l.b16 %v169
    %v1706 = vunpack.c.h.b16 %v169
    %v1707 = vunpack.c.l.b16 %v170
    %v1708 = vunpack.c.h.b16 %v170
    %v1709 = vunpack.c.l.b16 %v171
    %v1710 = vunpack.c.h.b16 %v171
    %v1711 = vunpack.c.l.b16 %v172
    %v1712 = vunpack.c.h.b16 %v172
    %v1713 = vunpack.c.l.b16 %v173
    %v1714 = vunpack.c.h.b16 %v173
    %v1715 = vunpack.c.l.b16 %v174
    %v1716 = vunpack.c.h.b16 %v174
    %v1717 = vunpack.c.l.b16 %v175
    %v1718 = vunpack.c.h.b16 %v175
    %v1719 = vunpack.c.l.b16 %v176
    %v1720 = vunpack.c.h.b16 %v176
    %v1721 = vunpack.c.l.b16 %v177
    %v1722 = vunpack.c.h.b16 %v177
    %v1723 = vunpack.c.l.b16 %v178
    %v1724 = vunpack.c.h.b16 %v178
    %v1725 = vunpack.c.l.b16 %v179
    %v1726 = vunpack.c.h.b16 %v179
    %v1727 = vunpack.c.l.b16 %v180
    %v1728 = vunpack.c.h.b16 %v180
    %v1729 = vunpack.c.l.b16 %v181
    %v1730 = vunpack.c.h.b16 %v181
    %v1731 = vunpack.c.l.b16 %v182
    %v1732 = vunpack.c.h.b16 %v182
    %v1733 = vunpack.c.l.b16 %v183
    %v1734 = vunpack.c.h.b16 %v183
    %v1735 = vunpack.c.l.b16 %v184
    %v1736 = vunpack.c.h.b16 %v184
    %v1737 = vunpack.c.l.b16 %v185
    %v1738 = vunpack.c.h.b16 %v185
    %v1739 = vunpack.c.l.b16 %v186
    %v1740 = vunpack.c.h.b16 %v186
    %v1741 = vunpack.c.l.b16 %v187
    %v1742 = vunpack.c.h.b16 %v187
    %v1743 = vunpack.c.l.b16 %v188
    %v1744 = vunpack.c.h.b16 %v188
    %v1745 = vunpack.c.l.b16 %v189
    %v1746 = vunpack.c.h.b16 %v189
    %v1747 = vunpack.c.l.b16 %v190
    %v1748 = vunpack.c.h.b16 %v190
    %v1749 = vunpack.c.l.b16 %v191
    %v1750 = vunpack.c.h.b16 %v191
    %v1751 = vunpack.c.l.b16 %v192
    %v1752 = vunpack.c.h.b16 %v192
    %v1753 = vunpack.c.l.b16 %v193
    %v1754 = vunpack.c.h.b16 %v193
    %v1755 = vunpack.c.l.b16 %v194
    %v1756 = vunpack.c.h.b16 %v194
    %v1757 = vunpack.c.l.b16 %v195
    %v1758 = vunpack.c.h.b16 %v195
    %v1759 = vunpack.c.l.b16 %v196
    %v1760 = vunpack.c.h.b16 %v196
    %v1761 = vunpack.c.l.b16 %v197
    %v1762 = vunpack.c.h.b16 %v197
    %v1763 = vunpack.c.l.b16 %v198
    %v1764 = vunpack.c.h.b16 %v198
    %v1765 = vunpack.c.l.b16 %v199
    %v1766 = vunpack.c.h.b16 %v199
    %v1767 = vunpack.c.l.b16 %v200
    %v1768 = vunpack.c.h.b16 %v200
    %v1769 = vunpack.c.l.b16 %v201
    %v1770 = vunpack.c.h.b16 %v201
    %v1771 = vunpack.c.l.b16 %v202
    %v1772 = vunpack.c.h.b16 %v202
    %v1773 = vunpack.c.l.b16 %v203
    %v1774 = vunpack.c.h.b16 %v203
    %v1775 = vunpack.c.l.b16 %v204
    %v1776 = vunpack.c.h.b16 %v204
    %v1777 = vunpack.c.l.b16 %v205
    %v1778 = vunpack.c.h.b16 %v205
    %v1779 = vunpack.c.l.b16 %v206
    %v1780 = vunpack.c.h.b16 %v206
    %v1781 = vunpack.c.l.b16 %v207
    %v1782 = vunpack.c.h.b16 %v207
    %v1783 = vunpack.c.l.b16 %v208
    %v1784 = vunpack.c.h.b16 %v208
    %v1785 = vunpack.c.l.b16 %v209
    %v1786 = vunpack.c.h.b16 %v209
    %v1787 = vunpack.c.l.b16 %v210
    %v1788 = vunpack.c.h.b16 %v210
    %v1789 = vunpack.c.l.b16 %v211
    %v1790 = vunpack.c.h.b16 %v211
    %v1791 = vunpack.c.l.b16 %v212
    %v1792 = vunpack.c.h.b16 %v212
    %v1793 = vunpack.c.l.b16 %v213
    %v1794 = vunpack.c.h.b16 %v213
    %v1795 = vunpack.c.l.b16 %v214
    %v1796 = vunpack.c.h.b16 %v214
    %v1797 = vunpack.c.l.b16 %v215
    %v1798 = vunpack.c.h.b16 %v215
    %v1799 = vunpack.c.l.b16 %v216
    %v1800 = vunpack.c.h.b16 %v216
    %v1801 = vunpack.c.l.b16 %v217
    %v1802 = vunpack.c.h.b16 %v217
    %v1803 = vunpack.c.l.b16 %v218
    %v1804 = vunpack.c.h.b16 %v218
    %v1805 = vunpack.c.l.b16 %v219
    %v1806 = vunpack.c.h.b16 %v219
    %v1807 = vunpack.c.l.b16 %v220
    %v1808 = vunpack.c.h.b16 %v220
    %v1809 = vunpack.c.l.b16 %v221
    %v1810 = vunpack.c.h.b16 %v221
    %v1811 = vunpack.c.l.b16 %v222
    %v1812 = vunpack.c.h.b16 %v222
    %v1813 = vunpack.c.l.b16 %v223
    %v1814 = vunpack.c.h.b16 %v223
    %v1815 = vunpack.c.l.b16 %v224
    %v1816 = vunpack.c.h.b16 %v224
    %v1817 = vunpack.c.l.b16 %v225
    %v1818 = vunpack.c.h.b16 %v225
    %v1819 = vunpack.c.l.b16 %v226
    %v1820 = vunpack.c.h.b16 %v226
    %v1821 = vunpack.c.l.b16 %v227
    %v1822 = vunpack.c.h.b16 %v227
    %v1823 = vunpack.c.l.b16 %v228
    %v1824 = vunpack.c.h.b16 %v228
    %v1825 = vunpack.c.l.b16 %v229
    %v1826 = vunpack.c.h.b16 %v229
    %v1827 = vunpack.c.l.b16 %v230
    %v1828 = vunpack.c.h.b16 %v230
    %v1829 = vunpack.c.l.b16 %v231
    %v1830 = vunpack.c.h.b16 %v231
    %v1831 = vunpack.c.l.b16 %v232
    %v1832 = vunpack.c.h.b16 %v232
    %v1833 = vunpack.c.l.b16 %v233
    %v1834 = vunpack.c.h.b16 %v233
    %v1835 = vunpack.c.l.b16 %v234
    %v1836 = vunpack.c.h.b16 %v234
    %v1837 = vunpack.c.l.b16 %v235
    %v1838 = vunpack.c.h.b16 %v235
    %v1839 = vunpack.c.l.b16 %v236
    %v1840 = vunpack.c.h.b16 %v236
    %v1841 = vunpack.c.l.b16 %v237
    %v1842 = vunpack.c.h.b16 %v237
    %v1843 = vunpack.c.l.b16 %v238
    %v1844 = vunpack.c.h.b16 %v238
    %v1845 = vunpack.c.l.b16 %v239
    %v1846 = vunpack.c.h.b16 %v239
    %v1847 = vunpack.c.l.b16 %v240
    %v1848 = vunpack.c.h.b16 %v240
    %v1849 = vunpack.c.l.b16 %v241
    %v1850 = vunpack.c.h.b16 %v241
    %v1851 = vunpack.c.l.b16 %v242
    %v1852 = vunpack.c.h.b16 %v242
    %v1853 = vunpack.c.l.b16 %v243
    %v1854 = vunpack.c.h.b16 %v243
    %v1855 = vunpack.c.l.b16 %v244
    %v1856 = vunpack.c.h.b16 %v244
    %v1857 = vunpack.c.l.b16 %v245
    %v1858 = vunpack.c.h.b16 %v245
    %v1859 = vunpack.c.l.b16 %v246
    %v1860 = vunpack.c.h.b16 %v246
    %v1861 = vunpack.c.l.b16 %v247
    %v1862 = vunpack.c.h.b16 %v247
    %v1863 = vunpack.c.l.b16 %v248
    %v1864 = vunpack.c.h.b16 %v248
    %v1865 = vunpack.c.l.b16 %v249
    %v1866 = vunpack.c.h.b16 %v249
    %v1867 = vunpack.c.l.b16 %v250
    %v1868 = vunpack.c.h.b16 %v250
    %v1869 = vunpack.c.l.b16 %v251
    %v1870 = vunpack.c.h.b16 %v251
    %v1871 = vunpack.c.l.b16 %v252
    %v1872 = vunpack.c.h.b16 %v252
    %v1873 = vunpack.c.l.b16 %v253
    %v1874 = vunpack.c.h.b16 %v253
    %v1875 = vunpack.c.l.b16 %v254
    %v1876 = vunpack.c.h.b16 %v254
    %v1877 = vunpack.c.l.b16 %v255
    %v1878 = vunpack.c.h.b16 %v255
    %v1879 = vunpack.c.l.b16 %v256
    %v1880 = vunpack.c.h.b16 %v256
    %v1881 = vunpack.c.l.b16 %v257
    %v1882 = vunpack.c.h.b16 %v257
    %v1883 = vunpack.c.l.b16 %v258
    %v1884 = vunpack.c.h.b16 %v258
    %v1885 = vunpack.c.l.b16 %v259
    %v1886 = vunpack.c.h.b16 %v259
    %v1887 = vunpack.c.l.b16 %v260
    %v1888 = vunpack.c.h.b16 %v260
    %v1889 = vunpack.c.l.b16 %v261
    %v1890 = vunpack.c.h.b16 %v261
    %v1891 = vunpack.c.l.b16 %v262
    %v1892 = vunpack.c.h.b16 %v262
    %v1893 = vunpack.c.l.b16 %v263
    %v1894 = vunpack.c.h.b16 %v263
    %v1895 = vunpack.c.l.b16 %v264
    %v1896 = vunpack.c.h.b16 %v264
    %v1897 = vunpack.c.l.b16 %v265
    %v1898 = vunpack.c.h.b16 %v265
    %v1899 = vunpack.c.l.b16 %v266
    %v1900 = vunpack.c.h.b16 %v266
    %v1901 = vunpack.c.l.b16 %v267
    %v1902 = vunpack.c.h.b16 %v267
    %v1903 = vunpack.c.l.b16 %v268
    %v1904 = vunpack.c.h.b16 %v268
    %v1905 = vunpack.c.l.b16 %v269
    %v1906 = vunpack.c.h.b16 %v269
    %v1907 = vunpack.c.l.b16 %v270
    %v1908 = vunpack.c.h.b16 %v270
    %v1909 = vunpack.c.l.b16 %v271
    %v1910 = vunpack.c.h.b16 %v271
    %v1911 = vunpack.c.l.b16 %v272
    %v1912 = vunpack.c.h.b16 %v272
    %v1913 = vunpack.c.l.b16 %v273
    %v1914 = vunpack.c.h.b16 %v273
    %v1915 = vunpack.c.l.b16 %v274
    %v1916 = vunpack.c.h.b16 %v274
    %v1917 = vunpack.c.l.b16 %v275
    %v1918 = vunpack.c.h.b16 %v275
    %v1919 = vunpack.c.l.b16 %v276
    %v1920 = vunpack.c.h.b16 %v276
    %v1921 = vunpack.c.l.b16 %v277
    %v1922 = vunpack.c.h.b16 %v277
    %v1923 = vunpack.c.l.b16 %v278
    %v1924 = vunpack.c.h.b16 %v278
    %v1925 = vunpack.c.l.b16 %v279
    %v1926 = vunpack.c.h.b16 %v279
    %v1927 = vunpack.c.l.b16 %v280
    %v1928 = vunpack.c.h.b16 %v280
    %v1929 = vunpack.c.l.b16 %v281
    %v1930 = vunpack.c.h.b16 %v281
    %v1931 = vunpack.c.l.b16 %v282
    %v1932 = vunpack.c.h.b16 %v282
    %v1933 = vunpack.c.l.b16 %v283
    %v1934 = vunpack.c.h.b16 %v283
    %v1935 = vunpack.c.l.b16 %v284
    %v1936 = vunpack.c.h.b16 %v284
    %v1937 = vunpack.c.l.b16 %v285
    %v1938 = vunpack.c.h.b16 %v285
    %v1939 = vunpack.c.l.b16 %v286
    %v1940 = vunpack.c.h.b16 %v286
    %v1941 = vunpack.c.l.b16 %v287
    %v1942 = vunpack.c.h.b16 %v287
    %v1943 = vunpack.c.l.b16 %v288
    %v1944 = vunpack.c.h.b16 %v288
    %v1945 = vunpack.c.l.b16 %v289
    %v1946 = vunpack.c.h.b16 %v289
    %v1947 = vunpack.c.l.b16 %v290
    %v1948 = vunpack.c.h.b16 %v290
    %v1949 = vunpack.c.l.b16 %v291
    %v1950 = vunpack.c.h.b16 %v291
    %v1951 = vunpack.c.l.b16 %v292
    %v1952 = vunpack.c.h.b16 %v292
    %v1953 = vunpack.c.l.b16 %v293
    %v1954 = vunpack.c.h.b16 %v293
    %v1955 = vunpack.c.l.b16 %v294
    %v1956 = vunpack.c.h.b16 %v294
    %v1957 = vunpack.c.l.b16 %v295
    %v1958 = vunpack.c.h.b16 %v295
    %v1959 = vunpack.c.l.b16 %v296
    %v1960 = vunpack.c.h.b16 %v296
    %v1961 = vunpack.c.l.b16 %v297
    %v1962 = vunpack.c.h.b16 %v297
    %v1963 = vunpack.c.l.b16 %v298
    %v1964 = vunpack.c.h.b16 %v298
    %v1965 = vunpack.c.l.b16 %v299
    %v1966 = vunpack.c.h.b16 %v299
    %v1967 = vunpack.c.l.b16 %v300
    %v1968 = vunpack.c.h.b16 %v300
    %v1969 = vunpack.c.l.b16 %v301
    %v1970 = vunpack.c.h.b16 %v301
    %v1971 = vunpack.c.l.b16 %v302
    %v1972 = vunpack.c.h.b16 %v302
    %v1973 = vunpack.c.l.b16 %v303
    %v1974 = vunpack.c.h.b16 %v303
    %v1975 = vunpack.c.l.b16 %v304
    %v1976 = vunpack.c.h.b16 %v304
    %v1977 = vunpack.c.l.b16 %v305
    %v1978 = vunpack.c.h.b16 %v305
    %v1979 = vunpack.c.l.b16 %v306
    %v1980 = vunpack.c.h.b16 %v306
    %v1981 = vunpack.c.l.b16 %v307
    %v1982 = vunpack.c.h.b16 %v307
    %v1983 = vunpack.c.l.b16 %v308
    %v1984 = vunpack.c.h.b16 %v308
    %v1985 = vunpack.c.l.b16 %v309
    %v1986 = vunpack.c.h.b16 %v309
    %v1987 = vunpack.c.l.b16 %v310
    %v1988 = vunpack.c.h.b16 %v310
    %v1989 = vunpack.c.l.b16 %v311
    %v1990 = vunpack.c.h.b16 %v311
    %v1991 = vunpack.c.l.b16 %v312
    %v1992 = vunpack.c.h.b16 %v312
    %v1993 = vunpack.c.l.b16 %v313
    %v1994 = vunpack.c.h.b16 %v313
    %v1995 = vunpack.c.l.b16 %v314
    %v1996 = vunpack.c.h.b16 %v314
    %v1997 = vunpack.c.l.b16 %v315
    %v1998 = vunpack.c.h.b16 %v315
    %v1999 = vunpack.c.l.b16 %v316
    %v2000 = vunpack.c.h.b16 %v316
    %v2001 = vunpack.c.l.b16 %v317
    %v2002 = vunpack.c.h.b16 %v317
    %v2003 = vunpack.c.l.b16 %v318
    %v2004 = vunpack.c.h.b16 %v318
    %v2005 = vunpack.c.l.b16 %v319
    %v2006 = vunpack.c.h.b16 %v319
    %v2007 = vunpack.c.l.b16 %v320
    %v2008 = vunpack.c.h.b16 %v320
    %v2009 = vunpack.c.l.b16 %v321
    %v2010 = vunpack.c.h.b16 %v321
    %v2011 = vunpack.c.l.b16 %v322
    %v2012 = vunpack.c.h.b16 %v322
    %v2013 = vunpack.c.l.b16 %v323
    %v2014 = vunpack.c.h.b16 %v323
    %v2015 = vunpack.c.l.b16 %v324
    %v2016 = vunpack.c.h.b16 %v324
    %v2017 = vunpack.c.l.b16 %v325
    %v2018 = vunpack.c.h.b16 %v325
    %v2019 = vunpack.c.l.b16 %v326
    %v2020 = vunpack.c.h.b16 %v326
    %v2021 = vunpack.c.l.b16 %v327
    %v2022 = vunpack.c.h.b16 %v327
    %v2023 = vunpack.c.l.b16 %v328
    %v2024 = vunpack.c.h.b16 %v328
    %v2025 = vunpack.c.l.b16 %v329
    %v2026 = vunpack.c.h.b16 %v329
    %v2027 = vunpack.c.l.b16 %v330
    %v2028 = vunpack.c.h.b16 %v330
    %v2029 = vunpack.c.l.b16 %v331
    %v2030 = vunpack.c.h.b16 %v331
    %v2031 = vunpack.c.l.b16 %v332
    %v2032 = vunpack.c.h.b16 %v332
    %v2033 = vunpack.c.l.b16 %v333
    %v2034 = vunpack.c.h.b16 %v333
    %v2035 = vunpack.c.l.b16 %v334
    %v2036 = vunpack.c.h.b16 %v334
    %v2037 = vunpack.c.l.b16 %v335
    %v2038 = vunpack.c.h.b16 %v335
    %v2039 = vunpack.c.l.b16 %v336
    %v2040 = vunpack.c.h.b16 %v336
    %v2041 = vunpack.c.l.b16 %v337
    %v2042 = vunpack.c.h.b16 %v337
    %v2043 = vunpack.c.l.b16 %v338
    %v2044 = vunpack.c.h.b16 %v338
    %v2045 = vunpack.c.l.b16 %v339
    %v2046 = vunpack.c.h.b16 %v339
    %v2047 = vunpack.c.l.b16 %v340
    %v2048 = vunpack.c.h.b16 %v340
    %v2049 = vunpack.c.l.b16 %v341
    %v2050 = vunpack.c.h.b16 %v341
    %v2051 = vunpack.c.l.b16 %v342
    %v2052 = vunpack.c.h.b16 %v342
    %v2053 = vunpack.c.l.b16 %v343
    %v2054 = vunpack.c.h.b16 %v343
    %v2055 = vunpack.c.l.b16 %v344
    %v2056 = vunpack.c.h.b16 %v344
    %v2057 = vunpack.c.l.b16 %v345
    %v2058 = vunpack.c.h.b16 %v345
    %v2059 = vunpack.c.l.b16 %v346
    %v2060 = vunpack.c.h.b16 %v346
    %v2061 = vunpack.c.l.b16 %v347
    %v2062 = vunpack.c.h.b16 %v347
    %v2063 = vunpack.c.l.b16 %v348
    %v2064 = vunpack.c.h.b16 %v348
    %v2065 = vunpack.c.l.b16 %v349
    %v2066 = vunpack.c.h.b16 %v349
    %v2067 = vunpack.c.l.b16 %v350
    %v2068 = vunpack.c.h.b16 %v350
    %v2069 = vunpack.c.l.b16 %v351
    %v2070 = vunpack.c.h.b16 %v351
    %v2071 = vunpack.c.l.b16 %v352
    %v2072 = vunpack.c.h.b16 %v352
    %v2073 = vunpack.c.l.b16 %v353
    %v2074 = vunpack.c.h.b16 %v353
    %v2075 = vunpack.c.l.b16 %v354
    %v2076 = vunpack.c.h.b16 %v354
    %v2077 = vunpack.c.l.b16 %v355
    %v2078 = vunpack.c.h.b16 %v355
    %v2079 = vunpack.c.l.b16 %v356
    %v2080 = vunpack.c.h.b16 %v356
    %v2081 = vunpack.c.l.b16 %v357
    %v2082 = vunpack.c.h.b16 %v357
    %v2083 = vunpack.c.l.b16 %v358
    %v2084 = vunpack.c.h.b16 %v358
    %v2085 = vunpack.c.l.b16 %v359
    %v2086 = vunpack.c.h.b16 %v359
    %v2087 = vunpack.c.l.b16 %v360
    %v2088 = vunpack.c.h.b16 %v360
    %v2089 = vunpack.c.l.b16 %v361
    %v2090 = vunpack.c.h.b16 %v361
    %v2091 = vunpack.c.l.b16 %v362
    %v2092 = vunpack.c.h.b16 %v362
    %v2093 = vunpack.c.l.b16 %v363
    %v2094 = vunpack.c.h.b16 %v363
    %v2095 = vunpack.c.l.b16 %v364
    %v2096 = vunpack.c.h.b16 %v364
    %v2097 = vunpack.c.l.b16 %v365
    %v2098 = vunpack.c.h.b16 %v365
    %v2099 = vunpack.c.l.b16 %v366
    %v2100 = vunpack.c.h.b16 %v366
    %v2101 = vunpack.c.l.b16 %v367
    %v2102 = vunpack.c.h.b16 %v367
    %v2103 = vunpack.c.l.b16 %v368
    %v2104 = vunpack.c.h.b16 %v368
    %v2105 = vunpack.c.l.b16 %v369
    %v2106 = vunpack.c.h.b16 %v369
    %v2107 = vunpack.c.l.b16 %v370
    %v2108 = vunpack.c.h.b16 %v370
    %v2109 = vunpack.c.l.b16 %v371
    %v2110 = vunpack.c.h.b16 %v371
    %v2111 = vunpack.c.l.b16 %v372
    %v2112 = vunpack.c.h.b16 %v372
    %v2113 = vunpack.c.l.b16 %v373
    %v2114 = vunpack.c.h.b16 %v373
    %v2115 = vunpack.c.l.b16 %v374
    %v2116 = vunpack.c.h.b16 %v374
    %v2117 = vunpack.c.l.b16 %v375
    %v2118 = vunpack.c.h.b16 %v375
    %v2119 = vunpack.c.l.b16 %v376
    %v2120 = vunpack.c.h.b16 %v376
    %v2121 = vunpack.c.l.b16 %v377
    %v2122 = vunpack.c.h.b16 %v377
    %v2123 = vunpack.c.l.b16 %v378
    %v2124 = vunpack.c.h.b16 %v378
    %v2125 = vunpack.c.l.b16 %v379
    %v2126 = vunpack.c.h.b16 %v379
    %v2127 = vunpack.c.l.b16 %v380
    %v2128 = vunpack.c.h.b16 %v380
    %v2129 = vunpack.c.l.b16 %v381
    %v2130 = vunpack.c.h.b16 %v381
    %v2131 = vunpack.c.l.b16 %v382
    %v2132 = vunpack.c.h.b16 %v382
    %v2133 = vunpack.c.l.b16 %v383
    %v2134 = vunpack.c.h.b16 %v383
    %v2135 = vunpack.c.l.b16 %v384
    %v2136 = vunpack.c.h.b16 %v384
    %v2137 = vunpack.c.l.b16 %v385
    %v2138 = vunpack.c.h.b16 %v385
    %v2139 = vunpack.c.l.b16 %v386
    %v2140 = vunpack.c.h.b16 %v386
    %v2141 = vunpack.c.l.b16 %v387
    %v2142 = vunpack.c.h.b16 %v387
    %v2143 = vunpack.c.l.b16 %v388
    %v2144 = vunpack.c.h.b16 %v388
    %v2145 = vunpack.c.l.b16 %v389
    %v2146 = vunpack.c.h.b16 %v389
    %v2147 = vunpack.c.l.b16 %v390
    %v2148 = vunpack.c.h.b16 %v390
    %v2149 = vunpack.c.l.b16 %v391
    %v2150 = vunpack.c.h.b16 %v391
    %v2151 = vunpack.c.l.b16 %v392
    %v2152 = vunpack.c.h.b16 %v392
    %v2153 = vunpack.c.l.b16 %v393
    %v2154 = vunpack.c.h.b16 %v393
    %v2155 = vunpack.c.l.b16 %v394
    %v2156 = vunpack.c.h.b16 %v394
    %v2157 = vunpack.c.l.b16 %v395
    %v2158 = vunpack.c.h.b16 %v395
    %v2159 = vunpack.c.l.b16 %v396
    %v2160 = vunpack.c.h.b16 %v396
    %v2161 = vunpack.c.l.b16 %v397
    %v2162 = vunpack.c.h.b16 %v397
    %v2163 = vunpack.c.l.b16 %v398
    %v2164 = vunpack.c.h.b16 %v398
    %v2165 = vunpack.c.l.b16 %v399
    %v2166 = vunpack.c.h.b16 %v399
    %v2167 = vunpack.c.l.b16 %v400
    %v2168 = vunpack.c.h.b16 %v400
    %v2169 = vunpack.c.l.b16 %v401
    %v2170 = vunpack.c.h.b16 %v401
    %v2171 = vunpack.c.l.b16 %v402
    %v2172 = vunpack.c.h.b16 %v402
    %v2173 = vunpack.c.l.b16 %v403
    %v2174 = vunpack.c.h.b16 %v403
    %v2175 = vunpack.c.l.b16 %v404
    %v2176 = vunpack.c.h.b16 %v404
    %v2177 = vunpack.c.l.b16 %v405
    %v2178 = vunpack.c.h.b16 %v405
    %v2179 = vunpack.c.l.b16 %v406
    %v2180 = vunpack.c.h.b16 %v406
    %v2181 = vunpack.c.l.b16 %v407
    %v2182 = vunpack.c.h.b16 %v407
    %v2183 = vunpack.c.l.b16 %v408
    %v2184 = vunpack.c.h.b16 %v408
    %v2185 = vunpack.c.l.b16 %v409
    %v2186 = vunpack.c.h.b16 %v409
    %v2187 = vunpack.c.l.b16 %v410
    %v2188 = vunpack.c.h.b16 %v410
    %v2189 = vunpack.c.l.b16 %v411
    %v2190 = vunpack.c.h.b16 %v411
    %v2191 = vunpack.c.l.b16 %v412
    %v2192 = vunpack.c.h.b16 %v412
    %v2193 = vunpack.c.l.b16 %v413
    %v2194 = vunpack.c.h.b16 %v413
    %v2195 = vunpack.c.l.b16 %v414
    %v2196 = vunpack.c.h.b16 %v414
    %v2197 = vunpack.c.l.b16 %v415
    %v2198 = vunpack.c.h.b16 %v415
    %v2199 = vunpack.c.l.b16 %v416
    %v2200 = vunpack.c.h.b16 %v416
    %v2201 = vunpack.c.l.b16 %v417
    %v2202 = vunpack.c.h.b16 %v417
    %v2203 = vunpack.c.l.b16 %v418
    %v2204 = vunpack.c.h.b16 %v418
    %v2205 = vunpack.c.l.b16 %v419
    %v2206 = vunpack.c.h.b16 %v419
    %v2207 = vunpack.c.l.b16 %v420
    %v2208 = vunpack.c.h.b16 %v420
    %v2209 = vunpack.c.l.b16 %v421
    %v2210 = vunpack.c.h.b16 %v421
    %v2211 = vunpack.c.l.b16 %v422
    %v2212 = vunpack.c.h.b16 %v422
    %v2213 = vunpack.c.l.b16 %v423
    %v2214 = vunpack.c.h.b16 %v423
    %v2215 = vunpack.c.l.b16 %v424
    %v2216 = vunpack.c.h.b16 %v424
    %v2217 = vunpack.c.l.b16 %v425
    %v2218 = vunpack.c.h.b16 %v425
    %v2219 = vunpack.c.l.b16 %v426
    %v2220 = vunpack.c.h.b16 %v426
    %v2221 = vunpack.c.l.b16 %v427
    %v2222 = vunpack.c.h.b16 %v427
    %v2223 = vunpack.c.l.b16 %v428
    %v2224 = vunpack.c.h.b16 %v428
    %v2225 = vunpack.c.l.b16 %v429
    %v2226 = vunpack.c.h.b16 %v429
    %v2227 = vunpack.c.l.b16 %v430
    %v2228 = vunpack.c.h.b16 %v430
    %v2229 = vunpack.c.l.b16 %v431
    %v2230 = vunpack.c.h.b16 %v431
    %v2231 = vunpack.c.l.b16 %v432
    %v2232 = vunpack.c.h.b16 %v432
    %v2233 = vunpack.c.l.b16 %v433
    %v2234 = vunpack.c.h.b16 %v433
    %v2235 = vunpack.c.l.b16 %v434
    %v2236 = vunpack.c.h.b16 %v434
    %v2237 = vunpack.c.l.b16 %v435
    %v2238 = vunpack.c.h.b16 %v435
    %v2239 = vunpack.c.l.b16 %v436
    %v2240 = vunpack.c.h.b16 %v436
    %v2241 = vunpack.c.l.b16 %v437
    %v2242 = vunpack.c.h.b16 %v437
    %v2243 = vunpack.c.l.b16 %v438
    %v2244 = vunpack.c.h.b16 %v438
    %v2245 = vunpack.c.l.b16 %v439
    %v2246 = vunpack.c.h.b16 %v439
    %v2247 = vunpack.c.l.b16 %v440
    %v2248 = vunpack.c.h.b16 %v440
    %v2249 = vunpack.c.l.b16 %v441
    %v2250 = vunpack.c.h.b16 %v441
    %v2251 = vunpack.c.l.b16 %v442
    %v2252 = vunpack.c.h.b16 %v442
    %v2253 = vunpack.c.l.b16 %v443
    %v2254 = vunpack.c.h.b16 %v443
    %v2255 = vunpack.c.l.b16 %v444
    %v2256 = vunpack.c.h.b16 %v444
    %v2257 = vunpack.c.l.b16 %v445
    %v2258 = vunpack.c.h.b16 %v445
    %v2259 = vunpack.c.l.b16 %v446
    %v2260 = vunpack.c.h.b16 %v446
    %v2261 = vunpack.c.l.b16 %v447
    %v2262 = vunpack.c.h.b16 %v447
    %v2263 = vunpack.c.l.b16 %v448
    %v2264 = vunpack.c.h.b16 %v448
    %v2265 = vunpack.c.l.b16 %v449
    %v2266 = vunpack.c.h.b16 %v449
    %v2267 = vunpack.c.l.b16 %v450
    %v2268 = vunpack.c.h.b16 %v450
    %v2269 = vunpack.c.l.b16 %v451
    %v2270 = vunpack.c.h.b16 %v451
    %v2271 = vunpack.c.l.b16 %v452
    %v2272 = vunpack.c.h.b16 %v452
    %v2273 = vunpack.c.l.b16 %v453
    %v2274 = vunpack.c.h.b16 %v453
    %v2275 = vunpack.c.l.b16 %v454
    %v2276 = vunpack.c.h.b16 %v454
    %v2277 = vunpack.c.l.b16 %v455
    %v2278 = vunpack.c.h.b16 %v455
    %v2279 = vunpack.c.l.b16 %v456
    %v2280 = vunpack.c.h.b16 %v456
    %v2281 = vunpack.c.l.b16 %v457
    %v2282 = vunpack.c.h.b16 %v457
    %v2283 = vunpack.c.l.b16 %v458
    %v2284 = vunpack.c.h.b16 %v458
    %v2285 = vunpack.c.l.b16 %v459
    %v2286 = vunpack.c.h.b16 %v459
    %v2287 = vunpack.c.l.b16 %v460
    %v2288 = vunpack.c.h.b16 %v460
    %v2289 = vunpack.c.l.b16 %v461
    %v2290 = vunpack.c.h.b16 %v461
    %v2291 = vunpack.c.l.b16 %v462
    %v2292 = vunpack.c.h.b16 %v462
    %v2293 = vunpack.c.l.b16 %v463
    %v2294 = vunpack.c.h.b16 %v463
    %v2295 = vunpack.c.l.b16 %v464
    %v2296 = vunpack.c.h.b16 %v464
    %v2297 = vunpack.c.l.b16 %v465
    %v2298 = vunpack.c.h.b16 %v465
    %v2299 = vunpack.c.l.b16 %v466
    %v2300 = vunpack.c.h.b16 %v466
    %v2301 = vunpack.c.l.b16 %v467
    %v2302 = vunpack.c.h.b16 %v467
    %v2303 = vunpack.c.l.b16 %v468
    %v2304 = vunpack.c.h.b16 %v468
    %v2305 = vunpack.c.l.b16 %v469
    %v2306 = vunpack.c.h.b16 %v469
    %v2307 = vunpack.c.l.b16 %v470
    %v2308 = vunpack.c.h.b16 %v470
    %v2309 = vunpack.c.l.b16 %v471
    %v2310 = vunpack.c.h.b16 %v471
    %v2311 = vunpack.c.l.b16 %v472
    %v2312 = vunpack.c.h.b16 %v472
    %v2313 = vunpack.c.l.b16 %v473
    %v2314 = vunpack.c.h.b16 %v473
    %v2315 = vunpack.c.l.b16 %v474
    %v2316 = vunpack.c.h.b16 %v474
    %v2317 = vunpack.c.l.b16 %v475
    %v2318 = vunpack.c.h.b16 %v475
    %v2319 = vunpack.c.l.b16 %v476
    %v2320 = vunpack.c.h.b16 %v476
    %v2321 = vunpack.c.l.b16 %v477
    %v2322 = vunpack.c.h.b16 %v477
    %v2323 = vunpack.c.l.b16 %v478
    %v2324 = vunpack.c.h.b16 %v478
    %v2325 = vunpack.c.l.b16 %v479
    %v2326 = vunpack.c.h.b16 %v479
    %v2327 = vunpack.c.l.b16 %v480
    %v2328 = vunpack.c.h.b16 %v480
    %v2329 = vunpack.c.l.b16 %v481
    %v2330 = vunpack.c.h.b16 %v481
    %v2331 = vunpack.c.l.b16 %v482
    %v2332 = vunpack.c.h.b16 %v482
    %v2333 = vunpack.c.l.b16 %v483
    %v2334 = vunpack.c.h.b16 %v483
    %v2335 = vunpack.c.l.b16 %v484
    %v2336 = vunpack.c.h.b16 %v484
    %v2337 = vunpack.c.l.b16 %v485
    %v2338 = vunpack.c.h.b16 %v485
    %v2339 = vunpack.c.l.b16 %v486
    %v2340 = vunpack.c.h.b16 %v486
    %v2341 = vunpack.c.l.b16 %v487
    %v2342 = vunpack.c.h.b16 %v487
    %v2343 = vunpack.c.l.b16 %v488
    %v2344 = vunpack.c.h.b16 %v488
    %v2345 = vunpack.c.l.b16 %v489
    %v2346 = vunpack.c.h.b16 %v489
    %v2347 = vunpack.c.l.b16 %v490
    %v2348 = vunpack.c.h.b16 %v490
    %v2349 = vunpack.c.l.b16 %v491
    %v2350 = vunpack.c.h.b16 %v491
    %v2351 = vunpack.c.l.b16 %v492
    %v2352 = vunpack.c.h.b16 %v492
    %v2353 = vunpack.c.l.b16 %v493
    %v2354 = vunpack.c.h.b16 %v493
    %v2355 = vunpack.c.l.b16 %v494
    %v2356 = vunpack.c.h.b16 %v494
    %v2357 = vunpack.c.l.b16 %v495
    %v2358 = vunpack.c.h.b16 %v495
    %v2359 = vunpack.c.l.b16 %v496
    %v2360 = vunpack.c.h.b16 %v496
    %v2361 = vunpack.c.l.b16 %v497
    %v2362 = vunpack.c.h.b16 %v497
    %v2363 = vunpack.c.l.b16 %v498
    %v2364 = vunpack.c.h.b16 %v498
    %v2365 = vunpack.c.l.b16 %v499
    %v2366 = vunpack.c.h.b16 %v499
    %v2367 = vunpack.c.l.b16 %v500
    %v2368 = vunpack.c.h.b16 %v500
    %v2369 = vunpack.c.l.b16 %v501
    %v2370 = vunpack.c.h.b16 %v501
    %v2371 = vunpack.c.l.b16 %v502
    %v2372 = vunpack.c.h.b16 %v502
    %v2373 = vunpack.c.l.b16 %v503
    %v2374 = vunpack.c.h.b16 %v503
    %v2375 = vunpack.c.l.b16 %v504
    %v2376 = vunpack.c.h.b16 %v504
    %v2377 = vunpack.c.l.b16 %v505
    %v2378 = vunpack.c.h.b16 %v505
    %v2379 = vunpack.c.l.b16 %v506
    %v2380 = vunpack.c.h.b16 %v506
    %v2381 = vunpack.c.l.b16 %v507
    %v2382 = vunpack.c.h.b16 %v507
    %v2383 = vunpack.c.l.b16 %v508
    %v2384 = vunpack.c.h.b16 %v508
    %v2385 = vunpack.c.l.b16 %v509
    %v2386 = vunpack.c.h.b16 %v509
    %v2387 = vunpack.c.l.b16 %v510
    %v2388 = vunpack.c.h.b16 %v510
    %v2389 = vunpack.c.l.b16 %v511
    %v2390 = vunpack.c.h.b16 %v511
    %v2391 = vunpack.c.l.b16 %v512
    %v2392 = vunpack.c.h.b16 %v512
    %v2393 = vunpack.c.l.b16 %v513
    %v2394 = vunpack.c.h.b16 %v513
    %v2395 = vunpack.c.l.b16 %v514
    %v2396 = vunpack.c.h.b16 %v514
    %v2397 = vunpack.c.l.b16 %v515
    %v2398 = vunpack.c.h.b16 %v515
    %v2399 = vunpack.c.l.b16 %v516
    %v2400 = vunpack.c.h.b16 %v516
    %v2401 = vunpack.c.l.b16 %v517
    %v2402 = vunpack.c.h.b16 %v517
    %v2403 = vunpack.c.l.b16 %v518
    %v2404 = vunpack.c.h.b16 %v518
    %v2405 = vunpack.c.l.b16 %v519
    %v2406 = vunpack.c.h.b16 %v519
    %v2407 = vunpack.c.l.b16 %v520
    %v2408 = vunpack.c.h.b16 %v520
    %v2409 = vunpack.c.l.b16 %v521
    %v2410 = vunpack.c.h.b16 %v521
    %v2411 = vunpack.c.l.b16 %v522
    %v2412 = vunpack.c.h.b16 %v522
    %v2413 = vunpack.c.l.b16 %v523
    %v2414 = vunpack.c.h.b16 %v523
    %v2415 = vunpack.c.l.b16 %v524
    %v2416 = vunpack.c.h.b16 %v524
    %v2417 = vunpack.c.l.b16 %v525
    %v2418 = vunpack.c.h.b16 %v525
    %v2419 = vunpack.c.l.b16 %v526
    %v2420 = vunpack.c.h.b16 %v526
    %v2421 = vunpack.c.l.b16 %v527
    %v2422 = vunpack.c.h.b16 %v527
    %v2423 = vunpack.c.l.b16 %v528
    %v2424 = vunpack.c.h.b16 %v528
    %v2425 = vunpack.c.l.b16 %v529
    %v2426 = vunpack.c.h.b16 %v529
    %v2427 = vunpack.c.l.b16 %v530
    %v2428 = vunpack.c.h.b16 %v530
    %v2429 = vunpack.c.l.b16 %v531
    %v2430 = vunpack.c.h.b16 %v531
    %v2431 = vunpack.c.l.b16 %v532
    %v2432 = vunpack.c.h.b16 %v532
    %v2433 = vunpack.c.l.b16 %v533
    %v2434 = vunpack.c.h.b16 %v533
    %v2435 = vunpack.c.l.b16 %v534
    %v2436 = vunpack.c.h.b16 %v534
    %v2437 = vunpack.c.l.b16 %v535
    %v2438 = vunpack.c.h.b16 %v535
    %v2439 = vunpack.c.l.b16 %v536
    %v2440 = vunpack.c.h.b16 %v536
    %v2441 = vunpack.c.l.b16 %v537
    %v2442 = vunpack.c.h.b16 %v537
    %v2443 = vunpack.c.l.b16 %v538
    %v2444 = vunpack.c.h.b16 %v538
    %v2445 = vunpack.c.l.b16 %v539
    %v2446 = vunpack.c.h.b16 %v539
    %v2447 = vunpack.c.l.b16 %v540
    %v2448 = vunpack.c.h.b16 %v540
    %v2449 = vunpack.c.l.b16 %v541
    %v2450 = vunpack.c.h.b16 %v541
    %v2451 = vunpack.c.l.b16 %v542
    %v2452 = vunpack.c.h.b16 %v542
    %v2453 = vunpack.c.l.b16 %v543
    %v2454 = vunpack.c.h.b16 %v543
    %v2455 = vunpack.c.l.b16 %v544
    %v2456 = vunpack.c.h.b16 %v544
    %v2457 = vunpack.c.l.b16 %v545
    %v2458 = vunpack.c.h.b16 %v545
    %v2459 = vunpack.c.l.b16 %v546
    %v2460 = vunpack.c.h.b16 %v546
    %v2461 = vunpack.c.l.b16 %v547
    %v2462 = vunpack.c.h.b16 %v547
    %v2463 = vunpack.c.l.b16 %v548
    %v2464 = vunpack.c.h.b16 %v548
    %v2465 = vunpack.c.l.b16 %v549
    %v2466 = vunpack.c.h.b16 %v549
    %v2467 = vunpack.c.l.b16 %v550
    %v2468 = vunpack.c.h.b16 %v550
    %v2469 = vunpack.c.l.b16 %v551
    %v2470 = vunpack.c.h.b16 %v551
    %v2471 = vunpack.c.l.b16 %v552
    %v2472 = vunpack.c.h.b16 %v552
    %v2473 = vunpack.c.l.b16 %v553
    %v2474 = vunpack.c.h.b16 %v553
    %v2475 = vunpack.c.l.b16 %v554
    %v2476 = vunpack.c.h.b16 %v554
    %v2477 = vunpack.c.l.b16 %v555
    %v2478 = vunpack.c.h.b16 %v555
    %v2479 = vunpack.c.l.b16 %v556
    %v2480 = vunpack.c.h.b16 %v556
    %v2481 = vunpack.c.l.b16 %v557
    %v2482 = vunpack.c.h.b16 %v557
    %v2483 = vunpack.c.l.b16 %v558
    %v2484 = vunpack.c.h.b16 %v558
    %v2485 = vunpack.c.l.b16 %v559
    %v2486 = vunpack.c.h.b16 %v559
    %v2487 = vunpack.c.l.b16 %v560
    %v2488 = vunpack.c.h.b16 %v560
    %v2489 = vunpack.c.l.b16 %v561
    %v2490 = vunpack.c.h.b16 %v561
    %v2491 = vunpack.c.l.b16 %v562
    %v2492 = vunpack.c.h.b16 %v562
    %v2493 = vunpack.c.l.b16 %v563
    %v2494 = vunpack.c.h.b16 %v563
    %v2495 = vunpack.c.l.b16 %v564
    %v2496 = vunpack.c.h.b16 %v564
    %v2497 = vunpack.c.l.b16 %v565
    %v2498 = vunpack.c.h.b16 %v565
    %v2499 = vunpack.c.l.b16 %v566
    %v2500 = vunpack.c.h.b16 %v566
    %v2501 = vunpack.c.l.b16 %v567
    %v2502 = vunpack.c.h.b16 %v567
    %v2503 = vunpack.c.l.b16 %v568
    %v2504 = vunpack.c.h.b16 %v568
    %v2505 = vunpack.c.l.b16 %v569
    %v2506 = vunpack.c.h.b16 %v569
    %v2507 = vunpack.c.l.b16 %v570
    %v2508 = vunpack.c.h.b16 %v570
    %v2509 = vunpack.c.l.b16 %v571
    %v2510 = vunpack.c.h.b16 %v571
    %v2511 = vunpack.c.l.b16 %v572
    %v2512 = vunpack.c.h.b16 %v572
    %v2513 = vunpack.c.l.b16 %v573
    %v2514 = vunpack.c.h.b16 %v573
    %v2515 = vunpack.c.l.b16 %v574
    %v2516 = vunpack.c.h.b16 %v574
    %v2517 = vunpack.c.l.b16 %v575
    %v2518 = vunpack.c.h.b16 %v575
    %v2519 = vunpack.c.l.b16 %v576
    %v2520 = vunpack.c.h.b16 %v576
    %v2521 = vunpack.c.l.b16 %v577
    %v2522 = vunpack.c.h.b16 %v577
    %v2523 = vunpack.c.l.b16 %v578
    %v2524 = vunpack.c.h.b16 %v578
    %v2525 = vunpack.c.l.b16 %v579
    %v2526 = vunpack.c.h.b16 %v579
    %v2527 = vunpack.c.l.b16 %v580
    %v2528 = vunpack.c.h.b16 %v580
    %v2529 = vunpack.c.l.b16 %v581
    %v2530 = vunpack.c.h.b16 %v581
    %v2531 = vunpack.c.l.b16 %v582
    %v2532 = vunpack.c.h.b16 %v582
    %v2533 = vunpack.c.l.b16 %v583
    %v2534 = vunpack.c.h.b16 %v583
    %v2535 = vunpack.c.l.b16 %v584
    %v2536 = vunpack.c.h.b16 %v584
    %v2537 = vunpack.c.l.b16 %v585
    %v2538 = vunpack.c.h.b16 %v585
    %v2539 = vunpack.c.l.b16 %v586
    %v2540 = vunpack.c.h.b16 %v586
    %v2541 = vunpack.c.l.b16 %v587
    %v2542 = vunpack.c.h.b16 %v587
    %v2543 = vunpack.c.l.b16 %v588
    %v2544 = vunpack.c.h.b16 %v588
    %v2545 = vunpack.c.l.b16 %v589
    %v2546 = vunpack.c.h.b16 %v589
    %v2547 = vunpack.c.l.b16 %v590
    %v2548 = vunpack.c.h.b16 %v590
    %v2549 = vunpack.c.l.b16 %v591
    %v2550 = vunpack.c.h.b16 %v591
    %v2551 = vunpack.c.l.b16 %v592
    %v2552 = vunpack.c.h.b16 %v592
    %v2553 = vunpack.c.l.b16 %v593
    %v2554 = vunpack.c.h.b16 %v593
    %v2555 = vunpack.c.l.b16 %v594
    %v2556 = vunpack.c.h.b16 %v594
    %v2557 = vunpack.c.l.b16 %v595
    %v2558 = vunpack.c.h.b16 %v595
    %v2559 = vunpack.c.l.b16 %v596
    %v2560 = vunpack.c.h.b16 %v596
    %v2561 = vunpack.c.l.b16 %v597
    %v2562 = vunpack.c.h.b16 %v597
    %v2563 = vunpack.c.l.b16 %v598
    %v2564 = vunpack.c.h.b16 %v598
    %v2565 = vunpack.c.l.b16 %v599
    %v2566 = vunpack.c.h.b16 %v599
    %v2567 = vunpack.c.l.b16 %v600
    %v2568 = vunpack.c.h.b16 %v600
    %v2569 = vunpack.c.l.b16 %v601
    %v2570 = vunpack.c.h.b16 %v601
    %v2571 = vunpack.c.l.b16 %v602
    %v2572 = vunpack.c.h.b16 %v602
    %v2573 = vunpack.c.l.b16 %v603
    %v2574 = vunpack.c.h.b16 %v603
    %v2575 = vunpack.c.l.b16 %v604
    %v2576 = vunpack.c.h.b16 %v604
    %v2577 = vunpack.c.l.b16 %v605
    %v2578 = vunpack.c.h.b16 %v605
    %v2579 = vunpack.c.l.b16 %v606
    %v2580 = vunpack.c.h.b16 %v606
    %v2581 = vunpack.c.l.b16 %v607
    %v2582 = vunpack.c.h.b16 %v607
    %v2583 = vunpack.c.l.b16 %v608
    %v2584 = vunpack.c.h.b16 %v608
    %v2585 = vunpack.c.l.b16 %v609
    %v2586 = vunpack.c.h.b16 %v609
    %v2587 = vunpack.c.l.b16 %v610
    %v2588 = vunpack.c.h.b16 %v610
    %v2589 = vunpack.c.l.b16 %v611
    %v2590 = vunpack.c.h.b16 %v611
    %v2591 = vunpack.c.l.b16 %v612
    %v2592 = vunpack.c.h.b16 %v612
    %v2593 = vunpack.c.l.b16 %v613
    %v2594 = vunpack.c.h.b16 %v613
    %v2595 = vunpack.c.l.b16 %v614
    %v2596 = vunpack.c.h.b16 %v614
    %v2597 = vunpack.c.l.b16 %v615
    %v2598 = vunpack.c.h.b16 %v615
    %v2599 = vunpack.c.l.b16 %v616
    %v2600 = vunpack.c.h.b16 %v616
    %v2601 = vunpack.c.l.b16 %v617
    %v2602 = vunpack.c.h.b16 %v617
    %v2603 = vunpack.c.l.b16 %v618
    %v2604 = vunpack.c.h.b16 %v618
    %v2605 = vunpack.c.l.b16 %v619
    %v2606 = vunpack.c.h.b16 %v619
    %v2607 = vunpack.c.l.b16 %v620
    %v2608 = vunpack.c.h.b16 %v620
    %v2609 = vunpack.c.l.b16 %v621
    %v2610 = vunpack.c.h.b16 %v621
    %v2611 = vunpack.c.l.b16 %v622
    %v2612 = vunpack.c.h.b16 %v622
    %v2613 = vunpack.c.l.b16 %v623
    %v2614 = vunpack.c.h.b16 %v623
    %v2615 = vunpack.c.l.b16 %v624
    %v2616 = vunpack.c.h.b16 %v624
    %v2617 = vunpack.c.l.b16 %v625
    %v2618 = vunpack.c.h.b16 %v625
    %v2619 = vunpack.c.l.b16 %v626
    %v2620 = vunpack.c.h.b16 %v626
    %v2621 = vunpack.c.l.b16 %v627
    %v2622 = vunpack.c.h.b16 %v627
    %v2623 = vunpack.c.l.b16 %v628
    %v2624 = vunpack.c.h.b16 %v628
    %v2625 = vunpack.c.l.b16 %v629
    %v2626 = vunpack.c.h.b16 %v629
    %v2627 = vunpack.c.l.b16 %v630
    %v2628 = vunpack.c.h.b16 %v630
    %v2629 = vunpack.c.l.b16 %v631
    %v2630 = vunpack.c.h.b16 %v631
    %v2631 = vunpack.c.l.b16 %v632
    %v2632 = vunpack.c.h.b16 %v632
    %v2633 = vunpack.c.l.b16 %v633
    %v2634 = vunpack.c.h.b16 %v633
    %v2635 = vunpack.c.l.b16 %v634
    %v2636 = vunpack.c.h.b16 %v634
    %v2637 = vunpack.c.l.b16 %v635
    %v2638 = vunpack.c.h.b16 %v635
    %v2639 = vunpack.c.l.b16 %v636
    %v2640 = vunpack.c.h.b16 %v636
    %v2641 = vunpack.c.l.b16 %v637
    %v2642 = vunpack.c.h.b16 %v637
    %v2643 = vunpack.c.l.b16 %v638
    %v2644 = vunpack.c.h.b16 %v638
    %v2645 = vunpack.c.l.b16 %v639
    %v2646 = vunpack.c.h.b16 %v639
    %v2647 = vunpack.c.l.b16 %v640
    %v2648 = vunpack.c.h.b16 %v640
    %v2649 = vunpack.c.l.b16 %v641
    %v2650 = vunpack.c.h.b16 %v641
    %v2651 = vunpack.c.l.b16 %v642
    %v2652 = vunpack.c.h.b16 %v642
    %v2653 = vunpack.c.l.b16 %v643
    %v2654 = vunpack.c.h.b16 %v643
    %v2655 = vunpack.c.l.b16 %v644
    %v2656 = vunpack.c.h.b16 %v644
    %v2657 = vunpack.c.l.b16 %v645
    %v2658 = vunpack.c.h.b16 %v645
    %v2659 = vunpack.c.l.b16 %v646
    %v2660 = vunpack.c.h.b16 %v646
    %v2661 = vunpack.c.l.b16 %v647
    %v2662 = vunpack.c.h.b16 %v647
    %v2663 = vunpack.c.l.b16 %v648
    %v2664 = vunpack.c.h.b16 %v648
    %v2665 = vunpack.c.l.b16 %v649
    %v2666 = vunpack.c.h.b16 %v649
    %v2667 = vunpack.c.l.b16 %v650
    %v2668 = vunpack.c.h.b16 %v650
    %v2669 = vunpack.c.l.b16 %v651
    %v2670 = vunpack.c.h.b16 %v651
    %v2671 = vunpack.c.l.b16 %v652
    %v2672 = vunpack.c.h.b16 %v652
    %v2673 = vunpack.c.l.b16 %v653
    %v2674 = vunpack.c.h.b16 %v653
    %v2675 = vunpack.c.l.b16 %v654
    %v2676 = vunpack.c.h.b16 %v654
    %v2677 = vunpack.c.l.b16 %v655
    %v2678 = vunpack.c.h.b16 %v655
    %v2679 = vunpack.c.l.b16 %v656
    %v2680 = vunpack.c.h.b16 %v656
    %v2681 = vunpack.c.l.b16 %v657
    %v2682 = vunpack.c.h.b16 %v657
    %v2683 = vunpack.c.l.b16 %v658
    %v2684 = vunpack.c.h.b16 %v658
    %v2685 = vunpack.c.l.b16 %v659
    %v2686 = vunpack.c.h.b16 %v659
    %v2687 = vunpack.c.l.b16 %v660
    %v2688 = vunpack.c.h.b16 %v660
    %v2689 = vunpack.c.l.b16 %v661
    %v2690 = vunpack.c.h.b16 %v661
    %v2691 = vunpack.c.l.b16 %v662
    %v2692 = vunpack.c.h.b16 %v662
    %v2693 = vunpack.c.l.b16 %v663
    %v2694 = vunpack.c.h.b16 %v663
    %v2695 = vunpack.c.l.b16 %v664
    %v2696 = vunpack.c.h.b16 %v664
    %v2697 = vunpack.c.l.b16 %v665
    %v2698 = vunpack.c.h.b16 %v665
    %v2699 = vunpack.c.l.b16 %v666
    %v2700 = vunpack.c.h.b16 %v666
    %v2701 = vunpack.c.l.b16 %v667
    %v2702 = vunpack.c.h.b16 %v667
    %v2703 = vunpack.c.l.b16 %v668
    %v2704 = vunpack.c.h.b16 %v668
    %v2705 = vunpack.c.l.b16 %v669
    %v2706 = vunpack.c.h.b16 %v669
    %v2707 = vunpack.c.l.b16 %v670
    %v2708 = vunpack.c.h.b16 %v670
    %v2709 = vunpack.c.l.b16 %v671
    %v2710 = vunpack.c.h.b16 %v671
    %v2711 = vunpack.c.l.b16 %v672
    %v2712 = vunpack.c.h.b16 %v672
    %v2713 = vunpack.c.l.b16 %v673
    %v2714 = vunpack.c.h.b16 %v673
    %v2715 = vunpack.c.l.b16 %v674
    %v2716 = vunpack.c.h.b16 %v674
    %v2717 = vunpack.c.l.b16 %v675
    %v2718 = vunpack.c.h.b16 %v675
    %v2719 = vunpack.c.l.b16 %v676
    %v2720 = vunpack.c.h.b16 %v676
    %v2721 = vunpack.c.l.b16 %v677
    %v2722 = vunpack.c.h.b16 %v677
    %v2723 = vunpack.c.l.b16 %v678
    %v2724 = vunpack.c.h.b16 %v678
    %v2725 = vunpack.c.l.b16 %v679
    %v2726 = vunpack.c.h.b16 %v679
    %v2727 = vunpack.c.l.b16 %v680
    %v2728 = vunpack.c.h.b16 %v680
    %v2729 = vunpack.c.l.b16 %v681
    %v2730 = vunpack.c.h.b16 %v681
    %v2731 = vunpack.c.l.b16 %v682
    %v2732 = vunpack.c.h.b16 %v682
    %v2733 = vunpack.c.l.b16 %v683
    %v2734 = vunpack.c.h.b16 %v683
    %v2735 = vunpack.c.l.b16 %v684
    %v2736 = vunpack.c.h.b16 %v684
    %v2737 = vunpack.c.l.b16 %v685
    %v2738 = vunpack.c.h.b16 %v685
    %v2739 = vunpack.c.l.b16 %v686
    %v2740 = vunpack.c.h.b16 %v686
    %v2741 = vunpack.c.l.b16 %v687
    %v2742 = vunpack.c.h.b16 %v687
    %v2743 = vunpack.c.l.b16 %v688
    %v2744 = vunpack.c.h.b16 %v688
    %v2745 = vunpack.c.l.b16 %v689
    %v2746 = vunpack.c.h.b16 %v689
    %v2747 = vunpack.c.l.b16 %v690
    %v2748 = vunpack.c.h.b16 %v690
    %v2749 = vunpack.c.l.b16 %v691
    %v2750 = vunpack.c.h.b16 %v691
    %v2751 = vunpack.c.l.b16 %v692
    %v2752 = vunpack.c.h.b16 %v692
    %v2753 = vunpack.c.l.b16 %v693
    %v2754 = vunpack.c.h.b16 %v693
    %v2755 = vunpack.c.l.b16 %v694
    %v2756 = vunpack.c.h.b16 %v694
    %v2757 = vunpack.c.l.b16 %v695
    %v2758 = vunpack.c.h.b16 %v695
    %v2759 = vunpack.c.l.b16 %v696
    %v2760 = vunpack.c.h.b16 %v696
    %v2761 = vunpack.c.l.b16 %v697
    %v2762 = vunpack.c.h.b16 %v697
    %v2763 = vunpack.c.l.b16 %v698
    %v2764 = vunpack.c.h.b16 %v698
    %v2765 = vunpack.c.l.b16 %v699
    %v2766 = vunpack.c.h.b16 %v699
    %v2767 = vunpack.c.l.b16 %v700
    %v2768 = vunpack.c.h.b16 %v700
    %v2769 = vunpack.c.l.b16 %v701
    %v2770 = vunpack.c.h.b16 %v701
    %v2771 = vunpack.c.l.b16 %v702
    %v2772 = vunpack.c.h.b16 %v702
    %v2773 = vunpack.c.l.b16 %v703
    %v2774 = vunpack.c.h.b16 %v703
    %v2775 = vunpack.c.l.b16 %v704
    %v2776 = vunpack.c.h.b16 %v704
    %v2777 = vunpack.c.l.b16 %v705
    %v2778 = vunpack.c.h.b16 %v705
    %v2779 = vunpack.c.l.b16 %v706
    %v2780 = vunpack.c.h.b16 %v706
    %v2781 = vunpack.c.l.b16 %v707
    %v2782 = vunpack.c.h.b16 %v707
    %v2783 = vunpack.c.l.b16 %v708
    %v2784 = vunpack.c.h.b16 %v708
    %v2785 = vunpack.c.l.b16 %v709
    %v2786 = vunpack.c.h.b16 %v709
    %v2787 = vunpack.c.l.b16 %v710
    %v2788 = vunpack.c.h.b16 %v710
    %v2789 = vunpack.c.l.b16 %v711
    %v2790 = vunpack.c.h.b16 %v711
    %v2791 = vunpack.c.l.b16 %v712
    %v2792 = vunpack.c.h.b16 %v712
    %v2793 = vunpack.c.l.b16 %v713
    %v2794 = vunpack.c.h.b16 %v713
    %v2795 = vunpack.c.l.b16 %v714
    %v2796 = vunpack.c.h.b16 %v714
    %v2797 = vunpack.c.l.b16 %v715
    %v2798 = vunpack.c.h.b16 %v715
    %v2799 = vunpack.c.l.b16 %v716
    %v2800 = vunpack.c.h.b16 %v716
    %v2801 = vunpack.c.l.b16 %v717
    %v2802 = vunpack.c.h.b16 %v717
    %v2803 = vunpack.c.l.b16 %v718
    %v2804 = vunpack.c.h.b16 %v718
    %v2805 = vunpack.c.l.b16 %v719
    %v2806 = vunpack.c.h.b16 %v719
    %v2807 = vunpack.c.l.b16 %v720
    %v2808 = vunpack.c.h.b16 %v720
    %v2809 = vunpack.c.l.b16 %v721
    %v2810 = vunpack.c.h.b16 %v721
    %v2811 = vunpack.c.l.b16 %v722
    %v2812 = vunpack.c.h.b16 %v722
    %v2813 = vunpack.c.l.b16 %v723
    %v2814 = vunpack.c.h.b16 %v723
    %v2815 = vunpack.c.l.b16 %v724
    %v2816 = vunpack.c.h.b16 %v724
    %v2817 = vunpack.c.l.b16 %v725
    %v2818 = vunpack.c.h.b16 %v725
    %v2819 = vunpack.c.l.b16 %v726
    %v2820 = vunpack.c.h.b16 %v726
    %v2821 = vunpack.c.l.b16 %v727
    %v2822 = vunpack.c.h.b16 %v727
    %v2823 = vunpack.c.l.b16 %v728
    %v2824 = vunpack.c.h.b16 %v728
    %v2825 = vunpack.c.l.b16 %v729
    %v2826 = vunpack.c.h.b16 %v729
    %v2827 = vunpack.c.l.b16 %v730
    %v2828 = vunpack.c.h.b16 %v730
    %v2829 = vunpack.c.l.b16 %v731
    %v2830 = vunpack.c.h.b16 %v731
    %v2831 = vunpack.c.l.b16 %v732
    %v2832 = vunpack.c.h.b16 %v732
    %v2833 = vunpack.c.l.b16 %v733
    %v2834 = vunpack.c.h.b16 %v733
    %v2835 = vunpack.c.l.b16 %v734
    %v2836 = vunpack.c.h.b16 %v734
    %v2837 = vunpack.c.l.b16 %v735
    %v2838 = vunpack.c.h.b16 %v735
    %v2839 = vunpack.c.l.b16 %v736
    %v2840 = vunpack.c.h.b16 %v736
    %v2841 = vunpack.c.l.b16 %v737
    %v2842 = vunpack.c.h.b16 %v737
    %v2843 = vunpack.c.l.b16 %v738
    %v2844 = vunpack.c.h.b16 %v738
    %v2845 = vunpack.c.l.b16 %v739
    %v2846 = vunpack.c.h.b16 %v739
    %v2847 = vunpack.c.l.b16 %v740
    %v2848 = vunpack.c.h.b16 %v740
    %v2849 = vunpack.c.l.b16 %v741
    %v2850 = vunpack.c.h.b16 %v741
    %v2851 = vunpack.c.l.b16 %v742
    %v2852 = vunpack.c.h.b16 %v742
    %v2853 = vunpack.c.l.b16 %v743
    %v2854 = vunpack.c.h.b16 %v743
    %v2855 = vunpack.c.l.b16 %v744
    %v2856 = vunpack.c.h.b16 %v744
    %v2857 = vunpack.c.l.b16 %v745
    %v2858 = vunpack.c.h.b16 %v745
    %v2859 = vunpack.c.l.b16 %v746
    %v2860 = vunpack.c.h.b16 %v746
    %v2861 = vunpack.c.l.b16 %v747
    %v2862 = vunpack.c.h.b16 %v747
    %v2863 = vunpack.c.l.b16 %v748
    %v2864 = vunpack.c.h.b16 %v748
    %v2865 = vunpack.c.l.b16 %v749
    %v2866 = vunpack.c.h.b16 %v749
    %v2867 = vunpack.c.l.b16 %v750
    %v2868 = vunpack.c.h.b16 %v750
    %v2869 = vunpack.c.l.b16 %v751
    %v2870 = vunpack.c.h.b16 %v751
    %v2871 = vunpack.c.l.b16 %v752
    %v2872 = vunpack.c.h.b16 %v752
    %v2873 = vunpack.c.l.b16 %v753
    %v2874 = vunpack.c.h.b16 %v753
    %v2875 = vunpack.c.l.b16 %v754
    %v2876 = vunpack.c.h.b16 %v754
    %v2877 = vunpack.c.l.b16 %v755
    %v2878 = vunpack.c.h.b16 %v755
    %v2879 = vunpack.c.l.b16 %v756
    %v2880 = vunpack.c.h.b16 %v756
    %v2881 = vunpack.c.l.b16 %v757
    %v2882 = vunpack.c.h.b16 %v757
    %v2883 = vunpack.c.l.b16 %v758
    %v2884 = vunpack.c.h.b16 %v758
    %v2885 = vunpack.c.l.b16 %v759
    %v2886 = vunpack.c.h.b16 %v759
    %v2887 = vunpack.c.l.b16 %v760
    %v2888 = vunpack.c.h.b16 %v760
    %v2889 = vunpack.c.l.b16 %v761
    %v2890 = vunpack.c.h.b16 %v761
    %v2891 = vunpack.c.l.b16 %v762
    %v2892 = vunpack.c.h.b16 %v762
    %v2893 = vunpack.c.l.b16 %v763
    %v2894 = vunpack.c.h.b16 %v763
    %v2895 = vunpack.c.l.b16 %v764
    %v2896 = vunpack.c.h.b16 %v764
    %v2897 = vunpack.c.l.b16 %v765
    %v2898 = vunpack.c.h.b16 %v765
    %v2899 = vunpack.c.l.b16 %v766
    %v2900 = vunpack.c.h.b16 %v766
    %v2901 = vunpack.c.l.b16 %v767
    %v2902 = vunpack.c.h.b16 %v767
    %v2903 = vunpack.c.l.b16 %v768
    %v2904 = vunpack.c.h.b16 %v768
    %v2905 = vunpack.c.l.b16 %v769
    %v2906 = vunpack.c.h.b16 %v769
    %v2907 = vunpack.c.l.b16 %v770
    %v2908 = vunpack.c.h.b16 %v770
    %v2909 = vunpack.c.l.b16 %v771
    %v2910 = vunpack.c.h.b16 %v771
    %v2911 = vunpack.c.l.b16 %v772
    %v2912 = vunpack.c.h.b16 %v772
    %v2913 = vunpack.c.l.b16 %v773
    %v2914 = vunpack.c.h.b16 %v773
    %v2915 = vunpack.c.l.b16 %v774
    %v2916 = vunpack.c.h.b16 %v774
    %v2917 = vunpack.c.l.b16 %v775
    %v2918 = vunpack.c.h.b16 %v775
    %v2919 = vunpack.c.l.b16 %v776
    %v2920 = vunpack.c.h.b16 %v776
    %v2921 = vunpack.c.l.b16 %v777
    %v2922 = vunpack.c.h.b16 %v777
    %v2923 = vunpack.c.l.b16 %v778
    %v2924 = vunpack.c.h.b16 %v778
    %v2925 = vunpack.c.l.b16 %v779
    %v2926 = vunpack.c.h.b16 %v779
    %v2927 = vunpack.c.l.b16 %v780
    %v2928 = vunpack.c.h.b16 %v780
    %v2929 = vunpack.c.l.b16 %v781
    %v2930 = vunpack.c.h.b16 %v781
    %v2931 = vunpack.c.l.b16 %v782
    %v2932 = vunpack.c.h.b16 %v782
    %v2933 = vunpack.c.l.b16 %v783
    %v2934 = vunpack.c.h.b16 %v783
    %v2935 = vunpack.c.l.b16 %v784
    %v2936 = vunpack.c.h.b16 %v784
    %v2937 = vunpack.c.l.b16 %v785
    %v2938 = vunpack.c.h.b16 %v785
    %v2939 = vunpack.c.l.b16 %v786
    %v2940 = vunpack.c.h.b16 %v786
    %v2941 = vunpack.c.l.b16 %v787
    %v2942 = vunpack.c.h.b16 %v787
    %v2943 = vunpack.c.l.b16 %v788
    %v2944 = vunpack.c.h.b16 %v788
    %v2945 = vunpack.c.l.b16 %v789
    %v2946 = vunpack.c.h.b16 %v789
    %v2947 = vunpack.c.l.b16 %v790
    %v2948 = vunpack.c.h.b16 %v790
    %v2949 = vunpack.c.l.b16 %v791
    %v2950 = vunpack.c.h.b16 %v791
    %v2951 = vunpack.c.l.b16 %v792
    %v2952 = vunpack.c.h.b16 %v792
    %v2953 = vunpack.c.l.b16 %v793
    %v2954 = vunpack.c.h.b16 %v793
    %v2955 = vunpack.c.l.b16 %v794
    %v2956 = vunpack.c.h.b16 %v794
    %v2957 = vunpack.c.l.b16 %v795
    %v2958 = vunpack.c.h.b16 %v795
    %v2959 = vunpack.c.l.b16 %v796
    %v2960 = vunpack.c.h.b16 %v796
    %v2961 = vunpack.c.l.b16 %v797
    %v2962 = vunpack.c.h.b16 %v797
    %v2963 = vunpack.c.l.b16 %v798
    %v2964 = vunpack.c.h.b16 %v798
    %v2965 = vunpack.c.l.b16 %v799
    %v2966 = vunpack.c.h.b16 %v799
    %v2967 = vunpack.c.l.b16 %v800
    %v2968 = vunpack.c.h.b16 %v800
    %v2969 = vunpack.c.l.b16 %v801
    %v2970 = vunpack.c.h.b16 %v801
    %v2971 = vunpack.c.l.b16 %v802
    %v2972 = vunpack.c.h.b16 %v802
    %v2973 = vunpack.c.l.b16 %v803
    %v2974 = vunpack.c.h.b16 %v803
    %v2975 = vunpack.c.l.b16 %v804
    %v2976 = vunpack.c.h.b16 %v804
    %v2977 = vunpack.c.l.b16 %v805
    %v2978 = vunpack.c.h.b16 %v805
    %v2979 = vunpack.c.l.b16 %v806
    %v2980 = vunpack.c.h.b16 %v806
    %v2981 = vunpack.c.l.b16 %v807
    %v2982 = vunpack.c.h.b16 %v807
    %v2983 = vunpack.c.l.b16 %v808
    %v2984 = vunpack.c.h.b16 %v808
    %v2985 = vunpack.c.l.b16 %v809
    %v2986 = vunpack.c.h.b16 %v809
    %v2987 = vunpack.c.l.b16 %v810
    %v2988 = vunpack.c.h.b16 %v810
    %v2989 = vunpack.c.l.b16 %v811
    %v2990 = vunpack.c.h.b16 %v811
    %v2991 = vunpack.c.l.b16 %v812
    %v2992 = vunpack.c.h.b16 %v812
    %v2993 = vunpack.c.l.b16 %v813
    %v2994 = vunpack.c.h.b16 %v813
    %v2995 = vunpack.c.l.b16 %v814
    %v2996 = vunpack.c.h.b16 %v814
    %v2997 = vunpack.c.l.b16 %v815
    %v2998 = vunpack.c.h.b16 %v815
    %v2999 = vunpack.c.l.b16 %v816
    %v3000 = vunpack.c.h.b16 %v816
    %v3001 = vunpack.c.l.b16 %v817
    %v3002 = vunpack.c.h.b16 %v817
    %v3003 = vunpack.c.l.b16 %v818
    %v3004 = vunpack.c.h.b16 %v818
    %v3005 = vunpack.c.l.b16 %v819
    %v3006 = vunpack.c.h.b16 %v819
    %v3007 = vunpack.c.l.b16 %v820
    %v3008 = vunpack.c.h.b16 %v820
    %v3009 = vunpack.c.l.b16 %v821
    %v3010 = vunpack.c.h.b16 %v821
    %v3011 = vunpack.c.l.b16 %v822
    %v3012 = vunpack.c.h.b16 %v822
    %v3013 = vunpack.c.l.b16 %v823
    %v3014 = vunpack.c.h.b16 %v823
    %v3015 = vunpack.c.l.b16 %v824
    %v3016 = vunpack.c.h.b16 %v824
    %v3017 = vunpack.c.l.b16 %v825
    %v3018 = vunpack.c.h.b16 %v825
    %v3019 = vunpack.c.l.b16 %v826
    %v3020 = vunpack.c.h.b16 %v826
    %v3021 = vunpack.c.l.b16 %v827
    %v3022 = vunpack.c.h.b16 %v827
    %v3023 = vunpack.c.l.b16 %v828
    %v3024 = vunpack.c.h.b16 %v828
    %v3025 = vunpack.c.l.b16 %v829
    %v3026 = vunpack.c.h.b16 %v829
    %v3027 = vunpack.c.l.b16 %v830
    %v3028 = vunpack.c.h.b16 %v830
    %v3029 = vunpack.c.l.b16 %v831
    %v3030 = vunpack.c.h.b16 %v831
    %v3031 = vunpack.c.l.b16 %v832
    %v3032 = vunpack.c.h.b16 %v832
    %v3033 = vunpack.c.l.b16 %v833
    %v3034 = vunpack.c.h.b16 %v833
    %v3035 = vunpack.c.l.b16 %v834
    %v3036 = vunpack.c.h.b16 %v834
    %v3037 = vunpack.c.l.b16 %v835
    %v3038 = vunpack.c.h.b16 %v835
    %v3039 = vunpack.c.l.b16 %v836
    %v3040 = vunpack.c.h.b16 %v836
    %v3041 = vunpack.c.l.b16 %v837
    %v3042 = vunpack.c.h.b16 %v837
    %v3043 = vunpack.c.l.b16 %v838
    %v3044 = vunpack.c.h.b16 %v838
    %v3045 = vunpack.c.l.b16 %v839
    %v3046 = vunpack.c.h.b16 %v839
    %v3047 = vunpack.c.l.b16 %v840
    %v3048 = vunpack.c.h.b16 %v840
    %v3049 = vunpack.c.l.b16 %v841
    %v3050 = vunpack.c.h.b16 %v841
    %v3051 = vunpack.c.l.b16 %v842
    %v3052 = vunpack.c.h.b16 %v842
    %v3053 = vunpack.c.l.b16 %v843
    %v3054 = vunpack.c.h.b16 %v843
    %v3055 = vunpack.c.l.b16 %v844
    %v3056 = vunpack.c.h.b16 %v844
    %v3057 = vunpack.c.l.b16 %v845
    %v3058 = vunpack.c.h.b16 %v845
    %v3059 = vunpack.c.l.b16 %v846
    %v3060 = vunpack.c.h.b16 %v846
    %v3061 = vunpack.c.l.b16 %v847
    %v3062 = vunpack.c.h.b16 %v847
    %v3063 = vunpack.c.l.b16 %v848
    %v3064 = vunpack.c.h.b16 %v848
    %v3065 = vunpack.c.l.b16 %v849
    %v3066 = vunpack.c.h.b16 %v849
    %v3067 = vunpack.c.l.b16 %v850
    %v3068 = vunpack.c.h.b16 %v850
    %v3069 = vunpack.c.l.b16 %v851
    %v3070 = vunpack.c.h.b16 %v851
    %v3071 = vunpack.c.l.b16 %v852
    %v3072 = vunpack.c.h.b16 %v852
    %v3073 = vunpack.c.l.b16 %v853
    %v3074 = vunpack.c.h.b16 %v853
    %v3075 = vunpack.c.l.b16 %v854
    %v3076 = vunpack.c.h.b16 %v854
    %v3077 = vunpack.c.l.b16 %v855
    %v3078 = vunpack.c.h.b16 %v855
    %v3079 = vunpack.c.l.b16 %v856
    %v3080 = vunpack.c.h.b16 %v856
    %v3081 = vunpack.c.l.b16 %v857
    %v3082 = vunpack.c.h.b16 %v857
    %v3083 = vunpack.c.l.b16 %v858
    %v3084 = vunpack.c.h.b16 %v858
    %v3085 = vunpack.c.l.b16 %v859
    %v3086 = vunpack.c.h.b16 %v859
    %v3087 = vunpack.c.l.b16 %v860
    %v3088 = vunpack.c.h.b16 %v860
    %v3089 = vunpack.c.l.b16 %v861
    %v3090 = vunpack.c.h.b16 %v861
    %v3091 = vunpack.c.l.b16 %v862
    %v3092 = vunpack.c.h.b16 %v862
    %v3093 = vunpack.c.l.b16 %v863
    %v3094 = vunpack.c.h.b16 %v863
    %v3095 = vunpack.c.l.b16 %v864
    %v3096 = vunpack.c.h.b16 %v864
    %v3097 = vunpack.c.l.b16 %v865
    %v3098 = vunpack.c.h.b16 %v865
    %v3099 = vunpack.c.l.b16 %v866
    %v3100 = vunpack.c.h.b16 %v866
    %v3101 = vunpack.c.l.b16 %v867
    %v3102 = vunpack.c.h.b16 %v867
    %v3103 = vunpack.c.l.b16 %v868
    %v3104 = vunpack.c.h.b16 %v868
    %v3105 = vunpack.c.l.b16 %v869
    %v3106 = vunpack.c.h.b16 %v869
    %v3107 = vunpack.c.l.b16 %v870
    %v3108 = vunpack.c.h.b16 %v870
    %v3109 = vunpack.c.l.b16 %v871
    %v3110 = vunpack.c.h.b16 %v871
    %v3111 = vunpack.c.l.b16 %v872
    %v3112 = vunpack.c.h.b16 %v872
    %v3113 = vunpack.c.l.b16 %v873
    %v3114 = vunpack.c.h.b16 %v873
    %v3115 = vunpack.c.l.b16 %v874
    %v3116 = vunpack.c.h.b16 %v874
    %v3117 = vunpack.c.l.b16 %v875
    %v3118 = vunpack.c.h.b16 %v875
    %v3119 = vunpack.c.l.b16 %v876
    %v3120 = vunpack.c.h.b16 %v876
    %v3121 = vunpack.c.l.b16 %v877
    %v3122 = vunpack.c.h.b16 %v877
    %v3123 = vunpack.c.l.b16 %v878
    %v3124 = vunpack.c.h.b16 %v878
    %v3125 = vunpack.c.l.b16 %v879
    %v3126 = vunpack.c.h.b16 %v879
    %v3127 = vunpack.c.l.b16 %v880
    %v3128 = vunpack.c.h.b16 %v880
    %v3129 = vunpack.c.l.b16 %v881
    %v3130 = vunpack.c.h.b16 %v881
    %v3131 = vunpack.c.l.b16 %v882
    %v3132 = vunpack.c.h.b16 %v882
    %v3133 = vunpack.c.l.b16 %v883
    %v3134 = vunpack.c.h.b16 %v883
    %v3135 = vunpack.c.l.b16 %v884
    %v3136 = vunpack.c.h.b16 %v884
    %v3137 = vunpack.c.l.b16 %v885
    %v3138 = vunpack.c.h.b16 %v885
    %v3139 = vunpack.c.l.b16 %v886
    %v3140 = vunpack.c.h.b16 %v886
    %v3141 = vunpack.c.l.b16 %v887
    %v3142 = vunpack.c.h.b16 %v887
    %v3143 = vunpack.c.l.b16 %v888
    %v3144 = vunpack.c.h.b16 %v888
    %v3145 = vunpack.c.l.b16 %v889
    %v3146 = vunpack.c.h.b16 %v889
    %v3147 = vunpack.c.l.b16 %v890
    %v3148 = vunpack.c.h.b16 %v890
    %v3149 = vunpack.c.l.b16 %v891
    %v3150 = vunpack.c.h.b16 %v891
    %v3151 = vunpack.c.l.b16 %v892
    %v3152 = vunpack.c.h.b16 %v892
    %v3153 = vunpack.c.l.b16 %v893
    %v3154 = vunpack.c.h.b16 %v893
    %v3155 = vunpack.c.l.b16 %v894
    %v3156 = vunpack.c.h.b16 %v894
    %v3157 = vunpack.c.l.b16 %v895
    %v3158 = vunpack.c.h.b16 %v895
    %v3159 = vunpack.c.l.b16 %v896
    %v3160 = vunpack.c.h.b16 %v896
    %v3161 = vunpack.c.l.b16 %v897
    %v3162 = vunpack.c.h.b16 %v897
    %v3163 = vunpack.c.l.b16 %v898
    %v3164 = vunpack.c.h.b16 %v898
    %v3165 = vunpack.c.l.b16 %v899
    %v3166 = vunpack.c.h.b16 %v899
    %v3167 = vunpack.c.l.b16 %v900
    %v3168 = vunpack.c.h.b16 %v900
    %v3169 = vunpack.c.l.b16 %v901
    %v3170 = vunpack.c.h.b16 %v901
    %v3171 = vunpack.c.l.b16 %v902
    %v3172 = vunpack.c.h.b16 %v902
    %v3173 = vunpack.c.l.b16 %v903
    %v3174 = vunpack.c.h.b16 %v903
    %v3175 = vunpack.c.l.b16 %v904
    %v3176 = vunpack.c.h.b16 %v904
    %v3177 = vunpack.c.l.b16 %v905
    %v3178 = vunpack.c.h.b16 %v905
    %v3179 = vunpack.c.l.b16 %v906
    %v3180 = vunpack.c.h.b16 %v906
    %v3181 = vunpack.c.l.b16 %v907
    %v3182 = vunpack.c.h.b16 %v907
    %v3183 = vunpack.c.l.b16 %v908
    %v3184 = vunpack.c.h.b16 %v908
    %v3185 = vunpack.c.l.b16 %v909
    %v3186 = vunpack.c.h.b16 %v909
    %v3187 = vunpack.c.l.b16 %v910
    %v3188 = vunpack.c.h.b16 %v910
    %v3189 = vunpack.c.l.b16 %v911
    %v3190 = vunpack.c.h.b16 %v911
    %v3191 = vunpack.c.l.b16 %v912
    %v3192 = vunpack.c.h.b16 %v912
    %v3193 = vunpack.c.l.b16 %v913
    %v3194 = vunpack.c.h.b16 %v913
    %v3195 = vunpack.c.l.b16 %v914
    %v3196 = vunpack.c.h.b16 %v914
    %v3197 = vunpack.c.l.b16 %v915
    %v3198 = vunpack.c.h.b16 %v915
    %v3199 = vunpack.c.l.b16 %v916
    %v3200 = vunpack.c.h.b16 %v916
    %v3201 = vunpack.c.l.b16 %v917
    %v3202 = vunpack.c.h.b16 %v917
    %v3203 = vunpack.c.l.b16 %v918
    %v3204 = vunpack.c.h.b16 %v918
    %v3205 = vunpack.c.l.b16 %v919
    %v3206 = vunpack.c.h.b16 %v919
    %v3207 = vunpack.c.l.b16 %v920
    %v3208 = vunpack.c.h.b16 %v920
    %v3209 = vunpack.c.l.b16 %v921
    %v3210 = vunpack.c.h.b16 %v921
    %v3211 = vunpack.c.l.b16 %v922
    %v3212 = vunpack.c.h.b16 %v922
    %v3213 = vunpack.c.l.b16 %v923
    %v3214 = vunpack.c.h.b16 %v923
    %v3215 = vunpack.c.l.b16 %v924
    %v3216 = vunpack.c.h.b16 %v924
    %v3217 = vunpack.c.l.b16 %v925
    %v3218 = vunpack.c.h.b16 %v925
    %v3219 = vunpack.c.l.b16 %v926
    %v3220 = vunpack.c.h.b16 %v926
    %v3221 = vunpack.c.l.b16 %v927
    %v3222 = vunpack.c.h.b16 %v927
    %v3223 = vunpack.c.l.b16 %v928
    %v3224 = vunpack.c.h.b16 %v928
    %v3225 = vunpack.c.l.b16 %v929
    %v3226 = vunpack.c.h.b16 %v929
    %v3227 = vunpack.c.l.b16 %v930
    %v3228 = vunpack.c.h.b16 %v930
    %v3229 = vunpack.c.l.b16 %v931
    %v3230 = vunpack.c.h.b16 %v931
    %v3231 = vunpack.c.l.b16 %v932
    %v3232 = vunpack.c.h.b16 %v932
    %v3233 = vunpack.c.l.b16 %v933
    %v3234 = vunpack.c.h.b16 %v933
    %v3235 = vunpack.c.l.b16 %v934
    %v3236 = vunpack.c.h.b16 %v934
    %v3237 = vunpack.c.l.b16 %v935
    %v3238 = vunpack.c.h.b16 %v935
    %v3239 = vunpack.c.l.b16 %v936
    %v3240 = vunpack.c.h.b16 %v936
    %v3241 = vpack.c.b16 %v1721, %v1705
    %v3242 = vpack.c.b16 %v1722, %v1706
    %v3243 = vpack.c.b16 %v1723, %v1707
    %v3244 = vpack.c.b16 %v1724, %v1708
    %v3245 = vpack.c.b16 %v1725, %v1709
    %v3246 = vpack.c.b16 %v1726, %v1710
    %v3247 = vpack.c.b16 %v1727, %v1711
    %v3248 = vpack.c.b16 %v1728, %v1712
    %v3249 = vpack.c.b16 %v1729, %v1713
    %v3250 = vpack.c.b16 %v1730, %v1714
    %v3251 = vpack.c.b16 %v1731, %v1715
    %v3252 = vpack.c.b16 %v1732, %v1716
    %v3253 = vpack.c.b16 %v1733, %v1717
    %v3254 = vpack.c.b16 %v1734, %v1718
    %v3255 = vpack.c.b16 %v1735, %v1719
    %v3256 = vpack.c.b16 %v1736, %v1720
    %v3257 = vpack.c.b16 %v1753, %v1737
    %v3258 = vpack.c.b16 %v1754, %v1738
    %v3259 = vpack.c.b16 %v1755, %v1739
    %v3260 = vpack.c.b16 %v1756, %v1740
    %v3261 = vpack.c.b16 %v1757, %v1741
    %v3262 = vpack.c.b16 %v1758, %v1742
    %v3263 = vpack.c.b16 %v1759, %v1743
    %v3264 = vpack.c.b16 %v1760, %v1744
    %v3265 = vpack.c.b16 %v1761, %v1745
    %v3266 = vpack.c.b16 %v1762, %v1746
    %v3267 = vpack.c.b16 %v1763, %v1747
    %v3268 = vpack.c.b16 %v1764, %v1748
    %v3269 = vpack.c.b16 %v1765, %v1749
    %v3270 = vpack.c.b16 %v1766, %v1750
    %v3271 = vpack.c.b16 %v1767, %v1751
    %v3272 = vpack.c.b16 %v1768, %v1752
    %v3273 = vpack.c.b16 %v1785, %v1769
    %v3274 = vpack.c.b16 %v1786, %v1770
    %v3275 = vpack.c.b16 %v1787, %v1771
    %v3276 = vpack.c.b16 %v1788, %v1772
    %v3277 = vpack.c.b16 %v1789, %v1773
    %v3278 = vpack.c.b16 %v1790, %v1774
    %v3279 = vpack.c.b16 %v1791, %v1775
    %v3280 = vpack.c.b16 %v1792, %v1776
    %v3281 = vpack.c.b16 %v1793, %v1777
    %v3282 = vpack.c.b16 %v1794, %v1778
    %v3283 = vpack.c.b16 %v1795, %v1779
    %v3284 = vpack.c.b16 %v1796, %v1780
    %v3285 = vpack.c.b16 %v1797, %v1781
    %v3286 = vpack.c.b16 %v1798, %v1782
    %v3287 = vpack.c.b16 %v1799, %v1783
    %v3288 = vpack.c.b16 %v1800, %v1784
    %v3289 = vpack.c.b16 %v1817, %v1801
    %v3290 = vpack.c.b16 %v1818, %v1802
    %v3291 = vpack.c.b16 %v1819, %v1803
    %v3292 = vpack.c.b16 %v1820, %v1804
    %v3293 = vpack.c.b16 %v1821, %v1805
    %v3294 = vpack.c.b16 %v1822, %v1806
    %v3295 = vpack.c.b16 %v1823, %v1807
    %v3296 = vpack.c.b16 %v1824, %v1808
    %v3297 = vpack.c.b16 %v1825, %v1809
    %v3298 = vpack.c.b16 %v1826, %v1810
    %v3299 = vpack.c.b16 %v1827, %v1811
    %v3300 = vpack.c.b16 %v1828, %v1812
    %v3301 = vpack.c.b16 %v1829, %v1813
    %v3302 = vpack.c.b16 %v1830, %v1814
    %v3303 = vpack.c.b16 %v1831, %v1815
    %v3304 = vpack.c.b16 %v1832, %v1816
    %v3305 = vpack.c.b16 %v1849, %v1833
    %v3306 = vpack.c.b16 %v1850, %v1834
    %v3307 = vpack.c.b16 %v1851, %v1835
    %v3308 = vpack.c.b16 %v1852, %v1836
    %v3309 = vpack.c.b16 %v1853, %v1837
    %v3310 = vpack.c.b16 %v1854, %v1838
    %v3311 = vpack.c.b16 %v1855, %v1839
    %v3312 = vpack.c.b16 %v1856, %v1840
    %v3313 = vpack.c.b16 %v1857, %v1841
    %v3314 = vpack.c.b16 %v1858, %v1842
    %v3315 = vpack.c.b16 %v1859, %v1843
    %v3316 = vpack.c.b16 %v1860, %v1844
    %v3317 = vpack.c.b16 %v1861, %v1845
    %v3318 = vpack.c.b16 %v1862, %v1846
    %v3319 = vpack.c.b16 %v1863, %v1847
    %v3320 = vpack.c.b16 %v1864, %v1848
    %v3321 = vpack.c.b16 %v1881, %v1865
    %v3322 = vpack.c.b16 %v1882, %v1866
    %v3323 = vpack.c.b16 %v1883, %v1867
    %v3324 = vpack.c.b16 %v1884, %v1868
    %v3325 = vpack.c.b16 %v1885, %v1869
    %v3326 = vpack.c.b16 %v1886, %v1870
    %v3327 = vpack.c.b16 %v1887, %v1871
    %v3328 = vpack.c.b16 %v1888, %v1872
    %v3329 = vpack.c.b16 %v1889, %v1873
    %v3330 = vpack.c.b16 %v1890, %v1874
    %v3331 = vpack.c.b16 %v1891, %v1875
    %v3332 = vpack.c.b16 %v1892, %v1876
    %v3333 = vpack.c.b16 %v1893, %v1877
    %v3334 = vpack.c.b16 %v1894, %v1878
    %v3335 = vpack.c.b16 %v1895, %v1879
    %v3336 = vpack.c.b16 %v1896, %v1880
    %v3337 = vpack.c.b16 %v1913, %v1897
    %v3338 = vpack.c.b16 %v1914, %v1898
    %v3339 = vpack.c.b16 %v1915, %v1899
    %v3340 = vpack.c.b16 %v1916, %v1900
    %v3341 = vpack.c.b16 %v1917, %v1901
    %v3342 = vpack.c.b16 %v1918, %v1902
    %v3343 = vpack.c.b16 %v1919, %v1903
    %v3344 = vpack.c.b16 %v1920, %v1904
    %v3345 = vpack.c.b16 %v1921, %v1905
    %v3346 = vpack.c.b16 %v1922, %v1906
    %v3347 = vpack.c.b16 %v1923, %v1907
    %v3348 = vpack.c.b16 %v1924, %v1908
    %v3349 = vpack.c.b16 %v1925, %v1909
    %v3350 = vpack.c.b16 %v1926, %v1910
    %v3351 = vpack.c.b16 %v1927, %v1911
    %v3352 = vpack.c.b16 %v1928, %v1912
    %v3353 = vpack.c.b16 %v1945, %v1929
    %v3354 = vpack.c.b16 %v1946, %v1930
    %v3355 = vpack.c.b16 %v1947, %v1931
    %v3356 = vpack.c.b16 %v1948, %v1932
    %v3357 = vpack.c.b16 %v1949, %v1933
    %v3358 = vpack.c.b16 %v1950, %v1934
    %v3359 = vpack.c.b16 %v1951, %v1935
    %v3360 = vpack.c.b16 %v1952, %v1936
    %v3361 = vpack.c.b16 %v1953, %v1937
    %v3362 = vpack.c.b16 %v1954, %v1938
    %v3363 = vpack.c.b16 %v1955, %v1939
    %v3364 = vpack.c.b16 %v1956, %v1940
    %v3365 = vpack.c.b16 %v1957, %v1941
    %v3366 = vpack.c.b16 %v1958, %v1942
    %v3367 = vpack.c.b16 %v1959, %v1943
    %v3368 = vpack.c.b16 %v1960, %v1944
    %v3369 = vpack.c.b16 %v1977, %v1961
    %v3370 = vpack.c.b16 %v1978, %v1962
    %v3371 = vpack.c.b16 %v1979, %v1963
    %v3372 = vpack.c.b16 %v1980, %v1964
    %v3373 = vpack.c.b16 %v1981, %v1965
    %v3374 = vpack.c.b16 %v1982, %v1966
    %v3375 = vpack.c.b16 %v1983, %v1967
    %v3376 = vpack.c.b16 %v1984, %v1968
    %v3377 = vpack.c.b16 %v1985, %v1969
    %v3378 = vpack.c.b16 %v1986, %v1970
    %v3379 = vpack.c.b16 %v1987, %v1971
    %v3380 = vpack.c.b16 %v1988, %v1972
    %v3381 = vpack.c.b16 %v1989, %v1973
    %v3382 = vpack.c.b16 %v1990, %v1974
    %v3383 = vpack.c.b16 %v1991, %v1975
    %v3384 = vpack.c.b16 %v1992, %v1976
    %v3385 = vpack.c.b16 %v2009, %v1993
    %v3386 = vpack.c.b16 %v2010, %v1994
    %v3387 = vpack.c.b16 %v2011, %v1995
    %v3388 = vpack.c.b16 %v2012, %v1996
    %v3389 = vpack.c.b16 %v2013, %v1997
    %v3390 = vpack.c.b16 %v2014, %v1998
    %v3391 = vpack.c.b16 %v2015, %v1999
    %v3392 = vpack.c.b16 %v2016, %v2000
    %v3393 = vpack.c.b16 %v2017, %v2001
    %v3394 = vpack.c.b16 %v2018, %v2002
    %v3395 = vpack.c.b16 %v2019, %v2003
    %v3396 = vpack.c.b16 %v2020, %v2004
    %v3397 = vpack.c.b16 %v2021, %v2005
    %v3398 = vpack.c.b16 %v2022, %v2006
    %v3399 = vpack.c.b16 %v2023, %v2007
    %v3400 = vpack.c.b16 %v2024, %v2008
    %v3401 = vpack.c.b16 %v2041, %v2025
    %v3402 = vpack.c.b16 %v2042, %v2026
    %v3403 = vpack.c.b16 %v2043, %v2027
    %v3404 = vpack.c.b16 %v2044, %v2028
    %v3405 = vpack.c.b16 %v2045, %v2029
    %v3406 = vpack.c.b16 %v2046, %v2030
    %v3407 = vpack.c.b16 %v2047, %v2031
    %v3408 = vpack.c.b16 %v2048, %v2032
    %v3409 = vpack.c.b16 %v2049, %v2033
    %v3410 = vpack.c.b16 %v2050, %v2034
    %v3411 = vpack.c.b16 %v2051, %v2035
    %v3412 = vpack.c.b16 %v2052, %v2036
    %v3413 = vpack.c.b16 %v2053, %v2037
    %v3414 = vpack.c.b16 %v2054, %v2038
    %v3415 = vpack.c.b16 %v2055, %v2039
    %v3416 = vpack.c.b16 %v2056, %v2040
    %v3417 = vpack.c.b16 %v2073, %v2057
    %v3418 = vpack.c.b16 %v2074, %v2058
    %v3419 = vpack.c.b16 %v2075, %v2059
    %v3420 = vpack.c.b16 %v2076, %v2060
    %v3421 = vpack.c.b16 %v2077, %v2061
    %v3422 = vpack.c.b16 %v2078, %v2062
    %v3423 = vpack.c.b16 %v2079, %v2063
    %v3424 = vpack.c.b16 %v2080, %v2064
    %v3425 = vpack.c.b16 %v2081, %v2065
    %v3426 = vpack.c.b16 %v2082, %v2066
    %v3427 = vpack.c.b16 %v2083, %v2067
    %v3428 = vpack.c.b16 %v2084, %v2068
    %v3429 = vpack.c.b16 %v2085, %v2069
    %v3430 = vpack.c.b16 %v2086, %v2070
    %v3431 = vpack.c.b16 %v2087, %v2071
    %v3432 = vpack.c.b16 %v2088, %v2072
    %v3433 = vpack.c.b16 %v2105, %v2089
    %v3434 = vpack.c.b16 %v2106, %v2090
    %v3435 = vpack.c.b16 %v2107, %v2091
    %v3436 = vpack.c.b16 %v2108, %v2092
    %v3437 = vpack.c.b16 %v2109, %v2093
    %v3438 = vpack.c.b16 %v2110, %v2094
    %v3439 = vpack.c.b16 %v2111, %v2095
    %v3440 = vpack.c.b16 %v2112, %v2096
    %v3441 = vpack.c.b16 %v2113, %v2097
    %v3442 = vpack.c.b16 %v2114, %v2098
    %v3443 = vpack.c.b16 %v2115, %v2099
    %v3444 = vpack.c.b16 %v2116, %v2100
    %v3445 = vpack.c.b16 %v2117, %v2101
    %v3446 = vpack.c.b16 %v2118, %v2102
    %v3447 = vpack.c.b16 %v2119, %v2103
    %v3448 = vpack.c.b16 %v2120, %v2104
    %v3449 = vpack.c.b16 %v2137, %v2121
    %v3450 = vpack.c.b16 %v2138, %v2122
    %v3451 = vpack.c.b16 %v2139, %v2123
    %v3452 = vpack.c.b16 %v2140, %v2124
    %v3453 = vpack.c.b16 %v2141, %v2125
    %v3454 = vpack.c.b16 %v2142, %v2126
    %v3455 = vpack.c.b16 %v2143, %v2127
    %v3456 = vpack.c.b16 %v2144, %v2128
    %v3457 = vpack.c.b16 %v2145, %v2129
    %v3458 = vpack.c.b16 %v2146, %v2130
    %v3459 = vpack.c.b16 %v2147, %v2131
    %v3460 = vpack.c.b16 %v2148, %v2132
    %v3461 = vpack.c.b16 %v2149, %v2133
    %v3462 = vpack.c.b16 %v2150, %v2134
    %v3463 = vpack.c.b16 %v2151, %v2135
    %v3464 = vpack.c.b16 %v2152, %v2136
    %v3465 = vpack.c.b16 %v2169, %v2153
    %v3466 = vpack.c.b16 %v2170, %v2154
    %v3467 = vpack.c.b16 %v2171, %v2155
    %v3468 = vpack.c.b16 %v2172, %v2156
    %v3469 = vpack.c.b16 %v2173, %v2157
    %v3470 = vpack.c.b16 %v2174, %v2158
    %v3471 = vpack.c.b16 %v2175, %v2159
    %v3472 = vpack.c.b16 %v2176, %v2160
    %v3473 = vpack.c.b16 %v2177, %v2161
    %v3474 = vpack.c.b16 %v2178, %v2162
    %v3475 = vpack.c.b16 %v2179, %v2163
    %v3476 = vpack.c.b16 %v2180, %v2164
    %v3477 = vpack.c.b16 %v2181, %v2165
    %v3478 = vpack.c.b16 %v2182, %v2166
    %v3479 = vpack.c.b16 %v2183, %v2167
    %v3480 = vpack.c.b16 %v2184, %v2168
    %v3481 = vpack.c.b16 %v2201, %v2185
    %v3482 = vpack.c.b16 %v2202, %v2186
    %v3483 = vpack.c.b16 %v2203, %v2187
    %v3484 = vpack.c.b16 %v2204, %v2188
    %v3485 = vpack.c.b16 %v2205, %v2189
    %v3486 = vpack.c.b16 %v2206, %v2190
    %v3487 = vpack.c.b16 %v2207, %v2191
    %v3488 = vpack.c.b16 %v2208, %v2192
    %v3489 = vpack.c.b16 %v2209, %v2193
    %v3490 = vpack.c.b16 %v2210, %v2194
    %v3491 = vpack.c.b16 %v2211, %v2195
    %v3492 = vpack.c.b16 %v2212, %v2196
    %v3493 = vpack.c.b16 %v2213, %v2197
    %v3494 = vpack.c.b16 %v2214, %v2198
    %v3495 = vpack.c.b16 %v2215, %v2199
    %v3496 = vpack.c.b16 %v2216, %v2200
    %v3497 = vpack.c.b16 %v2233, %v2217
    %v3498 = vpack.c.b16 %v2234, %v2218
    %v3499 = vpack.c.b16 %v2235, %v2219
    %v3500 = vpack.c.b16 %v2236, %v2220
    %v3501 = vpack.c.b16 %v2237, %v2221
    %v3502 = vpack.c.b16 %v2238, %v2222
    %v3503 = vpack.c.b16 %v2239, %v2223
    %v3504 = vpack.c.b16 %v2240, %v2224
    %v3505 = vpack.c.b16 %v2241, %v2225
    %v3506 = vpack.c.b16 %v2242, %v2226
    %v3507 = vpack.c.b16 %v2243, %v2227
    %v3508 = vpack.c.b16 %v2244, %v2228
    %v3509 = vpack.c.b16 %v2245, %v2229
    %v3510 = vpack.c.b16 %v2246, %v2230
    %v3511 = vpack.c.b16 %v2247, %v2231
    %v3512 = vpack.c.b16 %v2248, %v2232
    %v3513 = vpack.c.b16 %v2265, %v2249
    %v3514 = vpack.c.b16 %v2266, %v2250
    %v3515 = vpack.c.b16 %v2267, %v2251
    %v3516 = vpack.c.b16 %v2268, %v2252
    %v3517 = vpack.c.b16 %v2269, %v2253
    %v3518 = vpack.c.b16 %v2270, %v2254
    %v3519 = vpack.c.b16 %v2271, %v2255
    %v3520 = vpack.c.b16 %v2272, %v2256
    %v3521 = vpack.c.b16 %v2273, %v2257
    %v3522 = vpack.c.b16 %v2274, %v2258
    %v3523 = vpack.c.b16 %v2275, %v2259
    %v3524 = vpack.c.b16 %v2276, %v2260
    %v3525 = vpack.c.b16 %v2277, %v2261
    %v3526 = vpack.c.b16 %v2278, %v2262
    %v3527 = vpack.c.b16 %v2279, %v2263
    %v3528 = vpack.c.b16 %v2280, %v2264
    %v3529 = vpack.c.b16 %v2297, %v2281
    %v3530 = vpack.c.b16 %v2298, %v2282
    %v3531 = vpack.c.b16 %v2299, %v2283
    %v3532 = vpack.c.b16 %v2300, %v2284
    %v3533 = vpack.c.b16 %v2301, %v2285
    %v3534 = vpack.c.b16 %v2302, %v2286
    %v3535 = vpack.c.b16 %v2303, %v2287
    %v3536 = vpack.c.b16 %v2304, %v2288
    %v3537 = vpack.c.b16 %v2305, %v2289
    %v3538 = vpack.c.b16 %v2306, %v2290
    %v3539 = vpack.c.b16 %v2307, %v2291
    %v3540 = vpack.c.b16 %v2308, %v2292
    %v3541 = vpack.c.b16 %v2309, %v2293
    %v3542 = vpack.c.b16 %v2310, %v2294
    %v3543 = vpack.c.b16 %v2311, %v2295
    %v3544 = vpack.c.b16 %v2312, %v2296
    %v3545 = vpack.c.b16 %v2329, %v2313
    %v3546 = vpack.c.b16 %v2330, %v2314
    %v3547 = vpack.c.b16 %v2331, %v2315
    %v3548 = vpack.c.b16 %v2332, %v2316
    %v3549 = vpack.c.b16 %v2333, %v2317
    %v3550 = vpack.c.b16 %v2334, %v2318
    %v3551 = vpack.c.b16 %v2335, %v2319
    %v3552 = vpack.c.b16 %v2336, %v2320
    %v3553 = vpack.c.b16 %v2337, %v2321
    %v3554 = vpack.c.b16 %v2338, %v2322
    %v3555 = vpack.c.b16 %v2339, %v2323
    %v3556 = vpack.c.b16 %v2340, %v2324
    %v3557 = vpack.c.b16 %v2341, %v2325
    %v3558 = vpack.c.b16 %v2342, %v2326
    %v3559 = vpack.c.b16 %v2343, %v2327
    %v3560 = vpack.c.b16 %v2344, %v2328
    %v3561 = vpack.c.b16 %v2361, %v2345
    %v3562 = vpack.c.b16 %v2362, %v2346
    %v3563 = vpack.c.b16 %v2363, %v2347
    %v3564 = vpack.c.b16 %v2364, %v2348
    %v3565 = vpack.c.b16 %v2365, %v2349
    %v3566 = vpack.c.b16 %v2366, %v2350
    %v3567 = vpack.c.b16 %v2367, %v2351
    %v3568 = vpack.c.b16 %v2368, %v2352
    %v3569 = vpack.c.b16 %v2369, %v2353
    %v3570 = vpack.c.b16 %v2370, %v2354
    %v3571 = vpack.c.b16 %v2371, %v2355
    %v3572 = vpack.c.b16 %v2372, %v2356
    %v3573 = vpack.c.b16 %v2373, %v2357
    %v3574 = vpack.c.b16 %v2374, %v2358
    %v3575 = vpack.c.b16 %v2375, %v2359
    %v3576 = vpack.c.b16 %v2376, %v2360
    %v3577 = vpack.c.b16 %v2393, %v2377
    %v3578 = vpack.c.b16 %v2394, %v2378
    %v3579 = vpack.c.b16 %v2395, %v2379
    %v3580 = vpack.c.b16 %v2396, %v2380
    %v3581 = vpack.c.b16 %v2397, %v2381
    %v3582 = vpack.c.b16 %v2398, %v2382
    %v3583 = vpack.c.b16 %v2399, %v2383
    %v3584 = vpack.c.b16 %v2400, %v2384
    %v3585 = vpack.c.b16 %v2401, %v2385
    %v3586 = vpack.c.b16 %v2402, %v2386
    %v3587 = vpack.c.b16 %v2403, %v2387
    %v3588 = vpack.c.b16 %v2404, %v2388
    %v3589 = vpack.c.b16 %v2405, %v2389
    %v3590 = vpack.c.b16 %v2406, %v2390
    %v3591 = vpack.c.b16 %v2407, %v2391
    %v3592 = vpack.c.b16 %v2408, %v2392
    %v3593 = vpack.c.b16 %v2425, %v2409
    %v3594 = vpack.c.b16 %v2426, %v2410
    %v3595 = vpack.c.b16 %v2427, %v2411
    %v3596 = vpack.c.b16 %v2428, %v2412
    %v3597 = vpack.c.b16 %v2429, %v2413
    %v3598 = vpack.c.b16 %v2430, %v2414
    %v3599 = vpack.c.b16 %v2431, %v2415
    %v3600 = vpack.c.b16 %v2432, %v2416
    %v3601 = vpack.c.b16 %v2433, %v2417
    %v3602 = vpack.c.b16 %v2434, %v2418
    %v3603 = vpack.c.b16 %v2435, %v2419
    %v3604 = vpack.c.b16 %v2436, %v2420
    %v3605 = vpack.c.b16 %v2437, %v2421
    %v3606 = vpack.c.b16 %v2438, %v2422
    %v3607 = vpack.c.b16 %v2439, %v2423
    %v3608 = vpack.c.b16 %v2440, %v2424
    %v3609 = vpack.c.b16 %v2457, %v2441
    %v3610 = vpack.c.b16 %v2458, %v2442
    %v3611 = vpack.c.b16 %v2459, %v2443
    %v3612 = vpack.c.b16 %v2460, %v2444
    %v3613 = vpack.c.b16 %v2461, %v2445
    %v3614 = vpack.c.b16 %v2462, %v2446
    %v3615 = vpack.c.b16 %v2463, %v2447
    %v3616 = vpack.c.b16 %v2464, %v2448
    %v3617 = vpack.c.b16 %v2465, %v2449
    %v3618 = vpack.c.b16 %v2466, %v2450
    %v3619 = vpack.c.b16 %v2467, %v2451
    %v3620 = vpack.c.b16 %v2468, %v2452
    %v3621 = vpack.c.b16 %v2469, %v2453
    %v3622 = vpack.c.b16 %v2470, %v2454
    %v3623 = vpack.c.b16 %v2471, %v2455
    %v3624 = vpack.c.b16 %v2472, %v2456
    %v3625 = vpack.c.b16 %v2489, %v2473
    %v3626 = vpack.c.b16 %v2490, %v2474
    %v3627 = vpack.c.b16 %v2491, %v2475
    %v3628 = vpack.c.b16 %v2492, %v2476
    %v3629 = vpack.c.b16 %v2493, %v2477
    %v3630 = vpack.c.b16 %v2494, %v2478
    %v3631 = vpack.c.b16 %v2495, %v2479
    %v3632 = vpack.c.b16 %v2496, %v2480
    %v3633 = vpack.c.b16 %v2497, %v2481
    %v3634 = vpack.c.b16 %v2498, %v2482
    %v3635 = vpack.c.b16 %v2499, %v2483
    %v3636 = vpack.c.b16 %v2500, %v2484
    %v3637 = vpack.c.b16 %v2501, %v2485
    %v3638 = vpack.c.b16 %v2502, %v2486
    %v3639 = vpack.c.b16 %v2503, %v2487
    %v3640 = vpack.c.b16 %v2504, %v2488
    %v3641 = vpack.c.b16 %v2521, %v2505
    %v3642 = vpack.c.b16 %v2522, %v2506
    %v3643 = vpack.c.b16 %v2523, %v2507
    %v3644 = vpack.c.b16 %v2524, %v2508
    %v3645 = vpack.c.b16 %v2525, %v2509
    %v3646 = vpack.c.b16 %v2526, %v2510
    %v3647 = vpack.c.b16 %v2527, %v2511
    %v3648 = vpack.c.b16 %v2528, %v2512
    %v3649 = vpack.c.b16 %v2529, %v2513
    %v3650 = vpack.c.b16 %v2530, %v2514
    %v3651 = vpack.c.b16 %v2531, %v2515
    %v3652 = vpack.c.b16 %v2532, %v2516
    %v3653 = vpack.c.b16 %v2533, %v2517
    %v3654 = vpack.c.b16 %v2534, %v2518
    %v3655 = vpack.c.b16 %v2535, %v2519
    %v3656 = vpack.c.b16 %v2536, %v2520
    %v3657 = vpack.c.b16 %v2553, %v2537
    %v3658 = vpack.c.b16 %v2554, %v2538
    %v3659 = vpack.c.b16 %v2555, %v2539
    %v3660 = vpack.c.b16 %v2556, %v2540
    %v3661 = vpack.c.b16 %v2557, %v2541
    %v3662 = vpack.c.b16 %v2558, %v2542
    %v3663 = vpack.c.b16 %v2559, %v2543
    %v3664 = vpack.c.b16 %v2560, %v2544
    %v3665 = vpack.c.b16 %v2561, %v2545
    %v3666 = vpack.c.b16 %v2562, %v2546
    %v3667 = vpack.c.b16 %v2563, %v2547
    %v3668 = vpack.c.b16 %v2564, %v2548
    %v3669 = vpack.c.b16 %v2565, %v2549
    %v3670 = vpack.c.b16 %v2566, %v2550
    %v3671 = vpack.c.b16 %v2567, %v2551
    %v3672 = vpack.c.b16 %v2568, %v2552
    %v3673 = vpack.c.b16 %v2585, %v2569
    %v3674 = vpack.c.b16 %v2586, %v2570
    %v3675 = vpack.c.b16 %v2587, %v2571
    %v3676 = vpack.c.b16 %v2588, %v2572
    %v3677 = vpack.c.b16 %v2589, %v2573
    %v3678 = vpack.c.b16 %v2590, %v2574
    %v3679 = vpack.c.b16 %v2591, %v2575
    %v3680 = vpack.c.b16 %v2592, %v2576
    %v3681 = vpack.c.b16 %v2593, %v2577
    %v3682 = vpack.c.b16 %v2594, %v2578
    %v3683 = vpack.c.b16 %v2595, %v2579
    %v3684 = vpack.c.b16 %v2596, %v2580
    %v3685 = vpack.c.b16 %v2597, %v2581
    %v3686 = vpack.c.b16 %v2598, %v2582
    %v3687 = vpack.c.b16 %v2599, %v2583
    %v3688 = vpack.c.b16 %v2600, %v2584
    %v3689 = vpack.c.b16 %v2617, %v2601
    %v3690 = vpack.c.b16 %v2618, %v2602
    %v3691 = vpack.c.b16 %v2619, %v2603
    %v3692 = vpack.c.b16 %v2620, %v2604
    %v3693 = vpack.c.b16 %v2621, %v2605
    %v3694 = vpack.c.b16 %v2622, %v2606
    %v3695 = vpack.c.b16 %v2623, %v2607
    %v3696 = vpack.c.b16 %v2624, %v2608
    %v3697 = vpack.c.b16 %v2625, %v2609
    %v3698 = vpack.c.b16 %v2626, %v2610
    %v3699 = vpack.c.b16 %v2627, %v2611
    %v3700 = vpack.c.b16 %v2628, %v2612
    %v3701 = vpack.c.b16 %v2629, %v2613
    %v3702 = vpack.c.b16 %v2630, %v2614
    %v3703 = vpack.c.b16 %v2631, %v2615
    %v3704 = vpack.c.b16 %v2632, %v2616
    %v3705 = vpack.c.b16 %v2649, %v2633
    %v3706 = vpack.c.b16 %v2650, %v2634
    %v3707 = vpack.c.b16 %v2651, %v2635
    %v3708 = vpack.c.b16 %v2652, %v2636
    %v3709 = vpack.c.b16 %v2653, %v2637
    %v3710 = vpack.c.b16 %v2654, %v2638
    %v3711 = vpack.c.b16 %v2655, %v2639
    %v3712 = vpack.c.b16 %v2656, %v2640
    %v3713 = vpack.c.b16 %v2657, %v2641
    %v3714 = vpack.c.b16 %v2658, %v2642
    %v3715 = vpack.c.b16 %v2659, %v2643
    %v3716 = vpack.c.b16 %v2660, %v2644
    %v3717 = vpack.c.b16 %v2661, %v2645
    %v3718 = vpack.c.b16 %v2662, %v2646
    %v3719 = vpack.c.b16 %v2663, %v2647
    %v3720 = vpack.c.b16 %v2664, %v2648
    %v3721 = vpack.c.b16 %v2681, %v2665
    %v3722 = vpack.c.b16 %v2682, %v2666
    %v3723 = vpack.c.b16 %v2683, %v2667
    %v3724 = vpack.c.b16 %v2684, %v2668
    %v3725 = vpack.c.b16 %v2685, %v2669
    %v3726 = vpack.c.b16 %v2686, %v2670
    %v3727 = vpack.c.b16 %v2687, %v2671
    %v3728 = vpack.c.b16 %v2688, %v2672
    %v3729 = vpack.c.b16 %v2689, %v2673
    %v3730 = vpack.c.b16 %v2690, %v2674
    %v3731 = vpack.c.b16 %v2691, %v2675
    %v3732 = vpack.c.b16 %v2692, %v2676
    %v3733 = vpack.c.b16 %v2693, %v2677
    %v3734 = vpack.c.b16 %v2694, %v2678
    %v3735 = vpack.c.b16 %v2695, %v2679
    %v3736 = vpack.c.b16 %v2696, %v2680
    %v3737 = vpack.c.b16 %v2713, %v2697
    %v3738 = vpack.c.b16 %v2714, %v2698
    %v3739 = vpack.c.b16 %v2715, %v2699
    %v3740 = vpack.c.b16 %v2716, %v2700
    %v3741 = vpack.c.b16 %v2717, %v2701
    %v3742 = vpack.c.b16 %v2718, %v2702
    %v3743 = vpack.c.b16 %v2719, %v2703
    %v3744 = vpack.c.b16 %v2720, %v2704
    %v3745 = vpack.c.b16 %v2721, %v2705
    %v3746 = vpack.c.b16 %v2722, %v2706
    %v3747 = vpack.c.b16 %v2723, %v2707
    %v3748 = vpack.c.b16 %v2724, %v2708
    %v3749 = vpack.c.b16 %v2725, %v2709
    %v3750 = vpack.c.b16 %v2726, %v2710
    %v3751 = vpack.c.b16 %v2727, %v2711
    %v3752 = vpack.c.b16 %v2728, %v2712
    %v3753 = vpack.c.b16 %v2745, %v2729
    %v3754 = vpack.c.b16 %v2746, %v2730
    %v3755 = vpack.c.b16 %v2747, %v2731
    %v3756 = vpack.c.b16 %v2748, %v2732
    %v3757 = vpack.c.b16 %v2749, %v2733
    %v3758 = vpack.c.b16 %v2750, %v2734
    %v3759 = vpack.c.b16 %v2751, %v2735
    %v3760 = vpack.c.b16 %v2752, %v2736
    %v3761 = vpack.c.b16 %v2753, %v2737
    %v3762 = vpack.c.b16 %v2754, %v2738
    %v3763 = vpack.c.b16 %v2755, %v2739
    %v3764 = vpack.c.b16 %v2756, %v2740
    %v3765 = vpack.c.b16 %v2757, %v2741
    %v3766 = vpack.c.b16 %v2758, %v2742
    %v3767 = vpack.c.b16 %v2759, %v2743
    %v3768 = vpack.c.b16 %v2760, %v2744
    %v3769 = vpack.c.b16 %v2777, %v2761
    %v3770 = vpack.c.b16 %v2778, %v2762
    %v3771 = vpack.c.b16 %v2779, %v2763
    %v3772 = vpack.c.b16 %v2780, %v2764
    %v3773 = vpack.c.b16 %v2781, %v2765
    %v3774 = vpack.c.b16 %v2782, %v2766
    %v3775 = vpack.c.b16 %v2783, %v2767
    %v3776 = vpack.c.b16 %v2784, %v2768
    %v3777 = vpack.c.b16 %v2785, %v2769
    %v3778 = vpack.c.b16 %v2786, %v2770
    %v3779 = vpack.c.b16 %v2787, %v2771
    %v3780 = vpack.c.b16 %v2788, %v2772
    %v3781 = vpack.c.b16 %v2789, %v2773
    %v3782 = vpack.c.b16 %v2790, %v2774
    %v3783 = vpack.c.b16 %v2791, %v2775
    %v3784 = vpack.c.b16 %v2792, %v2776
    %v3785 = vpack.c.b16 %v2809, %v2793
    %v3786 = vpack.c.b16 %v2810, %v2794
    %v3787 = vpack.c.b16 %v2811, %v2795
    %v3788 = vpack.c.b16 %v2812, %v2796
    %v3789 = vpack.c.b16 %v2813, %v2797
    %v3790 = vpack.c.b16 %v2814, %v2798
    %v3791 = vpack.c.b16 %v2815, %v2799
    %v3792 = vpack.c.b16 %v2816, %v2800
    %v3793 = vpack.c.b16 %v2817, %v2801
    %v3794 = vpack.c.b16 %v2818, %v2802
    %v3795 = vpack.c.b16 %v2819, %v2803
    %v3796 = vpack.c.b16 %v2820, %v2804
    %v3797 = vpack.c.b16 %v2821, %v2805
    %v3798 = vpack.c.b16 %v2822, %v2806
    %v3799 = vpack.c.b16 %v2823, %v2807
    %v3800 = vpack.c.b16 %v2824, %v2808
    %v3801 = vpack.c.b16 %v2841, %v2825
    %v3802 = vpack.c.b16 %v2842, %v2826
    %v3803 = vpack.c.b16 %v2843, %v2827
    %v3804 = vpack.c.b16 %v2844, %v2828
    %v3805 = vpack.c.b16 %v2845, %v2829
    %v3806 = vpack.c.b16 %v2846, %v2830
    %v3807 = vpack.c.b16 %v2847, %v2831
    %v3808 = vpack.c.b16 %v2848, %v2832
    %v3809 = vpack.c.b16 %v2849, %v2833
    %v3810 = vpack.c.b16 %v2850, %v2834
    %v3811 = vpack.c.b16 %v2851, %v2835
    %v3812 = vpack.c.b16 %v2852, %v2836
    %v3813 = vpack.c.b16 %v2853, %v2837
    %v3814 = vpack.c.b16 %v2854, %v2838
    %v3815 = vpack.c.b16 %v2855, %v2839
    %v3816 = vpack.c.b16 %v2856, %v2840
    %v3817 = vpack.c.b16 %v2873, %v2857
    %v3818 = vpack.c.b16 %v2874, %v2858
    %v3819 = vpack.c.b16 %v2875, %v2859
    %v3820 = vpack.c.b16 %v2876, %v2860
    %v3821 = vpack.c.b16 %v2877, %v2861
    %v3822 = vpack.c.b16 %v2878, %v2862
    %v3823 = vpack.c.b16 %v2879, %v2863
    %v3824 = vpack.c.b16 %v2880, %v2864
    %v3825 = vpack.c.b16 %v2881, %v2865
    %v3826 = vpack.c.b16 %v2882, %v2866
    %v3827 = vpack.c.b16 %v2883, %v2867
    %v3828 = vpack.c.b16 %v2884, %v2868
    %v3829 = vpack.c.b16 %v2885, %v2869
    %v3830 = vpack.c.b16 %v2886, %v2870
    %v3831 = vpack.c.b16 %v2887, %v2871
    %v3832 = vpack.c.b16 %v2888, %v2872
    %v3833 = vpack.c.b16 %v2905, %v2889
    %v3834 = vpack.c.b16 %v2906, %v2890
    %v3835 = vpack.c.b16 %v2907, %v2891
    %v3836 = vpack.c.b16 %v2908, %v2892
    %v3837 = vpack.c.b16 %v2909, %v2893
    %v3838 = vpack.c.b16 %v2910, %v2894
    %v3839 = vpack.c.b16 %v2911, %v2895
    %v3840 = vpack.c.b16 %v2912, %v2896
    %v3841 = vpack.c.b16 %v2913, %v2897
    %v3842 = vpack.c.b16 %v2914, %v2898
    %v3843 = vpack.c.b16 %v2915, %v2899
    %v3844 = vpack.c.b16 %v2916, %v2900
    %v3845 = vpack.c.b16 %v2917, %v2901
    %v3846 = vpack.c.b16 %v2918, %v2902
    %v3847 = vpack.c.b16 %v2919, %v2903
    %v3848 = vpack.c.b16 %v2920, %v2904
    %v3849 = vpack.c.b16 %v2937, %v2921
    %v3850 = vpack.c.b16 %v2938, %v2922
    %v3851 = vpack.c.b16 %v2939, %v2923
    %v3852 = vpack.c.b16 %v2940, %v2924
    %v3853 = vpack.c.b16 %v2941, %v2925
    %v3854 = vpack.c.b16 %v2942, %v2926
    %v3855 = vpack.c.b16 %v2943, %v2927
    %v3856 = vpack.c.b16 %v2944, %v2928
    %v3857 = vpack.c.b16 %v2945, %v2929
    %v3858 = vpack.c.b16 %v2946, %v2930
    %v3859 = vpack.c.b16 %v2947, %v2931
    %v3860 = vpack.c.b16 %v2948, %v2932
    %v3861 = vpack.c.b16 %v2949, %v2933
    %v3862 = vpack.c.b16 %v2950, %v2934
    %v3863 = vpack.c.b16 %v2951, %v2935
    %v3864 = vpack.c.b16 %v2952, %v2936
    %v3865 = vpack.c.b16 %v2969, %v2953
    %v3866 = vpack.c.b16 %v2970, %v2954
    %v3867 = vpack.c.b16 %v2971, %v2955
    %v3868 = vpack.c.b16 %v2972, %v2956
    %v3869 = vpack.c.b16 %v2973, %v2957
    %v3870 = vpack.c.b16 %v2974, %v2958
    %v3871 = vpack.c.b16 %v2975, %v2959
    %v3872 = vpack.c.b16 %v2976, %v2960
    %v3873 = vpack.c.b16 %v2977, %v2961
    %v3874 = vpack.c.b16 %v2978, %v2962
    %v3875 = vpack.c.b16 %v2979, %v2963
    %v3876 = vpack.c.b16 %v2980, %v2964
    %v3877 = vpack.c.b16 %v2981, %v2965
    %v3878 = vpack.c.b16 %v2982, %v2966
    %v3879 = vpack.c.b16 %v2983, %v2967
    %v3880 = vpack.c.b16 %v2984, %v2968
    %v3881 = vpack.c.b16 %v3001, %v2985
    %v3882 = vpack.c.b16 %v3002, %v2986
    %v3883 = vpack.c.b16 %v3003, %v2987
    %v3884 = vpack.c.b16 %v3004, %v2988
    %v3885 = vpack.c.b16 %v3005, %v2989
    %v3886 = vpack.c.b16 %v3006, %v2990
    %v3887 = vpack.c.b16 %v3007, %v2991
    %v3888 = vpack.c.b16 %v3008, %v2992
    %v3889 = vpack.c.b16 %v3009, %v2993
    %v3890 = vpack.c.b16 %v3010, %v2994
    %v3891 = vpack.c.b16 %v3011, %v2995
    %v3892 = vpack.c.b16 %v3012, %v2996
    %v3893 = vpack.c.b16 %v3013, %v2997
    %v3894 = vpack.c.b16 %v3014, %v2998
    %v3895 = vpack.c.b16 %v3015, %v2999
    %v3896 = vpack.c.b16 %v3016, %v3000
    %v3897 = vpack.c.b16 %v3033, %v3017
    %v3898 = vpack.c.b16 %v3034, %v3018
    %v3899 = vpack.c.b16 %v3035, %v3019
    %v3900 = vpack.c.b16 %v3036, %v3020
    %v3901 = vpack.c.b16 %v3037, %v3021
    %v3902 = vpack.c.b16 %v3038, %v3022
    %v3903 = vpack.c.b16 %v3039, %v3023
    %v3904 = vpack.c.b16 %v3040, %v3024
    %v3905 = vpack.c.b16 %v3041, %v3025
    %v3906 = vpack.c.b16 %v3042, %v3026
    %v3907 = vpack.c.b16 %v3043, %v3027
    %v3908 = vpack.c.b16 %v3044, %v3028
    %v3909 = vpack.c.b16 %v3045, %v3029
    %v3910 = vpack.c.b16 %v3046, %v3030
    %v3911 = vpack.c.b16 %v3047, %v3031
    %v3912 = vpack.c.b16 %v3048, %v3032
    %v3913 = vpack.c.b16 %v3065, %v3049
    %v3914 = vpack.c.b16 %v3066, %v3050
    %v3915 = vpack.c.b16 %v3067, %v3051
    %v3916 = vpack.c.b16 %v3068, %v3052
    %v3917 = vpack.c.b16 %v3069, %v3053
    %v3918 = vpack.c.b16 %v3070, %v3054
    %v3919 = vpack.c.b16 %v3071, %v3055
    %v3920 = vpack.c.b16 %v3072, %v3056
    %v3921 = vpack.c.b16 %v3073, %v3057
    %v3922 = vpack.c.b16 %v3074, %v3058
    %v3923 = vpack.c.b16 %v3075, %v3059
    %v3924 = vpack.c.b16 %v3076, %v3060
    %v3925 = vpack.c.b16 %v3077, %v3061
    %v3926 = vpack.c.b16 %v3078, %v3062
    %v3927 = vpack.c.b16 %v3079, %v3063
    %v3928 = vpack.c.b16 %v3080, %v3064
    %v3929 = vpack.c.b16 %v3097, %v3081
    %v3930 = vpack.c.b16 %v3098, %v3082
    %v3931 = vpack.c.b16 %v3099, %v3083
    %v3932 = vpack.c.b16 %v3100, %v3084
    %v3933 = vpack.c.b16 %v3101, %v3085
    %v3934 = vpack.c.b16 %v3102, %v3086
    %v3935 = vpack.c.b16 %v3103, %v3087
    %v3936 = vpack.c.b16 %v3104, %v3088
    %v3937 = vpack.c.b16 %v3105, %v3089
    %v3938 = vpack.c.b16 %v3106, %v3090
    %v3939 = vpack.c.b16 %v3107, %v3091
    %v3940 = vpack.c.b16 %v3108, %v3092
    %v3941 = vpack.c.b16 %v3109, %v3093
    %v3942 = vpack.c.b16 %v3110, %v3094
    %v3943 = vpack.c.b16 %v3111, %v3095
    %v3944 = vpack.c.b16 %v3112, %v3096
    %v3945 = vpack.c.b16 %v3129, %v3113
    %v3946 = vpack.c.b16 %v3130, %v3114
    %v3947 = vpack.c.b16 %v3131, %v3115
    %v3948 = vpack.c.b16 %v3132, %v3116
    %v3949 = vpack.c.b16 %v3133, %v3117
    %v3950 = vpack.c.b16 %v3134, %v3118
    %v3951 = vpack.c.b16 %v3135, %v3119
    %v3952 = vpack.c.b16 %v3136, %v3120
    %v3953 = vpack.c.b16 %v3137, %v3121
    %v3954 = vpack.c.b16 %v3138, %v3122
    %v3955 = vpack.c.b16 %v3139, %v3123
    %v3956 = vpack.c.b16 %v3140, %v3124
    %v3957 = vpack.c.b16 %v3141, %v3125
    %v3958 = vpack.c.b16 %v3142, %v3126
    %v3959 = vpack.c.b16 %v3143, %v3127
    %v3960 = vpack.c.b16 %v3144, %v3128
    %v3961 = vpack.c.b16 %v3161, %v3145
    %v3962 = vpack.c.b16 %v3162, %v3146
    %v3963 = vpack.c.b16 %v3163, %v3147
    %v3964 = vpack.c.b16 %v3164, %v3148
    %v3965 = vpack.c.b16 %v3165, %v3149
    %v3966 = vpack.c.b16 %v3166, %v3150
    %v3967 = vpack.c.b16 %v3167, %v3151
    %v3968 = vpack.c.b16 %v3168, %v3152
    %v3969 = vpack.c.b16 %v3169, %v3153
    %v3970 = vpack.c.b16 %v3170, %v3154
    %v3971 = vpack.c.b16 %v3171, %v3155
    %v3972 = vpack.c.b16 %v3172, %v3156
    %v3973 = vpack.c.b16 %v3173, %v3157
    %v3974 = vpack.c.b16 %v3174, %v3158
    %v3975 = vpack.c.b16 %v3175, %v3159
    %v3976 = vpack.c.b16 %v3176, %v3160
    %v3977 = vpack.c.b16 %v3193, %v3177
    %v3978 = vpack.c.b16 %v3194, %v3178
    %v3979 = vpack.c.b16 %v3195, %v3179
    %v3980 = vpack.c.b16 %v3196, %v3180
    %v3981 = vpack.c.b16 %v3197, %v3181
    %v3982 = vpack.c.b16 %v3198, %v3182
    %v3983 = vpack.c.b16 %v3199, %v3183
    %v3984 = vpack.c.b16 %v3200, %v3184
    %v3985 = vpack.c.b16 %v3201, %v3185
    %v3986 = vpack.c.b16 %v3202, %v3186
    %v3987 = vpack.c.b16 %v3203, %v3187
    %v3988 = vpack.c.b16 %v3204, %v3188
    %v3989 = vpack.c.b16 %v3205, %v3189
    %v3990 = vpack.c.b16 %v3206, %v3190
    %v3991 = vpack.c.b16 %v3207, %v3191
    %v3992 = vpack.c.b16 %v3208, %v3192
    %v3993 = vpack.c.b16 %v3225, %v3209
    %v3994 = vpack.c.b16 %v3226, %v3210
    %v3995 = vpack.c.b16 %v3227, %v3211
    %v3996 = vpack.c.b16 %v3228, %v3212
    %v3997 = vpack.c.b16 %v3229, %v3213
    %v3998 = vpack.c.b16 %v3230, %v3214
    %v3999 = vpack.c.b16 %v3231, %v3215
    %v4000 = vpack.c.b16 %v3232, %v3216
    %v4001 = vpack.c.b16 %v3233, %v3217
    %v4002 = vpack.c.b16 %v3234, %v3218
    %v4003 = vpack.c.b16 %v3235, %v3219
    %v4004 = vpack.c.b16 %v3236, %v3220
    %v4005 = vpack.c.b16 %v3237, %v3221
    %v4006 = vpack.c.b16 %v3238, %v3222
    %v4007 = vpack.c.b16 %v3239, %v3223
    %v4008 = vpack.c.b16 %v3240, %v3224
    %4777 = vmatprep.subr.bf16.mxu0 %v3242
    %4778 = vmatpush1.bf16.msra.mxu0 %v3241
    %4779 = vmatprep.subr.bf16.mxu0 %v3258
    %4780 = vmatpush1.bf16.msra.mxu0 %v3257
    %4781 = vmatprep.subr.bf16.mxu0 %v3274
    %4782 = vmatpush1.bf16.msra.mxu0 %v3273
    %4783 = vmatprep.subr.bf16.mxu0 %v3290
    %4784 = vmatpush1.bf16.msra.mxu0 %v3289
    %4785 = vmatprep.subr.bf16.mxu0 %v3306
    %4786 = vmatpush1.bf16.msra.mxu0 %v3305
    %4787 = vmatprep.subr.bf16.mxu0 %v3322
    %4788 = vmatpush1.bf16.msra.mxu0 %v3321
    %4789 = vmatprep.subr.bf16.mxu0 %v3338
    %4790 = vmatpush1.bf16.msra.mxu0 %v3337
    %4791 = vmatprep.subr.bf16.mxu0 %v3354
    %4792 = vmatpush1.bf16.msra.mxu0 %v3353
    %4793 = vmatprep.subr.bf16.mxu0 %v3370
    %4794 = vmatpush1.bf16.msra.mxu0 %v3369
    %4795 = vmatprep.subr.bf16.mxu0 %v3386
    %4796 = vmatpush1.bf16.msra.mxu0 %v3385
    %4797 = vmatprep.subr.bf16.mxu0 %v3402
    %4798 = vmatpush1.bf16.msra.mxu0 %v3401
    %4799 = vmatprep.subr.bf16.mxu0 %v3418
    %4800 = vmatpush1.bf16.msra.mxu0 %v3417
    %4801 = vmatprep.subr.bf16.mxu0 %v3434
    %4802 = vmatpush1.bf16.msra.mxu0 %v3433
    %4803 = vmatprep.subr.bf16.mxu0 %v3450
    %4804 = vmatpush1.bf16.msra.mxu0 %v3449
    %4805 = vmatprep.subr.bf16.mxu0 %v3466
    %4806 = vmatpush1.bf16.msra.mxu0 %v3465
    %4807 = vmatprep.subr.bf16.mxu0 %v3482
    %4808 = vmatpush1.bf16.msra.mxu0 %v3481
    %4809 = vmatprep.mubr.bf16.mxu0 %v164
    %4810 = vmatmul.mubr.bf16.gmra.mrb[0].mxu0 %v163
    %v4811 = vpop.f32.mrb[0].mxu0
    %v4812 = vadd.f32 0.0, %v4811
    %v4813 = vpop.f32.mrb[0].mxu0
    %v4814 = vadd.f32 0.0, %v4813
    %v4815 = vpop.f32.mrb[0].mxu0
    %v4816 = vadd.f32 0.0, %v4815
    %v4817 = vpop.f32.mrb[0].mxu0
    %v4818 = vadd.f32 0.0, %v4817
    %4819 = vdwg.mxu0
    %4820 = vmatprep.subr.bf16.mxu0 %v3498
    %4821 = vmatpush1.bf16.msra.mxu0 %v3497
    %4822 = vmatprep.subr.bf16.mxu0 %v3514
    %4823 = vmatpush1.bf16.msra.mxu0 %v3513
    %4824 = vmatprep.subr.bf16.mxu0 %v3530
    %4825 = vmatpush1.bf16.msra.mxu0 %v3529
    %4826 = vmatprep.subr.bf16.mxu0 %v3546
    %4827 = vmatpush1.bf16.msra.mxu0 %v3545
    %4828 = vmatprep.subr.bf16.mxu0 %v3562
    %4829 = vmatpush1.bf16.msra.mxu0 %v3561
    %4830 = vmatprep.subr.bf16.mxu0 %v3578
    %4831 = vmatpush1.bf16.msra.mxu0 %v3577
    %4832 = vmatprep.subr.bf16.mxu0 %v3594
    %4833 = vmatpush1.bf16.msra.mxu0 %v3593
    %4834 = vmatprep.subr.bf16.mxu0 %v3610
    %4835 = vmatpush1.bf16.msra.mxu0 %v3609
    %4836 = vmatprep.subr.bf16.mxu0 %v3626
    %4837 = vmatpush1.bf16.msra.mxu0 %v3625
    %4838 = vmatprep.subr.bf16.mxu0 %v3642
    %4839 = vmatpush1.bf16.msra.mxu0 %v3641
    %4840 = vmatprep.subr.bf16.mxu0 %v3658
    %4841 = vmatpush1.bf16.msra.mxu0 %v3657
    %4842 = vmatprep.subr.bf16.mxu0 %v3674
    %4843 = vmatpush1.bf16.msra.mxu0 %v3673
    %4844 = vmatprep.subr.bf16.mxu0 %v3690
    %4845 = vmatpush1.bf16.msra.mxu0 %v3689
    %4846 = vmatprep.subr.bf16.mxu0 %v3706
    %4847 = vmatpush1.bf16.msra.mxu0 %v3705
    %4848 = vmatprep.subr.bf16.mxu0 %v3722
    %4849 = vmatpush1.bf16.msra.mxu0 %v3721
    %4850 = vmatprep.subr.bf16.mxu0 %v3738
    %4851 = vmatpush1.bf16.msra.mxu0 %v3737
    %4852 = vmatprep.mubr.bf16.mxu0 %v166
    %4853 = vmatmul.mubr.bf16.gmra.mrb[0].mxu0 %v165
    %v4854 = vpop.f32.mrb[0].mxu0
    %v4855 = vadd.f32 %v4812, %v4854
    %v4856 = vpop.f32.mrb[0].mxu0
    %v4857 = vadd.f32 %v4814, %v4856
    %v4858 = vpop.f32.mrb[0].mxu0
    %v4859 = vadd.f32 %v4816, %v4858
    %v4860 = vpop.f32.mrb[0].mxu0
    %v4861 = vadd.f32 %v4818, %v4860
    %4862 = vdwg.mxu0
    %4863 = vmatprep.subr.bf16.mxu0 %v3754
    %4864 = vmatpush1.bf16.msra.mxu0 %v3753
    %4865 = vmatprep.subr.bf16.mxu0 %v3770
    %4866 = vmatpush1.bf16.msra.mxu0 %v3769
    %4867 = vmatprep.subr.bf16.mxu0 %v3786
    %4868 = vmatpush1.bf16.msra.mxu0 %v3785
    %4869 = vmatprep.subr.bf16.mxu0 %v3802
    %4870 = vmatpush1.bf16.msra.mxu0 %v3801
    %4871 = vmatprep.subr.bf16.mxu0 %v3818
    %4872 = vmatpush1.bf16.msra.mxu0 %v3817
    %4873 = vmatprep.subr.bf16.mxu0 %v3834
    %4874 = vmatpush1.bf16.msra.mxu0 %v3833
    %4875 = vmatprep.subr.bf16.mxu0 %v3850
    %4876 = vmatpush1.bf16.msra.mxu0 %v3849
    %4877 = vmatprep.subr.bf16.mxu0 %v3866
    %4878 = vmatpush1.bf16.msra.mxu0 %v3865
    %4879 = vmatprep.subr.bf16.mxu0 %v3882
    %4880 = vmatpush1.bf16.msra.mxu0 %v3881
    %4881 = vmatprep.subr.bf16.mxu0 %v3898
    %4882 = vmatpush1.bf16.msra.mxu0 %v3897
    %4883 = vmatprep.subr.bf16.mxu0 %v3914
    %4884 = vmatpush1.bf16.msra.mxu0 %v3913
    %4885 = vmatprep.subr.bf16.mxu0 %v3930
    %4886 = vmatpush1.bf16.msra.mxu0 %v3929
    %4887 = vmatprep.subr.bf16.mxu0 %v3946
    %4888 = vmatpush1.bf16.msra.mxu0 %v3945
    %4889 = vmatprep.subr.bf16.mxu0 %v3962
    %4890 = vmatpush1.bf16.msra.mxu0 %v3961
    %4891 = vmatprep.subr.bf16.mxu0 %v3978
    %4892 = vmatpush1.bf16.msra.mxu0 %v3977
    %4893 = vmatprep.subr.bf16.mxu0 %v3994
    %4894 = vmatpush1.bf16.msra.mxu0 %v3993
    %4895 = vmatprep.mubr.bf16.mxu0 %v168
    %4896 = vmatmul.mubr.bf16.gmra.mrb[0].mxu0 %v167
    %v4897 = vpop.f32.mrb[0].mxu0
    %v4898 = vadd.f32 %v4855, %v4897
    %v4899 = vpop.f32.mrb[0].mxu0
    %v4900 = vadd.f32 %v4857, %v4899
    %v4901 = vpop.f32.mrb[0].mxu0
    %v4902 = vadd.f32 %v4859, %v4901
    %v4903 = vpop.f32.mrb[0].mxu0
    %v4904 = vadd.f32 %v4861, %v4903
    %4905 = vdwg.mxu0
    %4906 = vmatprep.subr.bf16.mxu0 %v3244
    %4907 = vmatpush1.bf16.msra.mxu0 %v3243
    %4908 = vmatprep.subr.bf16.mxu0 %v3260
    %4909 = vmatpush1.bf16.msra.mxu0 %v3259
    %4910 = vmatprep.subr.bf16.mxu0 %v3276
    %4911 = vmatpush1.bf16.msra.mxu0 %v3275
    %4912 = vmatprep.subr.bf16.mxu0 %v3292
    %4913 = vmatpush1.bf16.msra.mxu0 %v3291
    %4914 = vmatprep.subr.bf16.mxu0 %v3308
    %4915 = vmatpush1.bf16.msra.mxu0 %v3307
    %4916 = vmatprep.subr.bf16.mxu0 %v3324
    %4917 = vmatpush1.bf16.msra.mxu0 %v3323
    %4918 = vmatprep.subr.bf16.mxu0 %v3340
    %4919 = vmatpush1.bf16.msra.mxu0 %v3339
    %4920 = vmatprep.subr.bf16.mxu0 %v3356
    %4921 = vmatpush1.bf16.msra.mxu0 %v3355
    %4922 = vmatprep.subr.bf16.mxu0 %v3372
    %4923 = vmatpush1.bf16.msra.mxu0 %v3371
    %4924 = vmatprep.subr.bf16.mxu0 %v3388
    %4925 = vmatpush1.bf16.msra.mxu0 %v3387
    %4926 = vmatprep.subr.bf16.mxu0 %v3404
    %4927 = vmatpush1.bf16.msra.mxu0 %v3403
    %4928 = vmatprep.subr.bf16.mxu0 %v3420
    %4929 = vmatpush1.bf16.msra.mxu0 %v3419
    %4930 = vmatprep.subr.bf16.mxu0 %v3436
    %4931 = vmatpush1.bf16.msra.mxu0 %v3435
    %4932 = vmatprep.subr.bf16.mxu0 %v3452
    %4933 = vmatpush1.bf16.msra.mxu0 %v3451
    %4934 = vmatprep.subr.bf16.mxu0 %v3468
    %4935 = vmatpush1.bf16.msra.mxu0 %v3467
    %4936 = vmatprep.subr.bf16.mxu0 %v3484
    %4937 = vmatpush1.bf16.msra.mxu0 %v3483
    %4938 = vmatprep.mubr.bf16.mxu0 %v164
    %4939 = vmatmul.mubr.bf16.gmra.mrb[0].mxu0 %v163
    %v4940 = vpop.f32.mrb[0].mxu0
    %v4941 = vadd.f32 0.0, %v4940
    %v4942 = vpop.f32.mrb[0].mxu0
    %v4943 = vadd.f32 0.0, %v4942
    %v4944 = vpop.f32.mrb[0].mxu0
    %v4945 = vadd.f32 0.0, %v4944
    %v4946 = vpop.f32.mrb[0].mxu0
    %v4947 = vadd.f32 0.0, %v4946
    %4948 = vdwg.mxu0
    %4949 = vmatprep.subr.bf16.mxu0 %v3500
    %4950 = vmatpush1.bf16.msra.mxu0 %v3499
    %4951 = vmatprep.subr.bf16.mxu0 %v3516
    %4952 = vmatpush1.bf16.msra.mxu0 %v3515
    %4953 = vmatprep.subr.bf16.mxu0 %v3532
    %4954 = vmatpush1.bf16.msra.mxu0 %v3531
    %4955 = vmatprep.subr.bf16.mxu0 %v3548
    %4956 = vmatpush1.bf16.msra.mxu0 %v3547
    %4957 = vmatprep.subr.bf16.mxu0 %v3564
    %4958 = vmatpush1.bf16.msra.mxu0 %v3563
    %4959 = vmatprep.subr.bf16.mxu0 %v3580
    %4960 = vmatpush1.bf16.msra.mxu0 %v3579
    %4961 = vmatprep.subr.bf16.mxu0 %v3596
    %4962 = vmatpush1.bf16.msra.mxu0 %v3595
    %4963 = vmatprep.subr.bf16.mxu0 %v3612
    %4964 = vmatpush1.bf16.msra.mxu0 %v3611
    %4965 = vmatprep.subr.bf16.mxu0 %v3628
    %4966 = vmatpush1.bf16.msra.mxu0 %v3627
    %4967 = vmatprep.subr.bf16.mxu0 %v3644
    %4968 = vmatpush1.bf16.msra.mxu0 %v3643
    %4969 = vmatprep.subr.bf16.mxu0 %v3660
    %4970 = vmatpush1.bf16.msra.mxu0 %v3659
    %4971 = vmatprep.subr.bf16.mxu0 %v3676
    %4972 = vmatpush1.bf16.msra.mxu0 %v3675
    %4973 = vmatprep.subr.bf16.mxu0 %v3692
    %4974 = vmatpush1.bf16.msra.mxu0 %v3691
    %4975 = vmatprep.subr.bf16.mxu0 %v3708
    %4976 = vmatpush1.bf16.msra.mxu0 %v3707
    %4977 = vmatprep.subr.bf16.mxu0 %v3724
    %4978 = vmatpush1.bf16.msra.mxu0 %v3723
    %4979 = vmatprep.subr.bf16.mxu0 %v3740
    %4980 = vmatpush1.bf16.msra.mxu0 %v3739
    %4981 = vmatprep.mubr.bf16.mxu0 %v166
    %4982 = vmatmul.mubr.bf16.gmra.mrb[0].mxu0 %v165
    %v4983 = vpop.f32.mrb[0].mxu0
    %v4984 = vadd.f32 %v4941, %v4983
    %v4985 = vpop.f32.mrb[0].mxu0
    %v4986 = vadd.f32 %v4943, %v4985
    %v4987 = vpop.f32.mrb[0].mxu0
    %v4988 = vadd.f32 %v4945, %v4987
    %v4989 = vpop.f32.mrb[0].mxu0
    %v4990 = vadd.f32 %v4947, %v4989
    %4991 = vdwg.mxu0
    %4992 = vmatprep.subr.bf16.mxu0 %v3756
    %4993 = vmatpush1.bf16.msra.mxu0 %v3755
    %4994 = vmatprep.subr.bf16.mxu0 %v3772
    %4995 = vmatpush1.bf16.msra.mxu0 %v3771
    %4996 = vmatprep.subr.bf16.mxu0 %v3788
    %4997 = vmatpush1.bf16.msra.mxu0 %v3787
    %4998 = vmatprep.subr.bf16.mxu0 %v3804
    %4999 = vmatpush1.bf16.msra.mxu0 %v3803
    %5000 = vmatprep.subr.bf16.mxu0 %v3820
    %5001 = vmatpush1.bf16.msra.mxu0 %v3819
    %5002 = vmatprep.subr.bf16.mxu0 %v3836
    %5003 = vmatpush1.bf16.msra.mxu0 %v3835
    %5004 = vmatprep.subr.bf16.mxu0 %v3852
    %5005 = vmatpush1.bf16.msra.mxu0 %v3851
    %5006 = vmatprep.subr.bf16.mxu0 %v3868
    %5007 = vmatpush1.bf16.msra.mxu0 %v3867
    %5008 = vmatprep.subr.bf16.mxu0 %v3884
    %5009 = vmatpush1.bf16.msra.mxu0 %v3883
    %5010 = vmatprep.subr.bf16.mxu0 %v3900
    %5011 = vmatpush1.bf16.msra.mxu0 %v3899
    %5012 = vmatprep.subr.bf16.mxu0 %v3916
    %5013 = vmatpush1.bf16.msra.mxu0 %v3915
    %5014 = vmatprep.subr.bf16.mxu0 %v3932
    %5015 = vmatpush1.bf16.msra.mxu0 %v3931
    %5016 = vmatprep.subr.bf16.mxu0 %v3948
    %5017 = vmatpush1.bf16.msra.mxu0 %v3947
    %5018 = vmatprep.subr.bf16.mxu0 %v3964
    %5019 = vmatpush1.bf16.msra.mxu0 %v3963
    %5020 = vmatprep.subr.bf16.mxu0 %v3980
    %5021 = vmatpush1.bf16.msra.mxu0 %v3979
    %5022 = vmatprep.subr.bf16.mxu0 %v3996
    %5023 = vmatpush1.bf16.msra.mxu0 %v3995
    %5024 = vmatprep.mubr.bf16.mxu0 %v168
    %5025 = vmatmul.mubr.bf16.gmra.mrb[0].mxu0 %v167
    %v5026 = vpop.f32.mrb[0].mxu0
    %v5027 = vadd.f32 %v4984, %v5026
    %v5028 = vpop.f32.mrb[0].mxu0
    %v5029 = vadd.f32 %v4986, %v5028
    %v5030 = vpop.f32.mrb[0].mxu0
    %v5031 = vadd.f32 %v4988, %v5030
    %v5032 = vpop.f32.mrb[0].mxu0
    %v5033 = vadd.f32 %v4990, %v5032
    %5034 = vdwg.mxu0
    %5035 = vmatprep.subr.bf16.mxu0 %v3246
    %5036 = vmatpush1.bf16.msra.mxu0 %v3245
    %5037 = vmatprep.subr.bf16.mxu0 %v3262
    %5038 = vmatpush1.bf16.msra.mxu0 %v3261
    %5039 = vmatprep.subr.bf16.mxu0 %v3278
    %5040 = vmatpush1.bf16.msra.mxu0 %v3277
    %5041 = vmatprep.subr.bf16.mxu0 %v3294
    %5042 = vmatpush1.bf16.msra.mxu0 %v3293
    %5043 = vmatprep.subr.bf16.mxu0 %v3310
    %5044 = vmatpush1.bf16.msra.mxu0 %v3309
    %5045 = vmatprep.subr.bf16.mxu0 %v3326
    %5046 = vmatpush1.bf16.msra.mxu0 %v3325
    %5047 = vmatprep.subr.bf16.mxu0 %v3342
    %5048 = vmatpush1.bf16.msra.mxu0 %v3341
    %5049 = vmatprep.subr.bf16.mxu0 %v3358
    %5050 = vmatpush1.bf16.msra.mxu0 %v3357
    %5051 = vmatprep.subr.bf16.mxu0 %v3374
    %5052 = vmatpush1.bf16.msra.mxu0 %v3373
    %5053 = vmatprep.subr.bf16.mxu0 %v3390
    %5054 = vmatpush1.bf16.msra.mxu0 %v3389
    %5055 = vmatprep.subr.bf16.mxu0 %v3406
    %5056 = vmatpush1.bf16.msra.mxu0 %v3405
    %5057 = vmatprep.subr.bf16.mxu0 %v3422
    %5058 = vmatpush1.bf16.msra.mxu0 %v3421
    %5059 = vmatprep.subr.bf16.mxu0 %v3438
    %5060 = vmatpush1.bf16.msra.mxu0 %v3437
    %5061 = vmatprep.subr.bf16.mxu0 %v3454
    %5062 = vmatpush1.bf16.msra.mxu0 %v3453
    %5063 = vmatprep.subr.bf16.mxu0 %v3470
    %5064 = vmatpush1.bf16.msra.mxu0 %v3469
    %5065 = vmatprep.subr.bf16.mxu0 %v3486
    %5066 = vmatpush1.bf16.msra.mxu0 %v3485
    %5067 = vmatprep.mubr.bf16.mxu0 %v164
    %5068 = vmatmul.mubr.bf16.gmra.mrb[0].mxu0 %v163
    %v5069 = vpop.f32.mrb[0].mxu0
    %v5070 = vadd.f32 0.0, %v5069
    %v5071 = vpop.f32.mrb[0].mxu0
    %v5072 = vadd.f32 0.0, %v5071
    %v5073 = vpop.f32.mrb[0].mxu0
    %v5074 = vadd.f32 0.0, %v5073
    %v5075 = vpop.f32.mrb[0].mxu0
    %v5076 = vadd.f32 0.0, %v5075
    %5077 = vdwg.mxu0
    %5078 = vmatprep.subr.bf16.mxu0 %v3502
    %5079 = vmatpush1.bf16.msra.mxu0 %v3501
    %5080 = vmatprep.subr.bf16.mxu0 %v3518
    %5081 = vmatpush1.bf16.msra.mxu0 %v3517
    %5082 = vmatprep.subr.bf16.mxu0 %v3534
    %5083 = vmatpush1.bf16.msra.mxu0 %v3533
    %5084 = vmatprep.subr.bf16.mxu0 %v3550
    %5085 = vmatpush1.bf16.msra.mxu0 %v3549
    %5086 = vmatprep.subr.bf16.mxu0 %v3566
    %5087 = vmatpush1.bf16.msra.mxu0 %v3565
    %5088 = vmatprep.subr.bf16.mxu0 %v3582
    %5089 = vmatpush1.bf16.msra.mxu0 %v3581
    %5090 = vmatprep.subr.bf16.mxu0 %v3598
    %5091 = vmatpush1.bf16.msra.mxu0 %v3597
    %5092 = vmatprep.subr.bf16.mxu0 %v3614
    %5093 = vmatpush1.bf16.msra.mxu0 %v3613
    %5094 = vmatprep.subr.bf16.mxu0 %v3630
    %5095 = vmatpush1.bf16.msra.mxu0 %v3629
    %5096 = vmatprep.subr.bf16.mxu0 %v3646
    %5097 = vmatpush1.bf16.msra.mxu0 %v3645
    %5098 = vmatprep.subr.bf16.mxu0 %v3662
    %5099 = vmatpush1.bf16.msra.mxu0 %v3661
    %5100 = vmatprep.subr.bf16.mxu0 %v3678
    %5101 = vmatpush1.bf16.msra.mxu0 %v3677
    %5102 = vmatprep.subr.bf16.mxu0 %v3694
    %5103 = vmatpush1.bf16.msra.mxu0 %v3693
    %5104 = vmatprep.subr.bf16.mxu0 %v3710
    %5105 = vmatpush1.bf16.msra.mxu0 %v3709
    %5106 = vmatprep.subr.bf16.mxu0 %v3726
    %5107 = vmatpush1.bf16.msra.mxu0 %v3725
    %5108 = vmatprep.subr.bf16.mxu0 %v3742
    %5109 = vmatpush1.bf16.msra.mxu0 %v3741
    %5110 = vmatprep.mubr.bf16.mxu0 %v166
    %5111 = vmatmul.mubr.bf16.gmra.mrb[0].mxu0 %v165
    %v5112 = vpop.f32.mrb[0].mxu0
    %v5113 = vadd.f32 %v5070, %v5112
    %v5114 = vpop.f32.mrb[0].mxu0
    %v5115 = vadd.f32 %v5072, %v5114
    %v5116 = vpop.f32.mrb[0].mxu0
    %v5117 = vadd.f32 %v5074, %v5116
    %v5118 = vpop.f32.mrb[0].mxu0
    %v5119 = vadd.f32 %v5076, %v5118
    %5120 = vdwg.mxu0
    %5121 = vmatprep.subr.bf16.mxu0 %v3758
    %5122 = vmatpush1.bf16.msra.mxu0 %v3757
    %5123 = vmatprep.subr.bf16.mxu0 %v3774
    %5124 = vmatpush1.bf16.msra.mxu0 %v3773
    %5125 = vmatprep.subr.bf16.mxu0 %v3790
    %5126 = vmatpush1.bf16.msra.mxu0 %v3789
    %5127 = vmatprep.subr.bf16.mxu0 %v3806
    %5128 = vmatpush1.bf16.msra.mxu0 %v3805
    %5129 = vmatprep.subr.bf16.mxu0 %v3822
    %5130 = vmatpush1.bf16.msra.mxu0 %v3821
    %5131 = vmatprep.subr.bf16.mxu0 %v3838
    %5132 = vmatpush1.bf16.msra.mxu0 %v3837
    %5133 = vmatprep.subr.bf16.mxu0 %v3854
    %5134 = vmatpush1.bf16.msra.mxu0 %v3853
    %5135 = vmatprep.subr.bf16.mxu0 %v3870
    %5136 = vmatpush1.bf16.msra.mxu0 %v3869
    %5137 = vmatprep.subr.bf16.mxu0 %v3886
    %5138 = vmatpush1.bf16.msra.mxu0 %v3885
    %5139 = vmatprep.subr.bf16.mxu0 %v3902
    %5140 = vmatpush1.bf16.msra.mxu0 %v3901
    %5141 = vmatprep.subr.bf16.mxu0 %v3918
    %5142 = vmatpush1.bf16.msra.mxu0 %v3917
    %5143 = vmatprep.subr.bf16.mxu0 %v3934
    %5144 = vmatpush1.bf16.msra.mxu0 %v3933
    %5145 = vmatprep.subr.bf16.mxu0 %v3950
    %5146 = vmatpush1.bf16.msra.mxu0 %v3949
    %5147 = vmatprep.subr.bf16.mxu0 %v3966
    %5148 = vmatpush1.bf16.msra.mxu0 %v3965
    %5149 = vmatprep.subr.bf16.mxu0 %v3982
    %5150 = vmatpush1.bf16.msra.mxu0 %v3981
    %5151 = vmatprep.subr.bf16.mxu0 %v3998
    %5152 = vmatpush1.bf16.msra.mxu0 %v3997
    %5153 = vmatprep.mubr.bf16.mxu0 %v168
    %5154 = vmatmul.mubr.bf16.gmra.mrb[0].mxu0 %v167
    %v5155 = vpop.f32.mrb[0].mxu0
    %v5156 = vadd.f32 %v5113, %v5155
    %v5157 = vpop.f32.mrb[0].mxu0
    %v5158 = vadd.f32 %v5115, %v5157
    %v5159 = vpop.f32.mrb[0].mxu0
    %v5160 = vadd.f32 %v5117, %v5159
    %v5161 = vpop.f32.mrb[0].mxu0
    %v5162 = vadd.f32 %v5119, %v5161
    %5163 = vdwg.mxu0
    %5164 = vmatprep.subr.bf16.mxu0 %v3248
    %5165 = vmatpush1.bf16.msra.mxu0 %v3247
    %5166 = vmatprep.subr.bf16.mxu0 %v3264
    %5167 = vmatpush1.bf16.msra.mxu0 %v3263
    %5168 = vmatprep.subr.bf16.mxu0 %v3280
    %5169 = vmatpush1.bf16.msra.mxu0 %v3279
    %5170 = vmatprep.subr.bf16.mxu0 %v3296
    %5171 = vmatpush1.bf16.msra.mxu0 %v3295
    %5172 = vmatprep.subr.bf16.mxu0 %v3312
    %5173 = vmatpush1.bf16.msra.mxu0 %v3311
    %5174 = vmatprep.subr.bf16.mxu0 %v3328
    %5175 = vmatpush1.bf16.msra.mxu0 %v3327
    %5176 = vmatprep.subr.bf16.mxu0 %v3344
    %5177 = vmatpush1.bf16.msra.mxu0 %v3343
    %5178 = vmatprep.subr.bf16.mxu0 %v3360
    %5179 = vmatpush1.bf16.msra.mxu0 %v3359
    %5180 = vmatprep.subr.bf16.mxu0 %v3376
    %5181 = vmatpush1.bf16.msra.mxu0 %v3375
    %5182 = vmatprep.subr.bf16.mxu0 %v3392
    %5183 = vmatpush1.bf16.msra.mxu0 %v3391
    %5184 = vmatprep.subr.bf16.mxu0 %v3408
    %5185 = vmatpush1.bf16.msra.mxu0 %v3407
    %5186 = vmatprep.subr.bf16.mxu0 %v3424
    %5187 = vmatpush1.bf16.msra.mxu0 %v3423
    %5188 = vmatprep.subr.bf16.mxu0 %v3440
    %5189 = vmatpush1.bf16.msra.mxu0 %v3439
    %5190 = vmatprep.subr.bf16.mxu0 %v3456
    %5191 = vmatpush1.bf16.msra.mxu0 %v3455
    %5192 = vmatprep.subr.bf16.mxu0 %v3472
    %5193 = vmatpush1.bf16.msra.mxu0 %v3471
    %5194 = vmatprep.subr.bf16.mxu0 %v3488
    %5195 = vmatpush1.bf16.msra.mxu0 %v3487
    %5196 = vmatprep.mubr.bf16.mxu0 %v164
    %5197 = vmatmul.mubr.bf16.gmra.mrb[0].mxu0 %v163
    %v5198 = vpop.f32.mrb[0].mxu0
    %v5199 = vadd.f32 0.0, %v5198
    %v5200 = vpop.f32.mrb[0].mxu0
    %v5201 = vadd.f32 0.0, %v5200
    %v5202 = vpop.f32.mrb[0].mxu0
    %v5203 = vadd.f32 0.0, %v5202
    %v5204 = vpop.f32.mrb[0].mxu0
    %v5205 = vadd.f32 0.0, %v5204
    %5206 = vdwg.mxu0
    %5207 = vmatprep.subr.bf16.mxu0 %v3504
    %5208 = vmatpush1.bf16.msra.mxu0 %v3503
    %5209 = vmatprep.subr.bf16.mxu0 %v3520
    %5210 = vmatpush1.bf16.msra.mxu0 %v3519
    %5211 = vmatprep.subr.bf16.mxu0 %v3536
    %5212 = vmatpush1.bf16.msra.mxu0 %v3535
    %5213 = vmatprep.subr.bf16.mxu0 %v3552
    %5214 = vmatpush1.bf16.msra.mxu0 %v3551
    %5215 = vmatprep.subr.bf16.mxu0 %v3568
    %5216 = vmatpush1.bf16.msra.mxu0 %v3567
    %5217 = vmatprep.subr.bf16.mxu0 %v3584
    %5218 = vmatpush1.bf16.msra.mxu0 %v3583
    %5219 = vmatprep.subr.bf16.mxu0 %v3600
    %5220 = vmatpush1.bf16.msra.mxu0 %v3599
    %5221 = vmatprep.subr.bf16.mxu0 %v3616
    %5222 = vmatpush1.bf16.msra.mxu0 %v3615
    %5223 = vmatprep.subr.bf16.mxu0 %v3632
    %5224 = vmatpush1.bf16.msra.mxu0 %v3631
    %5225 = vmatprep.subr.bf16.mxu0 %v3648
    %5226 = vmatpush1.bf16.msra.mxu0 %v3647
    %5227 = vmatprep.subr.bf16.mxu0 %v3664
    %5228 = vmatpush1.bf16.msra.mxu0 %v3663
    %5229 = vmatprep.subr.bf16.mxu0 %v3680
    %5230 = vmatpush1.bf16.msra.mxu0 %v3679
    %5231 = vmatprep.subr.bf16.mxu0 %v3696
    %5232 = vmatpush1.bf16.msra.mxu0 %v3695
    %5233 = vmatprep.subr.bf16.mxu0 %v3712
    %5234 = vmatpush1.bf16.msra.mxu0 %v3711
    %5235 = vmatprep.subr.bf16.mxu0 %v3728
    %5236 = vmatpush1.bf16.msra.mxu0 %v3727
    %5237 = vmatprep.subr.bf16.mxu0 %v3744
    %5238 = vmatpush1.bf16.msra.mxu0 %v3743
    %5239 = vmatprep.mubr.bf16.mxu0 %v166
    %5240 = vmatmul.mubr.bf16.gmra.mrb[0].mxu0 %v165
    %v5241 = vpop.f32.mrb[0].mxu0
    %v5242 = vadd.f32 %v5199, %v5241
    %v5243 = vpop.f32.mrb[0].mxu0
    %v5244 = vadd.f32 %v5201, %v5243
    %v5245 = vpop.f32.mrb[0].mxu0
    %v5246 = vadd.f32 %v5203, %v5245
    %v5247 = vpop.f32.mrb[0].mxu0
    %v5248 = vadd.f32 %v5205, %v5247
    %5249 = vdwg.mxu0
    %5250 = vmatprep.subr.bf16.mxu0 %v3760
    %5251 = vmatpush1.bf16.msra.mxu0 %v3759
    %5252 = vmatprep.subr.bf16.mxu0 %v3776
    %5253 = vmatpush1.bf16.msra.mxu0 %v3775
    %5254 = vmatprep.subr.bf16.mxu0 %v3792
    %5255 = vmatpush1.bf16.msra.mxu0 %v3791
    %5256 = vmatprep.subr.bf16.mxu0 %v3808
    %5257 = vmatpush1.bf16.msra.mxu0 %v3807
    %5258 = vmatprep.subr.bf16.mxu0 %v3824
    %5259 = vmatpush1.bf16.msra.mxu0 %v3823
    %5260 = vmatprep.subr.bf16.mxu0 %v3840
    %5261 = vmatpush1.bf16.msra.mxu0 %v3839
    %5262 = vmatprep.subr.bf16.mxu0 %v3856
    %5263 = vmatpush1.bf16.msra.mxu0 %v3855
    %5264 = vmatprep.subr.bf16.mxu0 %v3872
    %5265 = vmatpush1.bf16.msra.mxu0 %v3871
    %5266 = vmatprep.subr.bf16.mxu0 %v3888
    %5267 = vmatpush1.bf16.msra.mxu0 %v3887
    %5268 = vmatprep.subr.bf16.mxu0 %v3904
    %5269 = vmatpush1.bf16.msra.mxu0 %v3903
    %5270 = vmatprep.subr.bf16.mxu0 %v3920
    %5271 = vmatpush1.bf16.msra.mxu0 %v3919
    %5272 = vmatprep.subr.bf16.mxu0 %v3936
    %5273 = vmatpush1.bf16.msra.mxu0 %v3935
    %5274 = vmatprep.subr.bf16.mxu0 %v3952
    %5275 = vmatpush1.bf16.msra.mxu0 %v3951
    %5276 = vmatprep.subr.bf16.mxu0 %v3968
    %5277 = vmatpush1.bf16.msra.mxu0 %v3967
    %5278 = vmatprep.subr.bf16.mxu0 %v3984
    %5279 = vmatpush1.bf16.msra.mxu0 %v3983
    %5280 = vmatprep.subr.bf16.mxu0 %v4000
    %5281 = vmatpush1.bf16.msra.mxu0 %v3999
    %5282 = vmatprep.mubr.bf16.mxu0 %v168
    %5283 = vmatmul.mubr.bf16.gmra.mrb[0].mxu0 %v167
    %v5284 = vpop.f32.mrb[0].mxu0
    %v5285 = vadd.f32 %v5242, %v5284
    %v5286 = vpop.f32.mrb[0].mxu0
    %v5287 = vadd.f32 %v5244, %v5286
    %v5288 = vpop.f32.mrb[0].mxu0
    %v5289 = vadd.f32 %v5246, %v5288
    %v5290 = vpop.f32.mrb[0].mxu0
    %v5291 = vadd.f32 %v5248, %v5290
    %5292 = vdwg.mxu0
    %5293 = vmatprep.subr.bf16.mxu0 %v3250
    %5294 = vmatpush1.bf16.msra.mxu0 %v3249
    %5295 = vmatprep.subr.bf16.mxu0 %v3266
    %5296 = vmatpush1.bf16.msra.mxu0 %v3265
    %5297 = vmatprep.subr.bf16.mxu0 %v3282
    %5298 = vmatpush1.bf16.msra.mxu0 %v3281
    %5299 = vmatprep.subr.bf16.mxu0 %v3298
    %5300 = vmatpush1.bf16.msra.mxu0 %v3297
    %5301 = vmatprep.subr.bf16.mxu0 %v3314
    %5302 = vmatpush1.bf16.msra.mxu0 %v3313
    %5303 = vmatprep.subr.bf16.mxu0 %v3330
    %5304 = vmatpush1.bf16.msra.mxu0 %v3329
    %5305 = vmatprep.subr.bf16.mxu0 %v3346
    %5306 = vmatpush1.bf16.msra.mxu0 %v3345
    %5307 = vmatprep.subr.bf16.mxu0 %v3362
    %5308 = vmatpush1.bf16.msra.mxu0 %v3361
    %5309 = vmatprep.subr.bf16.mxu0 %v3378
    %5310 = vmatpush1.bf16.msra.mxu0 %v3377
    %5311 = vmatprep.subr.bf16.mxu0 %v3394
    %5312 = vmatpush1.bf16.msra.mxu0 %v3393
    %5313 = vmatprep.subr.bf16.mxu0 %v3410
    %5314 = vmatpush1.bf16.msra.mxu0 %v3409
    %5315 = vmatprep.subr.bf16.mxu0 %v3426
    %5316 = vmatpush1.bf16.msra.mxu0 %v3425
    %5317 = vmatprep.subr.bf16.mxu0 %v3442
    %5318 = vmatpush1.bf16.msra.mxu0 %v3441
    %5319 = vmatprep.subr.bf16.mxu0 %v3458
    %5320 = vmatpush1.bf16.msra.mxu0 %v3457
    %5321 = vmatprep.subr.bf16.mxu0 %v3474
    %5322 = vmatpush1.bf16.msra.mxu0 %v3473
    %5323 = vmatprep.subr.bf16.mxu0 %v3490
    %5324 = vmatpush1.bf16.msra.mxu0 %v3489
    %5325 = vmatprep.mubr.bf16.mxu0 %v164
    %5326 = vmatmul.mubr.bf16.gmra.mrb[0].mxu0 %v163
    %v5327 = vpop.f32.mrb[0].mxu0
    %v5328 = vadd.f32 0.0, %v5327
    %v5329 = vpop.f32.mrb[0].mxu0
    %v5330 = vadd.f32 0.0, %v5329
    %v5331 = vpop.f32.mrb[0].mxu0
    %v5332 = vadd.f32 0.0, %v5331
    %v5333 = vpop.f32.mrb[0].mxu0
    %v5334 = vadd.f32 0.0, %v5333
    %5335 = vdwg.mxu0
    %5336 = vmatprep.subr.bf16.mxu0 %v3506
    %5337 = vmatpush1.bf16.msra.mxu0 %v3505
    %5338 = vmatprep.subr.bf16.mxu0 %v3522
    %5339 = vmatpush1.bf16.msra.mxu0 %v3521
    %5340 = vmatprep.subr.bf16.mxu0 %v3538
    %5341 = vmatpush1.bf16.msra.mxu0 %v3537
    %5342 = vmatprep.subr.bf16.mxu0 %v3554
    %5343 = vmatpush1.bf16.msra.mxu0 %v3553
    %5344 = vmatprep.subr.bf16.mxu0 %v3570
    %5345 = vmatpush1.bf16.msra.mxu0 %v3569
    %5346 = vmatprep.subr.bf16.mxu0 %v3586
    %5347 = vmatpush1.bf16.msra.mxu0 %v3585
    %5348 = vmatprep.subr.bf16.mxu0 %v3602
    %5349 = vmatpush1.bf16.msra.mxu0 %v3601
    %5350 = vmatprep.subr.bf16.mxu0 %v3618
    %5351 = vmatpush1.bf16.msra.mxu0 %v3617
    %5352 = vmatprep.subr.bf16.mxu0 %v3634
    %5353 = vmatpush1.bf16.msra.mxu0 %v3633
    %5354 = vmatprep.subr.bf16.mxu0 %v3650
    %5355 = vmatpush1.bf16.msra.mxu0 %v3649
    %5356 = vmatprep.subr.bf16.mxu0 %v3666
    %5357 = vmatpush1.bf16.msra.mxu0 %v3665
    %5358 = vmatprep.subr.bf16.mxu0 %v3682
    %5359 = vmatpush1.bf16.msra.mxu0 %v3681
    %5360 = vmatprep.subr.bf16.mxu0 %v3698
    %5361 = vmatpush1.bf16.msra.mxu0 %v3697
    %5362 = vmatprep.subr.bf16.mxu0 %v3714
    %5363 = vmatpush1.bf16.msra.mxu0 %v3713
    %5364 = vmatprep.subr.bf16.mxu0 %v3730
    %5365 = vmatpush1.bf16.msra.mxu0 %v3729
    %5366 = vmatprep.subr.bf16.mxu0 %v3746
    %5367 = vmatpush1.bf16.msra.mxu0 %v3745
    %5368 = vmatprep.mubr.bf16.mxu0 %v166
    %5369 = vmatmul.mubr.bf16.gmra.mrb[0].mxu0 %v165
    %v5370 = vpop.f32.mrb[0].mxu0
    %v5371 = vadd.f32 %v5328, %v5370
    %v5372 = vpop.f32.mrb[0].mxu0
    %v5373 = vadd.f32 %v5330, %v5372
    %v5374 = vpop.f32.mrb[0].mxu0
    %v5375 = vadd.f32 %v5332, %v5374
    %v5376 = vpop.f32.mrb[0].mxu0
    %v5377 = vadd.f32 %v5334, %v5376
    %5378 = vdwg.mxu0
    %5379 = vmatprep.subr.bf16.mxu0 %v3762
    %5380 = vmatpush1.bf16.msra.mxu0 %v3761
    %5381 = vmatprep.subr.bf16.mxu0 %v3778
    %5382 = vmatpush1.bf16.msra.mxu0 %v3777
    %5383 = vmatprep.subr.bf16.mxu0 %v3794
    %5384 = vmatpush1.bf16.msra.mxu0 %v3793
    %5385 = vmatprep.subr.bf16.mxu0 %v3810
    %5386 = vmatpush1.bf16.msra.mxu0 %v3809
    %5387 = vmatprep.subr.bf16.mxu0 %v3826
    %5388 = vmatpush1.bf16.msra.mxu0 %v3825
    %5389 = vmatprep.subr.bf16.mxu0 %v3842
    %5390 = vmatpush1.bf16.msra.mxu0 %v3841
    %5391 = vmatprep.subr.bf16.mxu0 %v3858
    %5392 = vmatpush1.bf16.msra.mxu0 %v3857
    %5393 = vmatprep.subr.bf16.mxu0 %v3874
    %5394 = vmatpush1.bf16.msra.mxu0 %v3873
    %5395 = vmatprep.subr.bf16.mxu0 %v3890
    %5396 = vmatpush1.bf16.msra.mxu0 %v3889
    %5397 = vmatprep.subr.bf16.mxu0 %v3906
    %5398 = vmatpush1.bf16.msra.mxu0 %v3905
    %5399 = vmatprep.subr.bf16.mxu0 %v3922
    %5400 = vmatpush1.bf16.msra.mxu0 %v3921
    %5401 = vmatprep.subr.bf16.mxu0 %v3938
    %5402 = vmatpush1.bf16.msra.mxu0 %v3937
    %5403 = vmatprep.subr.bf16.mxu0 %v3954
    %5404 = vmatpush1.bf16.msra.mxu0 %v3953
    %5405 = vmatprep.subr.bf16.mxu0 %v3970
    %5406 = vmatpush1.bf16.msra.mxu0 %v3969
    %5407 = vmatprep.subr.bf16.mxu0 %v3986
    %5408 = vmatpush1.bf16.msra.mxu0 %v3985
    %5409 = vmatprep.subr.bf16.mxu0 %v4002
    %5410 = vmatpush1.bf16.msra.mxu0 %v4001
    %5411 = vmatprep.mubr.bf16.mxu0 %v168
    %5412 = vmatmul.mubr.bf16.gmra.mrb[0].mxu0 %v167
    %v5413 = vpop.f32.mrb[0].mxu0
    %v5414 = vadd.f32 %v5371, %v5413
    %v5415 = vpop.f32.mrb[0].mxu0
    %v5416 = vadd.f32 %v5373, %v5415
    %v5417 = vpop.f32.mrb[0].mxu0
    %v5418 = vadd.f32 %v5375, %v5417
    %v5419 = vpop.f32.mrb[0].mxu0
    %v5420 = vadd.f32 %v5377, %v5419
    %5421 = vdwg.mxu0
    %5422 = vmatprep.subr.bf16.mxu0 %v3252
    %5423 = vmatpush1.bf16.msra.mxu0 %v3251
    %5424 = vmatprep.subr.bf16.mxu0 %v3268
    %5425 = vmatpush1.bf16.msra.mxu0 %v3267
    %5426 = vmatprep.subr.bf16.mxu0 %v3284
    %5427 = vmatpush1.bf16.msra.mxu0 %v3283
    %5428 = vmatprep.subr.bf16.mxu0 %v3300
    %5429 = vmatpush1.bf16.msra.mxu0 %v3299
    %5430 = vmatprep.subr.bf16.mxu0 %v3316
    %5431 = vmatpush1.bf16.msra.mxu0 %v3315
    %5432 = vmatprep.subr.bf16.mxu0 %v3332
    %5433 = vmatpush1.bf16.msra.mxu0 %v3331
    %5434 = vmatprep.subr.bf16.mxu0 %v3348
    %5435 = vmatpush1.bf16.msra.mxu0 %v3347
    %5436 = vmatprep.subr.bf16.mxu0 %v3364
    %5437 = vmatpush1.bf16.msra.mxu0 %v3363
    %5438 = vmatprep.subr.bf16.mxu0 %v3380
    %5439 = vmatpush1.bf16.msra.mxu0 %v3379
    %5440 = vmatprep.subr.bf16.mxu0 %v3396
    %5441 = vmatpush1.bf16.msra.mxu0 %v3395
    %5442 = vmatprep.subr.bf16.mxu0 %v3412
    %5443 = vmatpush1.bf16.msra.mxu0 %v3411
    %5444 = vmatprep.subr.bf16.mxu0 %v3428
    %5445 = vmatpush1.bf16.msra.mxu0 %v3427
    %5446 = vmatprep.subr.bf16.mxu0 %v3444
    %5447 = vmatpush1.bf16.msra.mxu0 %v3443
    %5448 = vmatprep.subr.bf16.mxu0 %v3460
    %5449 = vmatpush1.bf16.msra.mxu0 %v3459
    %5450 = vmatprep.subr.bf16.mxu0 %v3476
    %5451 = vmatpush1.bf16.msra.mxu0 %v3475
    %5452 = vmatprep.subr.bf16.mxu0 %v3492
    %5453 = vmatpush1.bf16.msra.mxu0 %v3491
    %5454 = vmatprep.mubr.bf16.mxu0 %v164
    %5455 = vmatmul.mubr.bf16.gmra.mrb[0].mxu0 %v163
    %v5456 = vpop.f32.mrb[0].mxu0
    %v5457 = vadd.f32 0.0, %v5456
    %v5458 = vpop.f32.mrb[0].mxu0
    %v5459 = vadd.f32 0.0, %v5458
    %v5460 = vpop.f32.mrb[0].mxu0
    %v5461 = vadd.f32 0.0, %v5460
    %v5462 = vpop.f32.mrb[0].mxu0
    %v5463 = vadd.f32 0.0, %v5462
    %5464 = vdwg.mxu0
    %5465 = vmatprep.subr.bf16.mxu0 %v3508
    %5466 = vmatpush1.bf16.msra.mxu0 %v3507
    %5467 = vmatprep.subr.bf16.mxu0 %v3524
    %5468 = vmatpush1.bf16.msra.mxu0 %v3523
    %5469 = vmatprep.subr.bf16.mxu0 %v3540
    %5470 = vmatpush1.bf16.msra.mxu0 %v3539
    %5471 = vmatprep.subr.bf16.mxu0 %v3556
    %5472 = vmatpush1.bf16.msra.mxu0 %v3555
    %5473 = vmatprep.subr.bf16.mxu0 %v3572
    %5474 = vmatpush1.bf16.msra.mxu0 %v3571
    %5475 = vmatprep.subr.bf16.mxu0 %v3588
    %5476 = vmatpush1.bf16.msra.mxu0 %v3587
    %5477 = vmatprep.subr.bf16.mxu0 %v3604
    %5478 = vmatpush1.bf16.msra.mxu0 %v3603
    %5479 = vmatprep.subr.bf16.mxu0 %v3620
    %5480 = vmatpush1.bf16.msra.mxu0 %v3619
    %5481 = vmatprep.subr.bf16.mxu0 %v3636
    %5482 = vmatpush1.bf16.msra.mxu0 %v3635
    %5483 = vmatprep.subr.bf16.mxu0 %v3652
    %5484 = vmatpush1.bf16.msra.mxu0 %v3651
    %5485 = vmatprep.subr.bf16.mxu0 %v3668
    %5486 = vmatpush1.bf16.msra.mxu0 %v3667
    %5487 = vmatprep.subr.bf16.mxu0 %v3684
    %5488 = vmatpush1.bf16.msra.mxu0 %v3683
    %5489 = vmatprep.subr.bf16.mxu0 %v3700
    %5490 = vmatpush1.bf16.msra.mxu0 %v3699
    %5491 = vmatprep.subr.bf16.mxu0 %v3716
    %5492 = vmatpush1.bf16.msra.mxu0 %v3715
    %5493 = vmatprep.subr.bf16.mxu0 %v3732
    %5494 = vmatpush1.bf16.msra.mxu0 %v3731
    %5495 = vmatprep.subr.bf16.mxu0 %v3748
    %5496 = vmatpush1.bf16.msra.mxu0 %v3747
    %5497 = vmatprep.mubr.bf16.mxu0 %v166
    %5498 = vmatmul.mubr.bf16.gmra.mrb[0].mxu0 %v165
    %v5499 = vpop.f32.mrb[0].mxu0
    %v5500 = vadd.f32 %v5457, %v5499
    %v5501 = vpop.f32.mrb[0].mxu0
    %v5502 = vadd.f32 %v5459, %v5501
    %v5503 = vpop.f32.mrb[0].mxu0
    %v5504 = vadd.f32 %v5461, %v5503
    %v5505 = vpop.f32.mrb[0].mxu0
    %v5506 = vadd.f32 %v5463, %v5505
    %5507 = vdwg.mxu0
    %5508 = vmatprep.subr.bf16.mxu0 %v3764
    %5509 = vmatpush1.bf16.msra.mxu0 %v3763
    %5510 = vmatprep.subr.bf16.mxu0 %v3780
    %5511 = vmatpush1.bf16.msra.mxu0 %v3779
    %5512 = vmatprep.subr.bf16.mxu0 %v3796
    %5513 = vmatpush1.bf16.msra.mxu0 %v3795
    %5514 = vmatprep.subr.bf16.mxu0 %v3812
    %5515 = vmatpush1.bf16.msra.mxu0 %v3811
    %5516 = vmatprep.subr.bf16.mxu0 %v3828
    %5517 = vmatpush1.bf16.msra.mxu0 %v3827
    %5518 = vmatprep.subr.bf16.mxu0 %v3844
    %5519 = vmatpush1.bf16.msra.mxu0 %v3843
    %5520 = vmatprep.subr.bf16.mxu0 %v3860
    %5521 = vmatpush1.bf16.msra.mxu0 %v3859
    %5522 = vmatprep.subr.bf16.mxu0 %v3876
    %5523 = vmatpush1.bf16.msra.mxu0 %v3875
    %5524 = vmatprep.subr.bf16.mxu0 %v3892
    %5525 = vmatpush1.bf16.msra.mxu0 %v3891
    %5526 = vmatprep.subr.bf16.mxu0 %v3908
    %5527 = vmatpush1.bf16.msra.mxu0 %v3907
    %5528 = vmatprep.subr.bf16.mxu0 %v3924
    %5529 = vmatpush1.bf16.msra.mxu0 %v3923
    %5530 = vmatprep.subr.bf16.mxu0 %v3940
    %5531 = vmatpush1.bf16.msra.mxu0 %v3939
    %5532 = vmatprep.subr.bf16.mxu0 %v3956
    %5533 = vmatpush1.bf16.msra.mxu0 %v3955
    %5534 = vmatprep.subr.bf16.mxu0 %v3972
    %5535 = vmatpush1.bf16.msra.mxu0 %v3971
    %5536 = vmatprep.subr.bf16.mxu0 %v3988
    %5537 = vmatpush1.bf16.msra.mxu0 %v3987
    %5538 = vmatprep.subr.bf16.mxu0 %v4004
    %5539 = vmatpush1.bf16.msra.mxu0 %v4003
    %5540 = vmatprep.mubr.bf16.mxu0 %v168
    %5541 = vmatmul.mubr.bf16.gmra.mrb[0].mxu0 %v167
    %v5542 = vpop.f32.mrb[0].mxu0
    %v5543 = vadd.f32 %v5500, %v5542
    %v5544 = vpop.f32.mrb[0].mxu0
    %v5545 = vadd.f32 %v5502, %v5544
    %v5546 = vpop.f32.mrb[0].mxu0
    %v5547 = vadd.f32 %v5504, %v5546
    %v5548 = vpop.f32.mrb[0].mxu0
    %v5549 = vadd.f32 %v5506, %v5548
    %5550 = vdwg.mxu0
    %5551 = vmatprep.subr.bf16.mxu0 %v3254
    %5552 = vmatpush1.bf16.msra.mxu0 %v3253
    %5553 = vmatprep.subr.bf16.mxu0 %v3270
    %5554 = vmatpush1.bf16.msra.mxu0 %v3269
    %5555 = vmatprep.subr.bf16.mxu0 %v3286
    %5556 = vmatpush1.bf16.msra.mxu0 %v3285
    %5557 = vmatprep.subr.bf16.mxu0 %v3302
    %5558 = vmatpush1.bf16.msra.mxu0 %v3301
    %5559 = vmatprep.subr.bf16.mxu0 %v3318
    %5560 = vmatpush1.bf16.msra.mxu0 %v3317
    %5561 = vmatprep.subr.bf16.mxu0 %v3334
    %5562 = vmatpush1.bf16.msra.mxu0 %v3333
    %5563 = vmatprep.subr.bf16.mxu0 %v3350
    %5564 = vmatpush1.bf16.msra.mxu0 %v3349
    %5565 = vmatprep.subr.bf16.mxu0 %v3366
    %5566 = vmatpush1.bf16.msra.mxu0 %v3365
    %5567 = vmatprep.subr.bf16.mxu0 %v3382
    %5568 = vmatpush1.bf16.msra.mxu0 %v3381
    %5569 = vmatprep.subr.bf16.mxu0 %v3398
    %5570 = vmatpush1.bf16.msra.mxu0 %v3397
    %5571 = vmatprep.subr.bf16.mxu0 %v3414
    %5572 = vmatpush1.bf16.msra.mxu0 %v3413
    %5573 = vmatprep.subr.bf16.mxu0 %v3430
    %5574 = vmatpush1.bf16.msra.mxu0 %v3429
    %5575 = vmatprep.subr.bf16.mxu0 %v3446
    %5576 = vmatpush1.bf16.msra.mxu0 %v3445
    %5577 = vmatprep.subr.bf16.mxu0 %v3462
    %5578 = vmatpush1.bf16.msra.mxu0 %v3461
    %5579 = vmatprep.subr.bf16.mxu0 %v3478
    %5580 = vmatpush1.bf16.msra.mxu0 %v3477
    %5581 = vmatprep.subr.bf16.mxu0 %v3494
    %5582 = vmatpush1.bf16.msra.mxu0 %v3493
    %5583 = vmatprep.mubr.bf16.mxu0 %v164
    %5584 = vmatmul.mubr.bf16.gmra.mrb[0].mxu0 %v163
    %v5585 = vpop.f32.mrb[0].mxu0
    %v5586 = vadd.f32 0.0, %v5585
    %v5587 = vpop.f32.mrb[0].mxu0
    %v5588 = vadd.f32 0.0, %v5587
    %v5589 = vpop.f32.mrb[0].mxu0
    %v5590 = vadd.f32 0.0, %v5589
    %v5591 = vpop.f32.mrb[0].mxu0
    %v5592 = vadd.f32 0.0, %v5591
    %5593 = vdwg.mxu0
    %5594 = vmatprep.subr.bf16.mxu0 %v3510
    %5595 = vmatpush1.bf16.msra.mxu0 %v3509
    %5596 = vmatprep.subr.bf16.mxu0 %v3526
    %5597 = vmatpush1.bf16.msra.mxu0 %v3525
    %5598 = vmatprep.subr.bf16.mxu0 %v3542
    %5599 = vmatpush1.bf16.msra.mxu0 %v3541
    %5600 = vmatprep.subr.bf16.mxu0 %v3558
    %5601 = vmatpush1.bf16.msra.mxu0 %v3557
    %5602 = vmatprep.subr.bf16.mxu0 %v3574
    %5603 = vmatpush1.bf16.msra.mxu0 %v3573
    %5604 = vmatprep.subr.bf16.mxu0 %v3590
    %5605 = vmatpush1.bf16.msra.mxu0 %v3589
    %5606 = vmatprep.subr.bf16.mxu0 %v3606
    %5607 = vmatpush1.bf16.msra.mxu0 %v3605
    %5608 = vmatprep.subr.bf16.mxu0 %v3622
    %5609 = vmatpush1.bf16.msra.mxu0 %v3621
    %5610 = vmatprep.subr.bf16.mxu0 %v3638
    %5611 = vmatpush1.bf16.msra.mxu0 %v3637
    %5612 = vmatprep.subr.bf16.mxu0 %v3654
    %5613 = vmatpush1.bf16.msra.mxu0 %v3653
    %5614 = vmatprep.subr.bf16.mxu0 %v3670
    %5615 = vmatpush1.bf16.msra.mxu0 %v3669
    %5616 = vmatprep.subr.bf16.mxu0 %v3686
    %5617 = vmatpush1.bf16.msra.mxu0 %v3685
    %5618 = vmatprep.subr.bf16.mxu0 %v3702
    %5619 = vmatpush1.bf16.msra.mxu0 %v3701
    %5620 = vmatprep.subr.bf16.mxu0 %v3718
    %5621 = vmatpush1.bf16.msra.mxu0 %v3717
    %5622 = vmatprep.subr.bf16.mxu0 %v3734
    %5623 = vmatpush1.bf16.msra.mxu0 %v3733
    %5624 = vmatprep.subr.bf16.mxu0 %v3750
    %5625 = vmatpush1.bf16.msra.mxu0 %v3749
    %5626 = vmatprep.mubr.bf16.mxu0 %v166
    %5627 = vmatmul.mubr.bf16.gmra.mrb[0].mxu0 %v165
    %v5628 = vpop.f32.mrb[0].mxu0
    %v5629 = vadd.f32 %v5586, %v5628
    %v5630 = vpop.f32.mrb[0].mxu0
    %v5631 = vadd.f32 %v5588, %v5630
    %v5632 = vpop.f32.mrb[0].mxu0
    %v5633 = vadd.f32 %v5590, %v5632
    %v5634 = vpop.f32.mrb[0].mxu0
    %v5635 = vadd.f32 %v5592, %v5634
    %5636 = vdwg.mxu0
    %5637 = vmatprep.subr.bf16.mxu0 %v3766
    %5638 = vmatpush1.bf16.msra.mxu0 %v3765
    %5639 = vmatprep.subr.bf16.mxu0 %v3782
    %5640 = vmatpush1.bf16.msra.mxu0 %v3781
    %5641 = vmatprep.subr.bf16.mxu0 %v3798
    %5642 = vmatpush1.bf16.msra.mxu0 %v3797
    %5643 = vmatprep.subr.bf16.mxu0 %v3814
    %5644 = vmatpush1.bf16.msra.mxu0 %v3813
    %5645 = vmatprep.subr.bf16.mxu0 %v3830
    %5646 = vmatpush1.bf16.msra.mxu0 %v3829
    %5647 = vmatprep.subr.bf16.mxu0 %v3846
    %5648 = vmatpush1.bf16.msra.mxu0 %v3845
    %5649 = vmatprep.subr.bf16.mxu0 %v3862
    %5650 = vmatpush1.bf16.msra.mxu0 %v3861
    %5651 = vmatprep.subr.bf16.mxu0 %v3878
    %5652 = vmatpush1.bf16.msra.mxu0 %v3877
    %5653 = vmatprep.subr.bf16.mxu0 %v3894
    %5654 = vmatpush1.bf16.msra.mxu0 %v3893
    %5655 = vmatprep.subr.bf16.mxu0 %v3910
    %5656 = vmatpush1.bf16.msra.mxu0 %v3909
    %5657 = vmatprep.subr.bf16.mxu0 %v3926
    %5658 = vmatpush1.bf16.msra.mxu0 %v3925
    %5659 = vmatprep.subr.bf16.mxu0 %v3942
    %5660 = vmatpush1.bf16.msra.mxu0 %v3941
    %5661 = vmatprep.subr.bf16.mxu0 %v3958
    %5662 = vmatpush1.bf16.msra.mxu0 %v3957
    %5663 = vmatprep.subr.bf16.mxu0 %v3974
    %5664 = vmatpush1.bf16.msra.mxu0 %v3973
    %5665 = vmatprep.subr.bf16.mxu0 %v3990
    %5666 = vmatpush1.bf16.msra.mxu0 %v3989
    %5667 = vmatprep.subr.bf16.mxu0 %v4006
    %5668 = vmatpush1.bf16.msra.mxu0 %v4005
    %5669 = vmatprep.mubr.bf16.mxu0 %v168
    %5670 = vmatmul.mubr.bf16.gmra.mrb[0].mxu0 %v167
    %v5671 = vpop.f32.mrb[0].mxu0
    %v5672 = vadd.f32 %v5629, %v5671
    %v5673 = vpop.f32.mrb[0].mxu0
    %v5674 = vadd.f32 %v5631, %v5673
    %v5675 = vpop.f32.mrb[0].mxu0
    %v5676 = vadd.f32 %v5633, %v5675
    %v5677 = vpop.f32.mrb[0].mxu0
    %v5678 = vadd.f32 %v5635, %v5677
    %5679 = vdwg.mxu0
    %5680 = vmatprep.subr.bf16.mxu0 %v3256
    %5681 = vmatpush1.bf16.msra.mxu0 %v3255
    %5682 = vmatprep.subr.bf16.mxu0 %v3272
    %5683 = vmatpush1.bf16.msra.mxu0 %v3271
    %5684 = vmatprep.subr.bf16.mxu0 %v3288
    %5685 = vmatpush1.bf16.msra.mxu0 %v3287
    %5686 = vmatprep.subr.bf16.mxu0 %v3304
    %5687 = vmatpush1.bf16.msra.mxu0 %v3303
    %5688 = vmatprep.subr.bf16.mxu0 %v3320
    %5689 = vmatpush1.bf16.msra.mxu0 %v3319
    %5690 = vmatprep.subr.bf16.mxu0 %v3336
    %5691 = vmatpush1.bf16.msra.mxu0 %v3335
    %5692 = vmatprep.subr.bf16.mxu0 %v3352
    %5693 = vmatpush1.bf16.msra.mxu0 %v3351
    %5694 = vmatprep.subr.bf16.mxu0 %v3368
    %5695 = vmatpush1.bf16.msra.mxu0 %v3367
    %5696 = vmatprep.subr.bf16.mxu0 %v3384
    %5697 = vmatpush1.bf16.msra.mxu0 %v3383
    %5698 = vmatprep.subr.bf16.mxu0 %v3400
    %5699 = vmatpush1.bf16.msra.mxu0 %v3399
    %5700 = vmatprep.subr.bf16.mxu0 %v3416
    %5701 = vmatpush1.bf16.msra.mxu0 %v3415
    %5702 = vmatprep.subr.bf16.mxu0 %v3432
    %5703 = vmatpush1.bf16.msra.mxu0 %v3431
    %5704 = vmatprep.subr.bf16.mxu0 %v3448
    %5705 = vmatpush1.bf16.msra.mxu0 %v3447
    %5706 = vmatprep.subr.bf16.mxu0 %v3464
    %5707 = vmatpush1.bf16.msra.mxu0 %v3463
    %5708 = vmatprep.subr.bf16.mxu0 %v3480
    %5709 = vmatpush1.bf16.msra.mxu0 %v3479
    %5710 = vmatprep.subr.bf16.mxu0 %v3496
    %5711 = vmatpush1.bf16.msra.mxu0 %v3495
    %5712 = vmatprep.mubr.bf16.mxu0 %v164
    %5713 = vmatmul.mubr.bf16.gmra.mrb[0].mxu0 %v163
    %v5714 = vpop.f32.mrb[0].mxu0
    %v5715 = vadd.f32 0.0, %v5714
    %v5716 = vpop.f32.mrb[0].mxu0
    %v5717 = vadd.f32 0.0, %v5716
    %v5718 = vpop.f32.mrb[0].mxu0
    %v5719 = vadd.f32 0.0, %v5718
    %v5720 = vpop.f32.mrb[0].mxu0
    %v5721 = vadd.f32 0.0, %v5720
    %5722 = vdwg.mxu0
    %5723 = vmatprep.subr.bf16.mxu0 %v3512
    %5724 = vmatpush1.bf16.msra.mxu0 %v3511
    %5725 = vmatprep.subr.bf16.mxu0 %v3528
    %5726 = vmatpush1.bf16.msra.mxu0 %v3527
    %5727 = vmatprep.subr.bf16.mxu0 %v3544
    %5728 = vmatpush1.bf16.msra.mxu0 %v3543
    %5729 = vmatprep.subr.bf16.mxu0 %v3560
    %5730 = vmatpush1.bf16.msra.mxu0 %v3559
    %5731 = vmatprep.subr.bf16.mxu0 %v3576
    %5732 = vmatpush1.bf16.msra.mxu0 %v3575
    %5733 = vmatprep.subr.bf16.mxu0 %v3592
    %5734 = vmatpush1.bf16.msra.mxu0 %v3591
    %5735 = vmatprep.subr.bf16.mxu0 %v3608
    %5736 = vmatpush1.bf16.msra.mxu0 %v3607
    %5737 = vmatprep.subr.bf16.mxu0 %v3624
    %5738 = vmatpush1.bf16.msra.mxu0 %v3623
    %5739 = vmatprep.subr.bf16.mxu0 %v3640
    %5740 = vmatpush1.bf16.msra.mxu0 %v3639
    %5741 = vmatprep.subr.bf16.mxu0 %v3656
    %5742 = vmatpush1.bf16.msra.mxu0 %v3655
    %5743 = vmatprep.subr.bf16.mxu0 %v3672
    %5744 = vmatpush1.bf16.msra.mxu0 %v3671
    %5745 = vmatprep.subr.bf16.mxu0 %v3688
    %5746 = vmatpush1.bf16.msra.mxu0 %v3687
    %5747 = vmatprep.subr.bf16.mxu0 %v3704
    %5748 = vmatpush1.bf16.msra.mxu0 %v3703
    %5749 = vmatprep.subr.bf16.mxu0 %v3720
    %5750 = vmatpush1.bf16.msra.mxu0 %v3719
    %5751 = vmatprep.subr.bf16.mxu0 %v3736
    %5752 = vmatpush1.bf16.msra.mxu0 %v3735
    %5753 = vmatprep.subr.bf16.mxu0 %v3752
    %5754 = vmatpush1.bf16.msra.mxu0 %v3751
    %5755 = vmatprep.mubr.bf16.mxu0 %v166
    %5756 = vmatmul.mubr.bf16.gmra.mrb[0].mxu0 %v165
    %v5757 = vpop.f32.mrb[0].mxu0
    %v5758 = vadd.f32 %v5715, %v5757
    %v5759 = vpop.f32.mrb[0].mxu0
    %v5760 = vadd.f32 %v5717, %v5759
    %v5761 = vpop.f32.mrb[0].mxu0
    %v5762 = vadd.f32 %v5719, %v5761
    %v5763 = vpop.f32.mrb[0].mxu0
    %v5764 = vadd.f32 %v5721, %v5763
    %5765 = vdwg.mxu0
    %5766 = vmatprep.subr.bf16.mxu0 %v3768
    %5767 = vmatpush1.bf16.msra.mxu0 %v3767
    %5768 = vmatprep.subr.bf16.mxu0 %v3784
    %5769 = vmatpush1.bf16.msra.mxu0 %v3783
    %5770 = vmatprep.subr.bf16.mxu0 %v3800
    %5771 = vmatpush1.bf16.msra.mxu0 %v3799
    %5772 = vmatprep.subr.bf16.mxu0 %v3816
    %5773 = vmatpush1.bf16.msra.mxu0 %v3815
    %5774 = vmatprep.subr.bf16.mxu0 %v3832
    %5775 = vmatpush1.bf16.msra.mxu0 %v3831
    %5776 = vmatprep.subr.bf16.mxu0 %v3848
    %5777 = vmatpush1.bf16.msra.mxu0 %v3847
    %5778 = vmatprep.subr.bf16.mxu0 %v3864
    %5779 = vmatpush1.bf16.msra.mxu0 %v3863
    %5780 = vmatprep.subr.bf16.mxu0 %v3880
    %5781 = vmatpush1.bf16.msra.mxu0 %v3879
    %5782 = vmatprep.subr.bf16.mxu0 %v3896
    %5783 = vmatpush1.bf16.msra.mxu0 %v3895
    %5784 = vmatprep.subr.bf16.mxu0 %v3912
    %5785 = vmatpush1.bf16.msra.mxu0 %v3911
    %5786 = vmatprep.subr.bf16.mxu0 %v3928
    %5787 = vmatpush1.bf16.msra.mxu0 %v3927
    %5788 = vmatprep.subr.bf16.mxu0 %v3944
    %5789 = vmatpush1.bf16.msra.mxu0 %v3943
    %5790 = vmatprep.subr.bf16.mxu0 %v3960
    %5791 = vmatpush1.bf16.msra.mxu0 %v3959
    %5792 = vmatprep.subr.bf16.mxu0 %v3976
    %5793 = vmatpush1.bf16.msra.mxu0 %v3975
    %5794 = vmatprep.subr.bf16.mxu0 %v3992
    %5795 = vmatpush1.bf16.msra.mxu0 %v3991
    %5796 = vmatprep.subr.bf16.mxu0 %v4008
    %5797 = vmatpush1.bf16.msra.mxu0 %v4007
    %5798 = vmatprep.mubr.bf16.mxu0 %v168
    %5799 = vmatmul.mubr.bf16.gmra.mrb[0].mxu0 %v167
    %v5800 = vpop.f32.mrb[0].mxu0
    %v5801 = vadd.f32 %v5758, %v5800
    %v5802 = vpop.f32.mrb[0].mxu0
    %v5803 = vadd.f32 %v5760, %v5802
    %v5804 = vpop.f32.mrb[0].mxu0
    %v5805 = vadd.f32 %v5762, %v5804
    %v5806 = vpop.f32.mrb[0].mxu0
    %v5807 = vadd.f32 %v5764, %v5806
    %5808 = vdwg.mxu0
    %v5809 = vadd.f32 %v119, %v4898
    %v5810 = vadd.f32 %v120, %v4900
    %v5811 = vadd.f32 %v121, %v5027
    %v5812 = vadd.f32 %v122, %v5029
    %v5813 = vadd.f32 %v123, %v5156
    %v5814 = vadd.f32 %v124, %v5158
    %v5815 = vadd.f32 %v125, %v5285
    %v5816 = vadd.f32 %v126, %v5287
    %v5817 = vadd.f32 %v127, %v5414
    %v5818 = vadd.f32 %v128, %v5416
    %v5819 = vadd.f32 %v129, %v5543
    %v5820 = vadd.f32 %v130, %v5545
    %v5821 = vadd.f32 %v131, %v5672
    %v5822 = vadd.f32 %v132, %v5674
    %v5823 = vadd.f32 %v133, %v5801
    %v5824 = vadd.f32 %v134, %v5803
    %v5825 = vadd.f32 %v135, %v4902
    %v5826 = vadd.f32 %v136, %v4904
    %v5827 = vadd.f32 %v137, %v5031
    %v5828 = vadd.f32 %v138, %v5033
    %v5829 = vadd.f32 %v139, %v5160
    %v5830 = vadd.f32 %v140, %v5162
    %v5831 = vadd.f32 %v141, %v5289
    %v5832 = vadd.f32 %v142, %v5291
    %v5833 = vadd.f32 %v143, %v5418
    %v5834 = vadd.f32 %v144, %v5420
    %v5835 = vadd.f32 %v145, %v5547
    %v5836 = vadd.f32 %v146, %v5549
    %v5837 = vadd.f32 %v147, %v5676
    %v5838 = vadd.f32 %v148, %v5678
    %v5839 = vadd.f32 %v149, %v5805
    %v5840 = vadd.f32 %v150, %v5807
    %5841 = vst [vmem:[#allocation2] sm:$0xff] %v5809
    %5842 = vst [vmem:[#allocation2 + $0x8] sm:$0xff] %v5810
    %5843 = vst [vmem:[#allocation2 + $0x10] sm:$0xff] %v5811
    %5844 = vst [vmem:[#allocation2 + $0x18] sm:$0xff] %v5812
    %5845 = vst [vmem:[#allocation2 + $0x20] sm:$0xff] %v5813
    %5846 = vst [vmem:[#allocation2 + $0x28] sm:$0xff] %v5814
    %5847 = vst [vmem:[#allocation2 + $0x30] sm:$0xff] %v5815
    %5848 = vst [vmem:[#allocation2 + $0x38] sm:$0xff] %v5816
    %5849 = vst [vmem:[#allocation2 + $0x40] sm:$0xff] %v5817
    %5850 = vst [vmem:[#allocation2 + $0x48] sm:$0xff] %v5818
    %5851 = vst [vmem:[#allocation2 + $0x50] sm:$0xff] %v5819
    %5852 = vst [vmem:[#allocation2 + $0x58] sm:$0xff] %v5820
    %5853 = vst [vmem:[#allocation2 + $0x60] sm:$0xff] %v5821
    %5854 = vst [vmem:[#allocation2 + $0x68] sm:$0xff] %v5822
    %5855 = vst [vmem:[#allocation2 + $0x70] sm:$0xff] %v5823
    %5856 = vst [vmem:[#allocation2 + $0x78] sm:$0xff] %v5824
    %5857 = vst [vmem:[#allocation2 + $0x80] sm:$0xff] %v5825
    %5858 = vst [vmem:[#allocation2 + $0x88] sm:$0xff] %v5826
    %5859 = vst [vmem:[#allocation2 + $0x90] sm:$0xff] %v5827
    %5860 = vst [vmem:[#allocation2 + $0x98] sm:$0xff] %v5828
    %5861 = vst [vmem:[#allocation2 + $0xa0] sm:$0xff] %v5829
    %5862 = vst [vmem:[#allocation2 + $0xa8] sm:$0xff] %v5830
    %5863 = vst [vmem:[#allocation2 + $0xb0] sm:$0xff] %v5831
    %5864 = vst [vmem:[#allocation2 + $0xb8] sm:$0xff] %v5832
    %5865 = vst [vmem:[#allocation2 + $0xc0] sm:$0xff] %v5833
    %5866 = vst [vmem:[#allocation2 + $0xc8] sm:$0xff] %v5834
    %5867 = vst [vmem:[#allocation2 + $0xd0] sm:$0xff] %v5835
    %5868 = vst [vmem:[#allocation2 + $0xd8] sm:$0xff] %v5836
    %5869 = vst [vmem:[#allocation2 + $0xe0] sm:$0xff] %v5837
    %5870 = vst [vmem:[#allocation2 + $0xe8] sm:$0xff] %v5838
    %5871 = vst [vmem:[#allocation2 + $0xf0] sm:$0xff] %v5839
    %5872 = vst [vmem:[#allocation2 + $0xf8] sm:$0xff] %v5840
    // Predicated region
    $region46: #{tpu_custom_call.1} parent=1 // pred_check
      %p5873 = pneg %p83
    $region47: #{tpu_custom_call.1} parent=1 // pred_check_branch
      %5875 = sbr.rel (%p5873) target = $region49
    $region48: #{tpu_custom_call.1} parent=1 // pred_region
      %v5876 = vld [vmem:[#allocation2] sm:$0xff]
      %v5877 = vld [vmem:[#allocation2 + $0x8] sm:$0xff]
      %v5878 = vld [vmem:[#allocation2 + $0x10] sm:$0xff]
      %v5879 = vld [vmem:[#allocation2 + $0x18] sm:$0xff]
      %v5880 = vld [vmem:[#allocation2 + $0x20] sm:$0xff]
      %v5881 = vld [vmem:[#allocation2 + $0x28] sm:$0xff]
      %v5882 = vld [vmem:[#allocation2 + $0x30] sm:$0xff]
      %v5883 = vld [vmem:[#allocation2 + $0x38] sm:$0xff]
      %v5884 = vld [vmem:[#allocation2 + $0x40] sm:$0xff]
      %v5885 = vld [vmem:[#allocation2 + $0x48] sm:$0xff]
      %v5886 = vld [vmem:[#allocation2 + $0x50] sm:$0xff]
      %v5887 = vld [vmem:[#allocation2 + $0x58] sm:$0xff]
      %v5888 = vld [vmem:[#allocation2 + $0x60] sm:$0xff]
      %v5889 = vld [vmem:[#allocation2 + $0x68] sm:$0xff]
      %v5890 = vld [vmem:[#allocation2 + $0x70] sm:$0xff]
      %v5891 = vld [vmem:[#allocation2 + $0x78] sm:$0xff]
      %v5892 = vld [vmem:[#allocation2 + $0x80] sm:$0xff]
      %v5893 = vld [vmem:[#allocation2 + $0x88] sm:$0xff]
      %v5894 = vld [vmem:[#allocation2 + $0x90] sm:$0xff]
      %v5895 = vld [vmem:[#allocation2 + $0x98] sm:$0xff]
      %v5896 = vld [vmem:[#allocation2 + $0xa0] sm:$0xff]
      %v5897 = vld [vmem:[#allocation2 + $0xa8] sm:$0xff]
      %v5898 = vld [vmem:[#allocation2 + $0xb0] sm:$0xff]
      %v5899 = vld [vmem:[#allocation2 + $0xb8] sm:$0xff]
      %v5900 = vld [vmem:[#allocation2 + $0xc0] sm:$0xff]
      %v5901 = vld [vmem:[#allocation2 + $0xc8] sm:$0xff]
      %v5902 = vld [vmem:[#allocation2 + $0xd0] sm:$0xff]
      %v5903 = vld [vmem:[#allocation2 + $0xd8] sm:$0xff]
      %v5904 = vld [vmem:[#allocation2 + $0xe0] sm:$0xff]
      %v5905 = vld [vmem:[#allocation2 + $0xe8] sm:$0xff]
      %v5906 = vld [vmem:[#allocation2 + $0xf0] sm:$0xff]
      %v5907 = vld [vmem:[#allocation2 + $0xf8] sm:$0xff]
      %v5908 = vld [vmem:[#allocation8] sm:$0xff]
      %v5909 = vld [vmem:[#allocation8 + $0x8] sm:$0xff]
      %v5912 = vlaneseq
      %v5913 = vshrl.u32 %v5912, 7
      %v5914 = vsub.s32 0, %v5913
      %v5915 = vrot.slane %v5908, %v5914
      %v5916 = vlaneseq
      %v5917 = vshrl.u32 %v5916, 7
      %v5918 = vsub.s32 1, %v5917
      %v5919 = vrot.slane %v5908, %v5918
      %v5920 = vlaneseq
      %v5921 = vshrl.u32 %v5920, 7
      %v5922 = vsub.s32 2, %v5921
      %v5923 = vrot.slane %v5908, %v5922
      %v5924 = vlaneseq
      %v5925 = vshrl.u32 %v5924, 7
      %v5926 = vsub.s32 3, %v5925
      %v5927 = vrot.slane %v5908, %v5926
      %v5928 = vlaneseq
      %v5929 = vshrl.u32 %v5928, 7
      %v5930 = vsub.s32 4, %v5929
      %v5931 = vrot.slane %v5908, %v5930
      %v5932 = vlaneseq
      %v5933 = vshrl.u32 %v5932, 7
      %v5934 = vsub.s32 5, %v5933
      %v5935 = vrot.slane %v5908, %v5934
      %v5936 = vlaneseq
      %v5937 = vshrl.u32 %v5936, 7
      %v5938 = vsub.s32 6, %v5937
      %v5939 = vrot.slane %v5908, %v5938
      %v5940 = vlaneseq
      %v5941 = vshrl.u32 %v5940, 7
      %v5942 = vsub.s32 7, %v5941
      %v5943 = vrot.slane %v5908, %v5942
      %v5944 = vlaneseq
      %v5945 = vshrl.u32 %v5944, 7
      %v5946 = vsub.s32 0, %v5945
      %v5947 = vrot.slane %v5909, %v5946
      %v5948 = vlaneseq
      %v5949 = vshrl.u32 %v5948, 7
      %v5950 = vsub.s32 1, %v5949
      %v5951 = vrot.slane %v5909, %v5950
      %v5952 = vlaneseq
      %v5953 = vshrl.u32 %v5952, 7
      %v5954 = vsub.s32 2, %v5953
      %v5955 = vrot.slane %v5909, %v5954
      %v5956 = vlaneseq
      %v5957 = vshrl.u32 %v5956, 7
      %v5958 = vsub.s32 3, %v5957
      %v5959 = vrot.slane %v5909, %v5958
      %v5960 = vlaneseq
      %v5961 = vshrl.u32 %v5960, 7
      %v5962 = vsub.s32 4, %v5961
      %v5963 = vrot.slane %v5909, %v5962
      %v5964 = vlaneseq
      %v5965 = vshrl.u32 %v5964, 7
      %v5966 = vsub.s32 5, %v5965
      %v5967 = vrot.slane %v5909, %v5966
      %v5968 = vlaneseq
      %v5969 = vshrl.u32 %v5968, 7
      %v5970 = vsub.s32 6, %v5969
      %v5971 = vrot.slane %v5909, %v5970
      %v5972 = vlaneseq
      %v5973 = vshrl.u32 %v5972, 7
      %v5974 = vsub.s32 7, %v5973
      %v5975 = vrot.slane %v5909, %v5974
      %v5992 = vadd.f32 %v5876, %v5915
      %v5993 = vadd.f32 %v5877, %v5919
      %v5994 = vadd.f32 %v5878, %v5923
      %v5995 = vadd.f32 %v5879, %v5927
      %v5996 = vadd.f32 %v5880, %v5931
      %v5997 = vadd.f32 %v5881, %v5935
      %v5998 = vadd.f32 %v5882, %v5939
      %v5999 = vadd.f32 %v5883, %v5943
      %v6000 = vadd.f32 %v5884, %v5947
      %v6001 = vadd.f32 %v5885, %v5951
      %v6002 = vadd.f32 %v5886, %v5955
      %v6003 = vadd.f32 %v5887, %v5959
      %v6004 = vadd.f32 %v5888, %v5963
      %v6005 = vadd.f32 %v5889, %v5967
      %v6006 = vadd.f32 %v5890, %v5971
      %v6007 = vadd.f32 %v5891, %v5975
      %v6008 = vadd.f32 %v5892, %v5915
      %v6009 = vadd.f32 %v5893, %v5919
      %v6010 = vadd.f32 %v5894, %v5923
      %v6011 = vadd.f32 %v5895, %v5927
      %v6012 = vadd.f32 %v5896, %v5931
      %v6013 = vadd.f32 %v5897, %v5935
      %v6014 = vadd.f32 %v5898, %v5939
      %v6015 = vadd.f32 %v5899, %v5943
      %v6016 = vadd.f32 %v5900, %v5947
      %v6017 = vadd.f32 %v5901, %v5951
      %v6018 = vadd.f32 %v5902, %v5955
      %v6019 = vadd.f32 %v5903, %v5959
      %v6020 = vadd.f32 %v5904, %v5963
      %v6021 = vadd.f32 %v5905, %v5967
      %v6022 = vadd.f32 %v5906, %v5971
      %v6023 = vadd.f32 %v5907, %v5975
      %v6024 = vadd.f32 %v5992, %v5993
      %v6025 = vadd.f32 %v6024, %v5994
      %v6026 = vadd.f32 %v6025, %v5995
      %v6027 = vadd.f32 %v6026, %v5996
      %v6028 = vadd.f32 %v6027, %v5997
      %v6029 = vadd.f32 %v6028, %v5998
      %v6030 = vadd.f32 %v6029, %v5999
      %v6031 = vadd.f32 %v6030, %v6000
      %v6032 = vadd.f32 %v6031, %v6001
      %v6033 = vadd.f32 %v6032, %v6002
      %v6034 = vadd.f32 %v6033, %v6003
      %v6035 = vadd.f32 %v6034, %v6004
      %v6036 = vadd.f32 %v6035, %v6005
      %v6037 = vadd.f32 %v6036, %v6006
      %v6038 = vadd.f32 %v6037, %v6007
      %6039 = vadd.xlane.f32.xlu0 %v6038
      %v6040 = vpop.xlane.xlu0 %6039
      %v6041 = vadd.f32 %v6008, %v6009
      %v6042 = vadd.f32 %v6041, %v6010
      %v6043 = vadd.f32 %v6042, %v6011
      %v6044 = vadd.f32 %v6043, %v6012
      %v6045 = vadd.f32 %v6044, %v6013
      %v6046 = vadd.f32 %v6045, %v6014
      %v6047 = vadd.f32 %v6046, %v6015
      %v6048 = vadd.f32 %v6047, %v6016
      %v6049 = vadd.f32 %v6048, %v6017
      %v6050 = vadd.f32 %v6049, %v6018
      %v6051 = vadd.f32 %v6050, %v6019
      %v6052 = vadd.f32 %v6051, %v6020
      %v6053 = vadd.f32 %v6052, %v6021
      %v6054 = vadd.f32 %v6053, %v6022
      %v6055 = vadd.f32 %v6054, %v6023
      %6056 = vadd.xlane.f32.xlu0 %v6055
      %v6057 = vpop.xlane.xlu0 %6056
      %v6058 = vrcp.pop 2048.0
      %v6059 = vmul.f32 %v6040, %v6058
      %v6060 = vmul.f32 %v6057, %v6058
      %v6061 = vmul.f32 %v5992, %v5992
      %v6062 = vmul.f32 %v5993, %v5993
      %v6063 = vmul.f32 %v5994, %v5994
      %v6064 = vmul.f32 %v5995, %v5995
      %v6065 = vmul.f32 %v5996, %v5996
      %v6066 = vmul.f32 %v5997, %v5997
      %v6067 = vmul.f32 %v5998, %v5998
      %v6068 = vmul.f32 %v5999, %v5999
      %v6069 = vmul.f32 %v6000, %v6000
      %v6070 = vmul.f32 %v6001, %v6001
      %v6071 = vmul.f32 %v6002, %v6002
      %v6072 = vmul.f32 %v6003, %v6003
      %v6073 = vmul.f32 %v6004, %v6004
      %v6074 = vmul.f32 %v6005, %v6005
      %v6075 = vmul.f32 %v6006, %v6006
      %v6076 = vmul.f32 %v6007, %v6007
      %v6077 = vmul.f32 %v6008, %v6008
      %v6078 = vmul.f32 %v6009, %v6009
      %v6079 = vmul.f32 %v6010, %v6010
      %v6080 = vmul.f32 %v6011, %v6011
      %v6081 = vmul.f32 %v6012, %v6012
      %v6082 = vmul.f32 %v6013, %v6013
      %v6083 = vmul.f32 %v6014, %v6014
      %v6084 = vmul.f32 %v6015, %v6015
      %v6085 = vmul.f32 %v6016, %v6016
      %v6086 = vmul.f32 %v6017, %v6017
      %v6087 = vmul.f32 %v6018, %v6018
      %v6088 = vmul.f32 %v6019, %v6019
      %v6089 = vmul.f32 %v6020, %v6020
      %v6090 = vmul.f32 %v6021, %v6021
      %v6091 = vmul.f32 %v6022, %v6022
      %v6092 = vmul.f32 %v6023, %v6023
      %v6093 = vadd.f32 %v6061, %v6062
      %v6094 = vadd.f32 %v6093, %v6063
      %v6095 = vadd.f32 %v6094, %v6064
      %v6096 = vadd.f32 %v6095, %v6065
      %v6097 = vadd.f32 %v6096, %v6066
      %v6098 = vadd.f32 %v6097, %v6067
      %v6099 = vadd.f32 %v6098, %v6068
      %v6100 = vadd.f32 %v6099, %v6069
      %v6101 = vadd.f32 %v6100, %v6070
      %v6102 = vadd.f32 %v6101, %v6071
      %v6103 = vadd.f32 %v6102, %v6072
      %v6104 = vadd.f32 %v6103, %v6073
      %v6105 = vadd.f32 %v6104, %v6074
      %v6106 = vadd.f32 %v6105, %v6075
      %v6107 = vadd.f32 %v6106, %v6076
      %6108 = vadd.xlane.f32.xlu0 %v6107
      %v6109 = vpop.xlane.xlu0 %6108
      %v6110 = vadd.f32 %v6077, %v6078
      %v6111 = vadd.f32 %v6110, %v6079
      %v6112 = vadd.f32 %v6111, %v6080
      %v6113 = vadd.f32 %v6112, %v6081
      %v6114 = vadd.f32 %v6113, %v6082
      %v6115 = vadd.f32 %v6114, %v6083
      %v6116 = vadd.f32 %v6115, %v6084
      %v6117 = vadd.f32 %v6116, %v6085
      %v6118 = vadd.f32 %v6117, %v6086
      %v6119 = vadd.f32 %v6118, %v6087
      %v6120 = vadd.f32 %v6119, %v6088
      %v6121 = vadd.f32 %v6120, %v6089
      %v6122 = vadd.f32 %v6121, %v6090
      %v6123 = vadd.f32 %v6122, %v6091
      %v6124 = vadd.f32 %v6123, %v6092
      %6125 = vadd.xlane.f32.xlu0 %v6124
      %v6126 = vpop.xlane.xlu0 %6125
      %v6127 = vmul.f32 %v6109, %v6058
      %v6128 = vmul.f32 %v6126, %v6058
      %v6129 = vmul.f32 %v6059, %v6059
      %v6130 = vmul.f32 %v6060, %v6060
      %v6131 = vsub.f32 %v6127, %v6129
      %v6132 = vsub.f32 %v6128, %v6130
      %v6133 = vsub.f32 %v5992, %v6059
      %v6134 = vsub.f32 %v5993, %v6059
      %v6135 = vsub.f32 %v5994, %v6059
      %v6136 = vsub.f32 %v5995, %v6059
      %v6137 = vsub.f32 %v5996, %v6059
      %v6138 = vsub.f32 %v5997, %v6059
      %v6139 = vsub.f32 %v5998, %v6059
      %v6140 = vsub.f32 %v5999, %v6059
      %v6141 = vsub.f32 %v6000, %v6059
      %v6142 = vsub.f32 %v6001, %v6059
      %v6143 = vsub.f32 %v6002, %v6059
      %v6144 = vsub.f32 %v6003, %v6059
      %v6145 = vsub.f32 %v6004, %v6059
      %v6146 = vsub.f32 %v6005, %v6059
      %v6147 = vsub.f32 %v6006, %v6059
      %v6148 = vsub.f32 %v6007, %v6059
      %v6149 = vsub.f32 %v6008, %v6060
      %v6150 = vsub.f32 %v6009, %v6060
      %v6151 = vsub.f32 %v6010, %v6060
      %v6152 = vsub.f32 %v6011, %v6060
      %v6153 = vsub.f32 %v6012, %v6060
      %v6154 = vsub.f32 %v6013, %v6060
      %v6155 = vsub.f32 %v6014, %v6060
      %v6156 = vsub.f32 %v6015, %v6060
      %v6157 = vsub.f32 %v6016, %v6060
      %v6158 = vsub.f32 %v6017, %v6060
      %v6159 = vsub.f32 %v6018, %v6060
      %v6160 = vsub.f32 %v6019, %v6060
      %v6161 = vsub.f32 %v6020, %v6060
      %v6162 = vsub.f32 %v6021, %v6060
      %v6163 = vsub.f32 %v6022, %v6060
      %v6164 = vsub.f32 %v6023, %v6060
      %v6165 = vadd.f32 %v6131, 1e-05
      %v6166 = vadd.f32 %v6132, 1e-05
      %v6167 = vrsqrt.pop %v6165
      %v6168 = vrsqrt.pop %v6166
      %v6169 = vmul.f32 %v6133, %v6167
      %v6170 = vmul.f32 %v6134, %v6167
      %v6171 = vmul.f32 %v6135, %v6167
      %v6172 = vmul.f32 %v6136, %v6167
      %v6173 = vmul.f32 %v6137, %v6167
      %v6174 = vmul.f32 %v6138, %v6167
      %v6175 = vmul.f32 %v6139, %v6167
      %v6176 = vmul.f32 %v6140, %v6167
      %v6177 = vmul.f32 %v6141, %v6167
      %v6178 = vmul.f32 %v6142, %v6167
      %v6179 = vmul.f32 %v6143, %v6167
      %v6180 = vmul.f32 %v6144, %v6167
      %v6181 = vmul.f32 %v6145, %v6167
      %v6182 = vmul.f32 %v6146, %v6167
      %v6183 = vmul.f32 %v6147, %v6167
      %v6184 = vmul.f32 %v6148, %v6167
      %v6185 = vmul.f32 %v6149, %v6168
      %v6186 = vmul.f32 %v6150, %v6168
      %v6187 = vmul.f32 %v6151, %v6168
      %v6188 = vmul.f32 %v6152, %v6168
      %v6189 = vmul.f32 %v6153, %v6168
      %v6190 = vmul.f32 %v6154, %v6168
      %v6191 = vmul.f32 %v6155, %v6168
      %v6192 = vmul.f32 %v6156, %v6168
      %v6193 = vmul.f32 %v6157, %v6168
      %v6194 = vmul.f32 %v6158, %v6168
      %v6195 = vmul.f32 %v6159, %v6168
      %v6196 = vmul.f32 %v6160, %v6168
      %v6197 = vmul.f32 %v6161, %v6168
      %v6198 = vmul.f32 %v6162, %v6168
      %v6199 = vmul.f32 %v6163, %v6168
      %v6200 = vmul.f32 %v6164, %v6168
      %v6201 = vld [vmem:[#allocation9] sm:$0xff]
      %v6202 = vld [vmem:[#allocation9 + $0x8] sm:$0xff]
      %v6205 = vlaneseq
      %v6206 = vshrl.u32 %v6205, 7
      %v6207 = vsub.s32 0, %v6206
      %v6208 = vrot.slane %v6201, %v6207
      %v6209 = vlaneseq
      %v6210 = vshrl.u32 %v6209, 7
      %v6211 = vsub.s32 1, %v6210
      %v6212 = vrot.slane %v6201, %v6211
      %v6213 = vlaneseq
      %v6214 = vshrl.u32 %v6213, 7
      %v6215 = vsub.s32 2, %v6214
      %v6216 = vrot.slane %v6201, %v6215
      %v6217 = vlaneseq
      %v6218 = vshrl.u32 %v6217, 7
      %v6219 = vsub.s32 3, %v6218
      %v6220 = vrot.slane %v6201, %v6219
      %v6221 = vlaneseq
      %v6222 = vshrl.u32 %v6221, 7
      %v6223 = vsub.s32 4, %v6222
      %v6224 = vrot.slane %v6201, %v6223
      %v6225 = vlaneseq
      %v6226 = vshrl.u32 %v6225, 7
      %v6227 = vsub.s32 5, %v6226
      %v6228 = vrot.slane %v6201, %v6227
      %v6229 = vlaneseq
      %v6230 = vshrl.u32 %v6229, 7
      %v6231 = vsub.s32 6, %v6230
      %v6232 = vrot.slane %v6201, %v6231
      %v6233 = vlaneseq
      %v6234 = vshrl.u32 %v6233, 7
      %v6235 = vsub.s32 7, %v6234
      %v6236 = vrot.slane %v6201, %v6235
      %v6237 = vlaneseq
      %v6238 = vshrl.u32 %v6237, 7
      %v6239 = vsub.s32 0, %v6238
      %v6240 = vrot.slane %v6202, %v6239
      %v6241 = vlaneseq
      %v6242 = vshrl.u32 %v6241, 7
      %v6243 = vsub.s32 1, %v6242
      %v6244 = vrot.slane %v6202, %v6243
      %v6245 = vlaneseq
      %v6246 = vshrl.u32 %v6245, 7
      %v6247 = vsub.s32 2, %v6246
      %v6248 = vrot.slane %v6202, %v6247
      %v6249 = vlaneseq
      %v6250 = vshrl.u32 %v6249, 7
      %v6251 = vsub.s32 3, %v6250
      %v6252 = vrot.slane %v6202, %v6251
      %v6253 = vlaneseq
      %v6254 = vshrl.u32 %v6253, 7
      %v6255 = vsub.s32 4, %v6254
      %v6256 = vrot.slane %v6202, %v6255
      %v6257 = vlaneseq
      %v6258 = vshrl.u32 %v6257, 7
      %v6259 = vsub.s32 5, %v6258
      %v6260 = vrot.slane %v6202, %v6259
      %v6261 = vlaneseq
      %v6262 = vshrl.u32 %v6261, 7
      %v6263 = vsub.s32 6, %v6262
      %v6264 = vrot.slane %v6202, %v6263
      %v6265 = vlaneseq
      %v6266 = vshrl.u32 %v6265, 7
      %v6267 = vsub.s32 7, %v6266
      %v6268 = vrot.slane %v6202, %v6267
      %v6285 = vmul.f32 %v6169, %v6208
      %v6286 = vmul.f32 %v6170, %v6212
      %v6287 = vmul.f32 %v6171, %v6216
      %v6288 = vmul.f32 %v6172, %v6220
      %v6289 = vmul.f32 %v6173, %v6224
      %v6290 = vmul.f32 %v6174, %v6228
      %v6291 = vmul.f32 %v6175, %v6232
      %v6292 = vmul.f32 %v6176, %v6236
      %v6293 = vmul.f32 %v6177, %v6240
      %v6294 = vmul.f32 %v6178, %v6244
      %v6295 = vmul.f32 %v6179, %v6248
      %v6296 = vmul.f32 %v6180, %v6252
      %v6297 = vmul.f32 %v6181, %v6256
      %v6298 = vmul.f32 %v6182, %v6260
      %v6299 = vmul.f32 %v6183, %v6264
      %v6300 = vmul.f32 %v6184, %v6268
      %v6301 = vmul.f32 %v6185, %v6208
      %v6302 = vmul.f32 %v6186, %v6212
      %v6303 = vmul.f32 %v6187, %v6216
      %v6304 = vmul.f32 %v6188, %v6220
      %v6305 = vmul.f32 %v6189, %v6224
      %v6306 = vmul.f32 %v6190, %v6228
      %v6307 = vmul.f32 %v6191, %v6232
      %v6308 = vmul.f32 %v6192, %v6236
      %v6309 = vmul.f32 %v6193, %v6240
      %v6310 = vmul.f32 %v6194, %v6244
      %v6311 = vmul.f32 %v6195, %v6248
      %v6312 = vmul.f32 %v6196, %v6252
      %v6313 = vmul.f32 %v6197, %v6256
      %v6314 = vmul.f32 %v6198, %v6260
      %v6315 = vmul.f32 %v6199, %v6264
      %v6316 = vmul.f32 %v6200, %v6268
      %v6317 = vld [vmem:[#allocation11] sm:$0xff]
      %v6318 = vld [vmem:[#allocation11 + $0x8] sm:$0xff]
      %v6321 = vlaneseq
      %v6322 = vshrl.u32 %v6321, 7
      %v6323 = vsub.s32 0, %v6322
      %v6324 = vrot.slane %v6317, %v6323
      %v6325 = vlaneseq
      %v6326 = vshrl.u32 %v6325, 7
      %v6327 = vsub.s32 1, %v6326
      %v6328 = vrot.slane %v6317, %v6327
      %v6329 = vlaneseq
      %v6330 = vshrl.u32 %v6329, 7
      %v6331 = vsub.s32 2, %v6330
      %v6332 = vrot.slane %v6317, %v6331
      %v6333 = vlaneseq
      %v6334 = vshrl.u32 %v6333, 7
      %v6335 = vsub.s32 3, %v6334
      %v6336 = vrot.slane %v6317, %v6335
      %v6337 = vlaneseq
      %v6338 = vshrl.u32 %v6337, 7
      %v6339 = vsub.s32 4, %v6338
      %v6340 = vrot.slane %v6317, %v6339
      %v6341 = vlaneseq
      %v6342 = vshrl.u32 %v6341, 7
      %v6343 = vsub.s32 5, %v6342
      %v6344 = vrot.slane %v6317, %v6343
      %v6345 = vlaneseq
      %v6346 = vshrl.u32 %v6345, 7
      %v6347 = vsub.s32 6, %v6346
      %v6348 = vrot.slane %v6317, %v6347
      %v6349 = vlaneseq
      %v6350 = vshrl.u32 %v6349, 7
      %v6351 = vsub.s32 7, %v6350
      %v6352 = vrot.slane %v6317, %v6351
      %v6353 = vlaneseq
      %v6354 = vshrl.u32 %v6353, 7
      %v6355 = vsub.s32 0, %v6354
      %v6356 = vrot.slane %v6318, %v6355
      %v6357 = vlaneseq
      %v6358 = vshrl.u32 %v6357, 7
      %v6359 = vsub.s32 1, %v6358
      %v6360 = vrot.slane %v6318, %v6359
      %v6361 = vlaneseq
      %v6362 = vshrl.u32 %v6361, 7
      %v6363 = vsub.s32 2, %v6362
      %v6364 = vrot.slane %v6318, %v6363
      %v6365 = vlaneseq
      %v6366 = vshrl.u32 %v6365, 7
      %v6367 = vsub.s32 3, %v6366
      %v6368 = vrot.slane %v6318, %v6367
      %v6369 = vlaneseq
      %v6370 = vshrl.u32 %v6369, 7
      %v6371 = vsub.s32 4, %v6370
      %v6372 = vrot.slane %v6318, %v6371
      %v6373 = vlaneseq
      %v6374 = vshrl.u32 %v6373, 7
      %v6375 = vsub.s32 5, %v6374
      %v6376 = vrot.slane %v6318, %v6375
      %v6377 = vlaneseq
      %v6378 = vshrl.u32 %v6377, 7
      %v6379 = vsub.s32 6, %v6378
      %v6380 = vrot.slane %v6318, %v6379
      %v6381 = vlaneseq
      %v6382 = vshrl.u32 %v6381, 7
      %v6383 = vsub.s32 7, %v6382
      %v6384 = vrot.slane %v6318, %v6383
      %v6401 = vadd.f32 %v6285, %v6324
      %v6402 = vadd.f32 %v6286, %v6328
      %v6403 = vadd.f32 %v6287, %v6332
      %v6404 = vadd.f32 %v6288, %v6336
      %v6405 = vadd.f32 %v6289, %v6340
      %v6406 = vadd.f32 %v6290, %v6344
      %v6407 = vadd.f32 %v6291, %v6348
      %v6408 = vadd.f32 %v6292, %v6352
      %v6409 = vadd.f32 %v6293, %v6356
      %v6410 = vadd.f32 %v6294, %v6360
      %v6411 = vadd.f32 %v6295, %v6364
      %v6412 = vadd.f32 %v6296, %v6368
      %v6413 = vadd.f32 %v6297, %v6372
      %v6414 = vadd.f32 %v6298, %v6376
      %v6415 = vadd.f32 %v6299, %v6380
      %v6416 = vadd.f32 %v6300, %v6384
      %v6417 = vadd.f32 %v6301, %v6324
      %v6418 = vadd.f32 %v6302, %v6328
      %v6419 = vadd.f32 %v6303, %v6332
      %v6420 = vadd.f32 %v6304, %v6336
      %v6421 = vadd.f32 %v6305, %v6340
      %v6422 = vadd.f32 %v6306, %v6344
      %v6423 = vadd.f32 %v6307, %v6348
      %v6424 = vadd.f32 %v6308, %v6352
      %v6425 = vadd.f32 %v6309, %v6356
      %v6426 = vadd.f32 %v6310, %v6360
      %v6427 = vadd.f32 %v6311, %v6364
      %v6428 = vadd.f32 %v6312, %v6368
      %v6429 = vadd.f32 %v6313, %v6372
      %v6430 = vadd.f32 %v6314, %v6376
      %v6431 = vadd.f32 %v6315, %v6380
      %v6432 = vadd.f32 %v6316, %v6384
      %v6433 = vmax.f32 %v6401, 0.0
      %v6434 = vmax.f32 %v6402, 0.0
      %v6435 = vmax.f32 %v6403, 0.0
      %v6436 = vmax.f32 %v6404, 0.0
      %v6437 = vmax.f32 %v6405, 0.0
      %v6438 = vmax.f32 %v6406, 0.0
      %v6439 = vmax.f32 %v6407, 0.0
      %v6440 = vmax.f32 %v6408, 0.0
      %v6441 = vmax.f32 %v6409, 0.0
      %v6442 = vmax.f32 %v6410, 0.0
      %v6443 = vmax.f32 %v6411, 0.0
      %v6444 = vmax.f32 %v6412, 0.0
      %v6445 = vmax.f32 %v6413, 0.0
      %v6446 = vmax.f32 %v6414, 0.0
      %v6447 = vmax.f32 %v6415, 0.0
      %v6448 = vmax.f32 %v6416, 0.0
      %v6449 = vmax.f32 %v6417, 0.0
      %v6450 = vmax.f32 %v6418, 0.0
      %v6451 = vmax.f32 %v6419, 0.0
      %v6452 = vmax.f32 %v6420, 0.0
      %v6453 = vmax.f32 %v6421, 0.0
      %v6454 = vmax.f32 %v6422, 0.0
      %v6455 = vmax.f32 %v6423, 0.0
      %v6456 = vmax.f32 %v6424, 0.0
      %v6457 = vmax.f32 %v6425, 0.0
      %v6458 = vmax.f32 %v6426, 0.0
      %v6459 = vmax.f32 %v6427, 0.0
      %v6460 = vmax.f32 %v6428, 0.0
      %v6461 = vmax.f32 %v6429, 0.0
      %v6462 = vmax.f32 %v6430, 0.0
      %v6463 = vmax.f32 %v6431, 0.0
      %v6464 = vmax.f32 %v6432, 0.0
      %v6465 = vpack.c.bf16 %v6449, %v6433
      %v6466 = vpack.c.bf16 %v6450, %v6434
      %v6467 = vpack.c.bf16 %v6451, %v6435
      %v6468 = vpack.c.bf16 %v6452, %v6436
      %v6469 = vpack.c.bf16 %v6453, %v6437
      %v6470 = vpack.c.bf16 %v6454, %v6438
      %v6471 = vpack.c.bf16 %v6455, %v6439
      %v6472 = vpack.c.bf16 %v6456, %v6440
      %v6473 = vpack.c.bf16 %v6457, %v6441
      %v6474 = vpack.c.bf16 %v6458, %v6442
      %v6475 = vpack.c.bf16 %v6459, %v6443
      %v6476 = vpack.c.bf16 %v6460, %v6444
      %v6477 = vpack.c.bf16 %v6461, %v6445
      %v6478 = vpack.c.bf16 %v6462, %v6446
      %v6479 = vpack.c.bf16 %v6463, %v6447
      %v6480 = vpack.c.bf16 %v6464, %v6448
      %v6497 = vunpack.c.l.b16 %v6465
      %v6498 = vunpack.c.l.b16 %v6466
      %v6499 = vunpack.c.l.b16 %v6467
      %v6500 = vunpack.c.l.b16 %v6468
      %v6501 = vunpack.c.l.b16 %v6469
      %v6502 = vunpack.c.l.b16 %v6470
      %v6503 = vunpack.c.l.b16 %v6471
      %v6504 = vunpack.c.l.b16 %v6472
      %v6505 = vunpack.c.l.b16 %v6473
      %v6506 = vunpack.c.l.b16 %v6474
      %v6507 = vunpack.c.l.b16 %v6475
      %v6508 = vunpack.c.l.b16 %v6476
      %v6509 = vunpack.c.l.b16 %v6477
      %v6510 = vunpack.c.l.b16 %v6478
      %v6511 = vunpack.c.l.b16 %v6479
      %v6512 = vunpack.c.l.b16 %v6480
      %v6513 = vunpack.c.h.b16 %v6465
      %v6514 = vunpack.c.h.b16 %v6466
      %v6515 = vunpack.c.h.b16 %v6467
      %v6516 = vunpack.c.h.b16 %v6468
      %v6517 = vunpack.c.h.b16 %v6469
      %v6518 = vunpack.c.h.b16 %v6470
      %v6519 = vunpack.c.h.b16 %v6471
      %v6520 = vunpack.c.h.b16 %v6472
      %v6521 = vunpack.c.h.b16 %v6473
      %v6522 = vunpack.c.h.b16 %v6474
      %v6523 = vunpack.c.h.b16 %v6475
      %v6524 = vunpack.c.h.b16 %v6476
      %v6525 = vunpack.c.h.b16 %v6477
      %v6526 = vunpack.c.h.b16 %v6478
      %v6527 = vunpack.c.h.b16 %v6479
      %v6528 = vunpack.c.h.b16 %v6480
      %v6529 = vpack.c.b16 %v6498, %v6497
      %v6530 = vpack.c.b16 %v6500, %v6499
      %v6531 = vpack.c.b16 %v6502, %v6501
      %v6532 = vpack.c.b16 %v6504, %v6503
      %v6533 = vpack.c.b16 %v6506, %v6505
      %v6534 = vpack.c.b16 %v6508, %v6507
      %v6535 = vpack.c.b16 %v6510, %v6509
      %v6536 = vpack.c.b16 %v6512, %v6511
      %v6537 = vpack.c.b16 %v6514, %v6513
      %v6538 = vpack.c.b16 %v6516, %v6515
      %v6539 = vpack.c.b16 %v6518, %v6517
      %v6540 = vpack.c.b16 %v6520, %v6519
      %v6541 = vpack.c.b16 %v6522, %v6521
      %v6542 = vpack.c.b16 %v6524, %v6523
      %v6543 = vpack.c.b16 %v6526, %v6525
      %v6544 = vpack.c.b16 %v6528, %v6527
      %6561 = vst [vmem:[#allocation12] sm:$0xff] %v6529
      %6562 = vst [vmem:[#allocation12 + $0x8] sm:$0xff] %v6530
      %6563 = vst [vmem:[#allocation12 + $0x10] sm:$0xff] %v6531
      %6564 = vst [vmem:[#allocation12 + $0x18] sm:$0xff] %v6532
      %6565 = vst [vmem:[#allocation12 + $0x20] sm:$0xff] %v6533
      %6566 = vst [vmem:[#allocation12 + $0x28] sm:$0xff] %v6534
      %6567 = vst [vmem:[#allocation12 + $0x30] sm:$0xff] %v6535
      %6568 = vst [vmem:[#allocation12 + $0x38] sm:$0xff] %v6536
      %6569 = vst [vmem:[#allocation12 + $0x40] sm:$0xff] %v6537
      %6570 = vst [vmem:[#allocation12 + $0x48] sm:$0xff] %v6538
      %6571 = vst [vmem:[#allocation12 + $0x50] sm:$0xff] %v6539
      %6572 = vst [vmem:[#allocation12 + $0x58] sm:$0xff] %v6540
      %6573 = vst [vmem:[#allocation12 + $0x60] sm:$0xff] %v6541
      %6574 = vst [vmem:[#allocation12 + $0x68] sm:$0xff] %v6542
      %6575 = vst [vmem:[#allocation12 + $0x70] sm:$0xff] %v6543
      %6576 = vst [vmem:[#allocation12 + $0x78] sm:$0xff] %v6544
    $region49: #{tpu_custom_call.1} parent=1 // pred_fallthru
      _
    // Predicated region
    $region50: #{tpu_custom_call.1} parent=1 // pred_check
      _
    $region51: #{tpu_custom_call.1} parent=1 // pred_check_branch
      %6578 = sbr.rel (0) target = $region53
    $region52: #{tpu_custom_call.1} parent=1 // pred_region
      %s6580 = ssub.s32 2048, 2048
      %6581 = vsyncadd [#allocation5], %s6580
      %s6582 = sshll.u32 [#allocation12], 4
      %s6583 = int_to_ptr.vmem [resolvable:$true] %s6582
      %6588 = dma.vmem_to_hbm [thread:$0]  %s6583, 2048, %s5, [#allocation5], 1024, 1024, 64
    $region53: #{tpu_custom_call.1} parent=1 // pred_fallthru
      _
    // Predicated region
    $region54: #{tpu_custom_call.1} parent=1 // pred_check
      _
    $region55: #{tpu_custom_call.1} parent=1 // pred_check_branch
      %6590 = sbr.rel (0) target = $region57
    $region56: #{tpu_custom_call.1} parent=1 // pred_region
      %6591 = dma.done [#allocation5], 2048
    $region57: #{tpu_custom_call.1} parent=1 // pred_fallthru
      _
    %6592 = vsyncpa [#allocation4], 1
    %6593 = vsyncpa [#allocation7], 1
    %6594 = vsyncpa [#allocation10], 1
    %6595 = vsyncpa [#allocation5], 1

</llo_original>
